<compile_context>
chip_gen: v5e
topology: v5e:2x2
jax: 0.10.0
libtpu: 0.0.40
codegen_flags: <defaults>
</compile_context>

<pallas_src>
import math

import jax
import jax.numpy as jnp
from jax import lax
from jax.experimental import pallas as pl
from jax.experimental.pallas import tpu as pltpu

# ----------------------------- config (small mini-BERT) ----------------------
VOCAB = 100
VOCAB_PAD = 128            # pad vocab rows to a lane-friendly contraction dim
MAX_POS = 16
HIDDEN = 32
NUM_HEADS = 4
HEAD_DIM = HIDDEN // NUM_HEADS
FFN = 64
NUM_LAYERS = 2
NUM_LABELS = 6
PAD_LABELS = 128           # lane-dense classifier slab (sliced back to NUM_LABELS)
LN_EPS = 1e-12


def _gelu(x):
    # tanh approximation of GELU (lowers cleanly to EUP tanh on TPU)
    c = math.sqrt(2.0 / math.pi)
    return 0.5 * x * (1.0 + jnp.tanh(c * (x + 0.044715 * x * x * x)))


# ----------------------------- fused Pallas kernel ---------------------------
def bert_fused_kernel(ids_ref, mask_ref,
                      word_emb_ref, pos_type_ref, emb_ln_ref,
                      qkv_wb_ref, o_w_ref, lay_vec_ref,
                      ff1_wb_ref, ff2_wb_ref, pool_wb_ref, cls_wb_ref,
                      out_ref):
    """Whole mini-BERT forward on VMEM-resident data. Single invocation."""
    B, S = mask_ref.shape
    BS = B * S

    def layer_norm(v, g, b):
        mu = jnp.mean(v, axis=-1, keepdims=True)
        var = jnp.mean(jnp.square(v - mu), axis=-1, keepdims=True)
        return (v - mu) * lax.rsqrt(var + LN_EPS) * g + b

    # ---- embeddings: exact one-hot gather + pos/type add + LayerNorm --------
    ids = ids_ref[...]                                            # (B*S, 1) i32
    vocab_iota = lax.broadcasted_iota(jnp.int32, (BS, VOCAB_PAD), 1)
    onehot = (vocab_iota == ids).astype(jnp.float32)              # (B*S, 128)
    tok = jnp.dot(onehot, word_emb_ref[...],
                  preferred_element_type=jnp.float32)             # (B*S, H)
    pos_type = pos_type_ref[0:S, :]                               # (S, H)
    emb = tok + jnp.concatenate([pos_type] * B, axis=0)
    x = layer_norm(emb, emb_ln_ref[0:1, :], emb_ln_ref[1:2, :])   # (B*S, H)

    # ---- additive attention mask: broadcast ONCE per batch row --------------
    mask_add = (1.0 - mask_ref[...].astype(jnp.float32)) * (-1e9)  # (B, S)
    mask_bc = [jnp.broadcast_to(mask_add[b:b + 1, :], (S, S)) for b in range(B)]

    for l in range(NUM_LAYERS):                                   # static unroll
        # ---------------------- multi-head self-attention --------------------
        attn = [None] * B
        for h in range(NUM_HEADS):                                # static unroll
            def proj(which):
                # per-head (H+1, HD) weight block, bias in the last row;
                # softmax 1/sqrt(HD) already folded into the Q block at init.
                wb = qkv_wb_ref[(l * 3 + which) * NUM_HEADS + h]
                return (jnp.dot(x, wb[:HIDDEN, :],
                                preferred_element_type=jnp.float32)
                        + wb[HIDDEN:HIDDEN + 1, :])
            q_h = proj(0)                                         # (B*S, HD)
            k_h = proj(1)
            v_h = proj(2)
            ow_h = o_w_ref[l * NUM_HEADS + h]                     # (HD, H)
            for b in range(B):                                    # static unroll
                r = b * S
                s = lax.dot_general(q_h[r:r + S, :], k_h[r:r + S, :],
                                    (((1,), (1,)), ((), ())),
                                    preferred_element_type=jnp.float32)
                s = s + mask_bc[b]
                s = s - jnp.max(s, axis=-1, keepdims=True)
                p = jnp.exp(s)
                p = p / jnp.sum(p, axis=-1, keepdims=True)        # exact softmax
                ctx = jnp.dot(p, v_h[r:r + S, :],
                              preferred_element_type=jnp.float32)  # (S, HD)
                o_bh = jnp.dot(ctx, ow_h, preferred_element_type=jnp.float32)
                attn[b] = o_bh if attn[b] is None else attn[b] + o_bh
        vrow = l * 5
        attn_out = (jnp.concatenate(attn, axis=0)
                    + lay_vec_ref[vrow:vrow + 1, :])              # + o_b
        x = layer_norm(attn_out + x,
                       lay_vec_ref[vrow + 1:vrow + 2, :],          # ln1_g
                       lay_vec_ref[vrow + 2:vrow + 3, :])          # ln1_b

        # -------------------------------- FFN ---------------------------------
        ff1 = ff1_wb_ref[l]                                       # (H+1, FFN)
        hdn = _gelu(jnp.dot(x, ff1[:HIDDEN, :],
                            preferred_element_type=jnp.float32)
                    + ff1[HIDDEN:HIDDEN + 1, :])
        ff2 = ff2_wb_ref[l]                                       # (FFN+1, H)
        ff_out = (jnp.dot(hdn, ff2[:FFN, :],
                          preferred_element_type=jnp.float32)
                  + ff2[FFN:FFN + 1, :])
        x = layer_norm(ff_out + x,
                       lay_vec_ref[vrow + 3:vrow + 4, :],          # ln2_g
                       lay_vec_ref[vrow + 4:vrow + 5, :])          # ln2_b

    # ---- pooler (tanh(Linear(h[:, 0]))) + dropout(eval) + classifier --------
    cls_tok = jnp.concatenate([x[b * S:b * S + 1, :] for b in range(B)], axis=0)
    pooled = jnp.tanh(jnp.dot(cls_tok, pool_wb_ref[:HIDDEN, :],
                              preferred_element_type=jnp.float32)
                      + pool_wb_ref[HIDDEN:HIDDEN + 1, :])
    # Dropout(p=0.3): identity in eval mode.
    out_ref[...] = (jnp.dot(pooled, cls_wb_ref[:HIDDEN, :],
                            preferred_element_type=jnp.float32)
                    + cls_wb_ref[HIDDEN:HIDDEN + 1, :]).astype(out_ref.dtype)


# ----------------------------- params ----------------------------------------
def init_params(key):
    keys = iter(jax.random.split(key, 64))

    def nrm(shape):
        return 0.02 * jax.random.normal(next(keys), shape, dtype=jnp.float32)

    def per_layer(shape):
        return jnp.stack([nrm(shape) for _ in range(NUM_LAYERS)], axis=0)

    return {
        "word_emb": nrm((VOCAB, HIDDEN)),
        "pos_emb": nrm((MAX_POS, HIDDEN)),
        "type_emb": nrm((2, HIDDEN)),
        "emb_ln_g": jnp.ones((HIDDEN,), jnp.float32),
        "emb_ln_b": jnp.zeros((HIDDEN,), jnp.float32),
        "q_w": per_layer((HIDDEN, HIDDEN)),
        "q_b": jnp.zeros((NUM_LAYERS, HIDDEN), jnp.float32),
        "k_w": per_layer((HIDDEN, HIDDEN)),
        "k_b": jnp.zeros((NUM_LAYERS, HIDDEN), jnp.float32),
        "v_w": per_layer((HIDDEN, HIDDEN)),
        "v_b": jnp.zeros((NUM_LAYERS, HIDDEN), jnp.float32),
        "o_w": per_layer((HIDDEN, HIDDEN)),
        "o_b": jnp.zeros((NUM_LAYERS, HIDDEN), jnp.float32),
        "ln1_g": jnp.ones((NUM_LAYERS, HIDDEN), jnp.float32),
        "ln1_b": jnp.zeros((NUM_LAYERS, HIDDEN), jnp.float32),
        "ff1_w": per_layer((HIDDEN, FFN)),
        "ff1_b": jnp.zeros((NUM_LAYERS, FFN), jnp.float32),
        "ff2_w": per_layer((FFN, HIDDEN)),
        "ff2_b": jnp.zeros((NUM_LAYERS, HIDDEN), jnp.float32),
        "ln2_g": jnp.ones((NUM_LAYERS, HIDDEN), jnp.float32),
        "ln2_b": jnp.zeros((NUM_LAYERS, HIDDEN), jnp.float32),
        "pooler_w": nrm((HIDDEN, HIDDEN)),
        "pooler_b": jnp.zeros((HIDDEN,), jnp.float32),
        "cls_w": nrm((HIDDEN, NUM_LABELS)),
        "cls_b": jnp.zeros((NUM_LABELS,), jnp.float32),
    }


def pack_params(p):
    """One-time repack of natural BERT params into kernel-ready, DMA-friendly
    stacks: per-head weight splits (no lane-offset slicing in the kernel),
    bias stored as the last weight row, softmax scale folded into Q, padded
    vocab rows, lane-padded classifier. Done once, outside the jitted path."""
    scale = 1.0 / math.sqrt(HEAD_DIM)

    # Per-head Q/K/V blocks: (L*3*NUM_HEADS, HIDDEN+1, HEAD_DIM)
    qkv_wb = []
    for l in range(NUM_LAYERS):
        triples = ((p["q_w"][l] * scale, p["q_b"][l] * scale),
                   (p["k_w"][l], p["k_b"][l]),
                   (p["v_w"][l], p["v_b"][l]))
        for w, b in triples:
            for h in range(NUM_HEADS):
                cols = slice(h * HEAD_DIM, (h + 1) * HEAD_DIM)
                qkv_wb.append(jnp.concatenate([w[:, cols], b[None, cols]], axis=0))
    qkv_wb = jnp.stack(qkv_wb, axis=0)

    # Per-head output-projection blocks: (L*NUM_HEADS, HEAD_DIM, HIDDEN)
    o_w = jnp.stack([p["o_w"][l][h * HEAD_DIM:(h + 1) * HEAD_DIM, :]
                     for l in range(NUM_LAYERS) for h in range(NUM_HEADS)],
                    axis=0)

    # All per-layer H-wide vectors in one slab: rows [o_b, ln1_g, ln1_b, ln2_g, ln2_b]
    lay_vec = jnp.stack([v for l in range(NUM_LAYERS)
                         for v in (p["o_b"][l], p["ln1_g"][l], p["ln1_b"][l],
                                   p["ln2_g"][l], p["ln2_b"][l])],
                        axis=0)                                  # (L*5, H)

    ff1_wb = jnp.concatenate([p["ff1_w"], p["ff1_b"][:, None, :]], axis=1)
    ff2_wb = jnp.concatenate([p["ff2_w"], p["ff2_b"][:, None, :]], axis=1)
    pool_wb = jnp.concatenate([p["pooler_w"], p["pooler_b"][None, :]], axis=0)

    cls_w_pad = jnp.zeros((HIDDEN, PAD_LABELS), jnp.float32)
    cls_w_pad = cls_w_pad.at[:, :NUM_LABELS].set(p["cls_w"])
    cls_b_pad = jnp.zeros((1, PAD_LABELS), jnp.float32)
    cls_b_pad = cls_b_pad.at[0, :NUM_LABELS].set(p["cls_b"])
    cls_wb = jnp.concatenate([cls_w_pad, cls_b_pad], axis=0)     # (H+1, 128)

    word_emb_pad = jnp.zeros((VOCAB_PAD, HIDDEN), jnp.float32)
    word_emb_pad = word_emb_pad.at[:VOCAB, :].set(p["word_emb"])

    return {
        "word_emb": word_emb_pad,
        "pos_type_emb": p["pos_emb"] + p["type_emb"][0][None, :],   # token_type_ids == 0
        "emb_ln": jnp.stack([p["emb_ln_g"], p["emb_ln_b"]], axis=0),  # (2, H)
        "qkv_wb": qkv_wb, "o_w": o_w, "lay_vec": lay_vec,
        "ff1_wb": ff1_wb, "ff2_wb": ff2_wb,
        "pool_wb": pool_wb, "cls_wb": cls_wb,
    }


# ----------------------------- forward ----------------------------------------
@jax.jit
def bert_multilabel_forward(packed, input_ids, attention_mask):
    B, S = input_ids.shape
    ids = input_ids.reshape(B * S, 1).astype(jnp.int32)   # metadata-only reshape
    mask = attention_mask.astype(jnp.int32)

    args = (ids, mask,
            packed["word_emb"], packed["pos_type_emb"], packed["emb_ln"],
            packed["qkv_wb"], packed["o_w"], packed["lay_vec"],
            packed["ff1_wb"], packed["ff2_wb"],
            packed["pool_wb"], packed["cls_wb"])

    vmem = pl.BlockSpec(memory_space=pltpu.MemorySpace.VMEM)
    logits_pad = pl.pallas_call(
        bert_fused_kernel,
        out_shape=jax.ShapeDtypeStruct((B, PAD_LABELS), jnp.float32),
        in_specs=[vmem] * len(args),
        out_specs=vmem,
    )(*args)

    return logits_pad[:, :NUM_LABELS]


if __name__ == "__main__":
    key = jax.random.PRNGKey(0)
    pkey, ikey = jax.random.split(key)

    params = init_params(pkey)
    packed = pack_params(params)

    B, S = 2, 8
    input_ids = jax.random.randint(ikey, (B, S), 0, VOCAB, dtype=jnp.int32)
    attention_mask = jnp.array([[1, 1, 1, 1, 1, 1, 1, 1],
                                [1, 1, 1, 1, 1, 0, 0, 0]], dtype=jnp.int32)

    logits = bert_multilabel_forward(packed, input_ids, attention_mask)
    jax.block_until_ready(logits)
    assert logits.shape == (B, NUM_LABELS)
    assert bool(jnp.all(jnp.isfinite(logits)))
    print("KERNEL_OK")
</pallas_src>

<mosaic_0001>
module attributes {stable_mosaic.version = 11 : i64} {
  func.func @bert_fused_kernel(%arg0: memref<16x1xi32, #tpu.memory_space<vmem>>, %arg1: memref<2x8xi32, #tpu.memory_space<vmem>>, %arg2: memref<128x32xf32, #tpu.memory_space<vmem>>, %arg3: memref<16x32xf32, #tpu.memory_space<vmem>>, %arg4: memref<2x32xf32, #tpu.memory_space<vmem>>, %arg5: memref<24x33x8xf32, #tpu.memory_space<vmem>>, %arg6: memref<8x8x32xf32, #tpu.memory_space<vmem>>, %arg7: memref<10x32xf32, #tpu.memory_space<vmem>>, %arg8: memref<2x33x64xf32, #tpu.memory_space<vmem>>, %arg9: memref<2x65x32xf32, #tpu.memory_space<vmem>>, %arg10: memref<33x32xf32, #tpu.memory_space<vmem>>, %arg11: memref<33x128xf32, #tpu.memory_space<vmem>>, %arg12: memref<2x128xf32, #tpu.memory_space<vmem>>) attributes {dimension_semantics = [], scalar_prefetch = 0 : i64, scratch_operands = 0 : i64, tpu.core_type = #tpu.core_type<tc>} {
    %c0 = arith.constant 0 : index
    %c0_0 = arith.constant 0 : index
    %0 = vector.load %arg0[%c0, %c0_0] : memref<16x1xi32, #tpu.memory_space<vmem>>, vector<16x1xi32>
    %1 = tpu.iota {dimensions = array<i32: 1>} : vector<16x128xi32>
    %2 = vector.broadcast %0 : vector<16x1xi32> to vector<16x128xi32>
    %3 = arith.cmpi eq, %1, %2 : vector<16x128xi32>
    %4 = arith.extui %3 : vector<16x128xi1> to vector<16x128xi32>
    %5 = arith.sitofp %4 : vector<16x128xi32> to vector<16x128xf32>
    %c0_1 = arith.constant 0 : index
    %c0_2 = arith.constant 0 : index
    %6 = vector.load %arg2[%c0_1, %c0_2] : memref<128x32xf32, #tpu.memory_space<vmem>>, vector<128x32xf32>
    %cst = arith.constant dense<0.000000e+00> : vector<16x32xf32>
    %7 = tpu.matmul %5, %6, %cst {dimension_numbers = #tpu.dot_dimension_numbers<[1], [0], [0], [1], [0, 0, 1, 1], [], []>} : vector<16x128xf32>, vector<128x32xf32>, vector<16x32xf32> -> vector<16x32xf32>
    %c0_3 = arith.constant 0 : index
    %c0_4 = arith.constant 0 : index
    %8 = vector.load %arg3[%c0_3, %c0_4] : memref<16x32xf32, #tpu.memory_space<vmem>>, vector<8x32xf32>
    %9 = tpu.concatenate %8, %8 in 0 : vector<8x32xf32>, vector<8x32xf32> -> vector<16x32xf32>
    %10 = arith.addf %7, %9 : vector<16x32xf32>
    %c0_5 = arith.constant 0 : index
    %c0_6 = arith.constant 0 : index
    %11 = vector.load %arg4[%c0_5, %c0_6] : memref<2x32xf32, #tpu.memory_space<vmem>>, vector<1x32xf32>
    %c1 = arith.constant 1 : index
    %c0_7 = arith.constant 0 : index
    %12 = vector.load %arg4[%c1, %c0_7] : memref<2x32xf32, #tpu.memory_space<vmem>>, vector<1x32xf32>
    %cst_8 = arith.constant dense<0.000000e+00> : vector<16xf32>
    %13 = vector.multi_reduction <add>, %10, %cst_8 [1] : vector<16x32xf32> to vector<16xf32>
    %14 = vector.shape_cast %13 : vector<16xf32> to vector<16x1xf32>
    %cst_9 = arith.constant 3.200000e+01 : f32
    %15 = vector.broadcast %cst_9 : f32 to vector<16x1xf32>
    %16 = arith.divf %14, %15 : vector<16x1xf32>
    %17 = vector.broadcast %16 : vector<16x1xf32> to vector<16x32xf32>
    %18 = arith.subf %10, %17 : vector<16x32xf32>
    %19 = arith.mulf %18, %18 : vector<16x32xf32>
    %cst_10 = arith.constant dense<0.000000e+00> : vector<16xf32>
    %20 = vector.multi_reduction <add>, %19, %cst_10 [1] : vector<16x32xf32> to vector<16xf32>
    %21 = vector.shape_cast %20 : vector<16xf32> to vector<16x1xf32>
    %cst_11 = arith.constant 3.200000e+01 : f32
    %22 = vector.broadcast %cst_11 : f32 to vector<16x1xf32>
    %23 = arith.divf %21, %22 : vector<16x1xf32>
    %24 = vector.broadcast %16 : vector<16x1xf32> to vector<16x32xf32>
    %25 = arith.subf %10, %24 : vector<16x32xf32>
    %cst_12 = arith.constant 9.99999996E-13 : f32
    %26 = vector.broadcast %cst_12 : f32 to vector<16x1xf32>
    %27 = arith.addf %23, %26 : vector<16x1xf32>
    %28 = math.rsqrt %27 : vector<16x1xf32>
    %29 = vector.broadcast %28 : vector<16x1xf32> to vector<16x32xf32>
    %30 = arith.mulf %25, %29 : vector<16x32xf32>
    %31 = vector.broadcast %11 : vector<1x32xf32> to vector<16x32xf32>
    %32 = arith.mulf %30, %31 : vector<16x32xf32>
    %33 = vector.broadcast %12 : vector<1x32xf32> to vector<16x32xf32>
    %34 = arith.addf %32, %33 : vector<16x32xf32>
    %c0_13 = arith.constant 0 : index
    %c0_14 = arith.constant 0 : index
    %35 = vector.load %arg1[%c0_13, %c0_14] : memref<2x8xi32, #tpu.memory_space<vmem>>, vector<2x8xi32>
    %36 = arith.sitofp %35 : vector<2x8xi32> to vector<2x8xf32>
    %cst_15 = arith.constant 1.000000e+00 : f32
    %37 = vector.broadcast %cst_15 : f32 to vector<2x8xf32>
    %38 = arith.subf %37, %36 : vector<2x8xf32>
    %cst_16 = arith.constant -1.000000e+09 : f32
    %39 = vector.broadcast %cst_16 : f32 to vector<2x8xf32>
    %40 = arith.mulf %38, %39 : vector<2x8xf32>
    %41 = vector.extract_strided_slice %40 {offsets = [0, 0], sizes = [1, 8], strides = [1, 1]} : vector<2x8xf32> to vector<1x8xf32>
    %42 = vector.shape_cast %41 : vector<1x8xf32> to vector<1x8xf32>
    %43 = vector.broadcast %42 : vector<1x8xf32> to vector<8x8xf32>
    %44 = vector.extract_strided_slice %40 {offsets = [1, 0], sizes = [1, 8], strides = [1, 1]} : vector<2x8xf32> to vector<1x8xf32>
    %45 = vector.shape_cast %44 : vector<1x8xf32> to vector<1x8xf32>
    %46 = vector.broadcast %45 : vector<1x8xf32> to vector<8x8xf32>
    %c0_17 = arith.constant 0 : index
    %c0_18 = arith.constant 0 : index
    %c0_19 = arith.constant 0 : index
    %47 = vector.load %arg5[%c0_17, %c0_18, %c0_19] : memref<24x33x8xf32, #tpu.memory_space<vmem>>, vector<1x33x8xf32>
    %48 = vector.shape_cast %47 : vector<1x33x8xf32> to vector<33x8xf32>
    %49 = vector.extract_strided_slice %48 {offsets = [0, 0], sizes = [32, 8], strides = [1, 1]} : vector<33x8xf32> to vector<32x8xf32>
    %cst_20 = arith.constant dense<0.000000e+00> : vector<16x8xf32>
    %50 = tpu.matmul %34, %49, %cst_20 {dimension_numbers = #tpu.dot_dimension_numbers<[1], [0], [0], [1], [0, 0, 1, 1], [], []>} : vector<16x32xf32>, vector<32x8xf32>, vector<16x8xf32> -> vector<16x8xf32>
    %51 = vector.extract_strided_slice %48 {offsets = [32, 0], sizes = [1, 8], strides = [1, 1]} : vector<33x8xf32> to vector<1x8xf32>
    %52 = vector.broadcast %51 : vector<1x8xf32> to vector<16x8xf32>
    %53 = arith.addf %50, %52 : vector<16x8xf32>
    %c4 = arith.constant 4 : index
    %c0_21 = arith.constant 0 : index
    %c0_22 = arith.constant 0 : index
    %54 = vector.load %arg5[%c4, %c0_21, %c0_22] : memref<24x33x8xf32, #tpu.memory_space<vmem>>, vector<1x33x8xf32>
    %55 = vector.shape_cast %54 : vector<1x33x8xf32> to vector<33x8xf32>
    %56 = vector.extract_strided_slice %55 {offsets = [0, 0], sizes = [32, 8], strides = [1, 1]} : vector<33x8xf32> to vector<32x8xf32>
    %cst_23 = arith.constant dense<0.000000e+00> : vector<16x8xf32>
    %57 = tpu.matmul %34, %56, %cst_23 {dimension_numbers = #tpu.dot_dimension_numbers<[1], [0], [0], [1], [0, 0, 1, 1], [], []>} : vector<16x32xf32>, vector<32x8xf32>, vector<16x8xf32> -> vector<16x8xf32>
    %58 = vector.extract_strided_slice %55 {offsets = [32, 0], sizes = [1, 8], strides = [1, 1]} : vector<33x8xf32> to vector<1x8xf32>
    %59 = vector.broadcast %58 : vector<1x8xf32> to vector<16x8xf32>
    %60 = arith.addf %57, %59 : vector<16x8xf32>
    %c8 = arith.constant 8 : index
    %c0_24 = arith.constant 0 : index
    %c0_25 = arith.constant 0 : index
    %61 = vector.load %arg5[%c8, %c0_24, %c0_25] : memref<24x33x8xf32, #tpu.memory_space<vmem>>, vector<1x33x8xf32>
    %62 = vector.shape_cast %61 : vector<1x33x8xf32> to vector<33x8xf32>
    %63 = vector.extract_strided_slice %62 {offsets = [0, 0], sizes = [32, 8], strides = [1, 1]} : vector<33x8xf32> to vector<32x8xf32>
    %cst_26 = arith.constant dense<0.000000e+00> : vector<16x8xf32>
    %64 = tpu.matmul %34, %63, %cst_26 {dimension_numbers = #tpu.dot_dimension_numbers<[1], [0], [0], [1], [0, 0, 1, 1], [], []>} : vector<16x32xf32>, vector<32x8xf32>, vector<16x8xf32> -> vector<16x8xf32>
    %65 = vector.extract_strided_slice %62 {offsets = [32, 0], sizes = [1, 8], strides = [1, 1]} : vector<33x8xf32> to vector<1x8xf32>
    %66 = vector.broadcast %65 : vector<1x8xf32> to vector<16x8xf32>
    %67 = arith.addf %64, %66 : vector<16x8xf32>
    %c0_27 = arith.constant 0 : index
    %c0_28 = arith.constant 0 : index
    %c0_29 = arith.constant 0 : index
    %68 = vector.load %arg6[%c0_27, %c0_28, %c0_29] : memref<8x8x32xf32, #tpu.memory_space<vmem>>, vector<1x8x32xf32>
    %69 = vector.shape_cast %68 : vector<1x8x32xf32> to vector<8x32xf32>
    %70 = vector.extract_strided_slice %53 {offsets = [0, 0], sizes = [8, 8], strides = [1, 1]} : vector<16x8xf32> to vector<8x8xf32>
    %71 = vector.extract_strided_slice %60 {offsets = [0, 0], sizes = [8, 8], strides = [1, 1]} : vector<16x8xf32> to vector<8x8xf32>
    %cst_30 = arith.constant dense<0.000000e+00> : vector<8x8xf32>
    %72 = tpu.matmul %70, %71, %cst_30 {dimension_numbers = #tpu.dot_dimension_numbers<[1], [1], [0], [0], [0, 0, 1, 0], [], []>} : vector<8x8xf32>, vector<8x8xf32>, vector<8x8xf32> -> vector<8x8xf32>
    %73 = arith.addf %72, %43 : vector<8x8xf32>
    %cst_31 = arith.constant dense<0xFF800000> : vector<8xf32>
    %74 = vector.multi_reduction <maximumf>, %73, %cst_31 [1] : vector<8x8xf32> to vector<8xf32>
    %75 = vector.shape_cast %74 : vector<8xf32> to vector<8x1xf32>
    %76 = vector.broadcast %75 : vector<8x1xf32> to vector<8x8xf32>
    %77 = arith.subf %73, %76 : vector<8x8xf32>
    %78 = math.exp %77 : vector<8x8xf32>
    %cst_32 = arith.constant dense<0.000000e+00> : vector<8xf32>
    %79 = vector.multi_reduction <add>, %78, %cst_32 [1] : vector<8x8xf32> to vector<8xf32>
    %80 = vector.shape_cast %79 : vector<8xf32> to vector<8x1xf32>
    %81 = vector.broadcast %80 : vector<8x1xf32> to vector<8x8xf32>
    %82 = arith.divf %78, %81 : vector<8x8xf32>
    %83 = vector.extract_strided_slice %67 {offsets = [0, 0], sizes = [8, 8], strides = [1, 1]} : vector<16x8xf32> to vector<8x8xf32>
    %cst_33 = arith.constant dense<0.000000e+00> : vector<8x8xf32>
    %84 = tpu.matmul %82, %83, %cst_33 {dimension_numbers = #tpu.dot_dimension_numbers<[1], [0], [0], [1], [0, 0, 1, 1], [], []>} : vector<8x8xf32>, vector<8x8xf32>, vector<8x8xf32> -> vector<8x8xf32>
    %cst_34 = arith.constant dense<0.000000e+00> : vector<8x32xf32>
    %85 = tpu.matmul %84, %69, %cst_34 {dimension_numbers = #tpu.dot_dimension_numbers<[1], [0], [0], [1], [0, 0, 1, 1], [], []>} : vector<8x8xf32>, vector<8x32xf32>, vector<8x32xf32> -> vector<8x32xf32>
    %86 = vector.extract_strided_slice %53 {offsets = [8, 0], sizes = [8, 8], strides = [1, 1]} : vector<16x8xf32> to vector<8x8xf32>
    %87 = vector.extract_strided_slice %60 {offsets = [8, 0], sizes = [8, 8], strides = [1, 1]} : vector<16x8xf32> to vector<8x8xf32>
    %cst_35 = arith.constant dense<0.000000e+00> : vector<8x8xf32>
    %88 = tpu.matmul %86, %87, %cst_35 {dimension_numbers = #tpu.dot_dimension_numbers<[1], [1], [0], [0], [0, 0, 1, 0], [], []>} : vector<8x8xf32>, vector<8x8xf32>, vector<8x8xf32> -> vector<8x8xf32>
    %89 = arith.addf %88, %46 : vector<8x8xf32>
    %cst_36 = arith.constant dense<0xFF800000> : vector<8xf32>
    %90 = vector.multi_reduction <maximumf>, %89, %cst_36 [1] : vector<8x8xf32> to vector<8xf32>
    %91 = vector.shape_cast %90 : vector<8xf32> to vector<8x1xf32>
    %92 = vector.broadcast %91 : vector<8x1xf32> to vector<8x8xf32>
    %93 = arith.subf %89, %92 : vector<8x8xf32>
    %94 = math.exp %93 : vector<8x8xf32>
    %cst_37 = arith.constant dense<0.000000e+00> : vector<8xf32>
    %95 = vector.multi_reduction <add>, %94, %cst_37 [1] : vector<8x8xf32> to vector<8xf32>
    %96 = vector.shape_cast %95 : vector<8xf32> to vector<8x1xf32>
    %97 = vector.broadcast %96 : vector<8x1xf32> to vector<8x8xf32>
    %98 = arith.divf %94, %97 : vector<8x8xf32>
    %99 = vector.extract_strided_slice %67 {offsets = [8, 0], sizes = [8, 8], strides = [1, 1]} : vector<16x8xf32> to vector<8x8xf32>
    %cst_38 = arith.constant dense<0.000000e+00> : vector<8x8xf32>
    %100 = tpu.matmul %98, %99, %cst_38 {dimension_numbers = #tpu.dot_dimension_numbers<[1], [0], [0], [1], [0, 0, 1, 1], [], []>} : vector<8x8xf32>, vector<8x8xf32>, vector<8x8xf32> -> vector<8x8xf32>
    %cst_39 = arith.constant dense<0.000000e+00> : vector<8x32xf32>
    %101 = tpu.matmul %100, %69, %cst_39 {dimension_numbers = #tpu.dot_dimension_numbers<[1], [0], [0], [1], [0, 0, 1, 1], [], []>} : vector<8x8xf32>, vector<8x32xf32>, vector<8x32xf32> -> vector<8x32xf32>
    %c1_40 = arith.constant 1 : index
    %c0_41 = arith.constant 0 : index
    %c0_42 = arith.constant 0 : index
    %102 = vector.load %arg5[%c1_40, %c0_41, %c0_42] : memref<24x33x8xf32, #tpu.memory_space<vmem>>, vector<1x33x8xf32>
    %103 = vector.shape_cast %102 : vector<1x33x8xf32> to vector<33x8xf32>
    %104 = vector.extract_strided_slice %103 {offsets = [0, 0], sizes = [32, 8], strides = [1, 1]} : vector<33x8xf32> to vector<32x8xf32>
    %cst_43 = arith.constant dense<0.000000e+00> : vector<16x8xf32>
    %105 = tpu.matmul %34, %104, %cst_43 {dimension_numbers = #tpu.dot_dimension_numbers<[1], [0], [0], [1], [0, 0, 1, 1], [], []>} : vector<16x32xf32>, vector<32x8xf32>, vector<16x8xf32> -> vector<16x8xf32>
    %106 = vector.extract_strided_slice %103 {offsets = [32, 0], sizes = [1, 8], strides = [1, 1]} : vector<33x8xf32> to vector<1x8xf32>
    %107 = vector.broadcast %106 : vector<1x8xf32> to vector<16x8xf32>
    %108 = arith.addf %105, %107 : vector<16x8xf32>
    %c5 = arith.constant 5 : index
    %c0_44 = arith.constant 0 : index
    %c0_45 = arith.constant 0 : index
    %109 = vector.load %arg5[%c5, %c0_44, %c0_45] : memref<24x33x8xf32, #tpu.memory_space<vmem>>, vector<1x33x8xf32>
    %110 = vector.shape_cast %109 : vector<1x33x8xf32> to vector<33x8xf32>
    %111 = vector.extract_strided_slice %110 {offsets = [0, 0], sizes = [32, 8], strides = [1, 1]} : vector<33x8xf32> to vector<32x8xf32>
    %cst_46 = arith.constant dense<0.000000e+00> : vector<16x8xf32>
    %112 = tpu.matmul %34, %111, %cst_46 {dimension_numbers = #tpu.dot_dimension_numbers<[1], [0], [0], [1], [0, 0, 1, 1], [], []>} : vector<16x32xf32>, vector<32x8xf32>, vector<16x8xf32> -> vector<16x8xf32>
    %113 = vector.extract_strided_slice %110 {offsets = [32, 0], sizes = [1, 8], strides = [1, 1]} : vector<33x8xf32> to vector<1x8xf32>
    %114 = vector.broadcast %113 : vector<1x8xf32> to vector<16x8xf32>
    %115 = arith.addf %112, %114 : vector<16x8xf32>
    %c9 = arith.constant 9 : index
    %c0_47 = arith.constant 0 : index
    %c0_48 = arith.constant 0 : index
    %116 = vector.load %arg5[%c9, %c0_47, %c0_48] : memref<24x33x8xf32, #tpu.memory_space<vmem>>, vector<1x33x8xf32>
    %117 = vector.shape_cast %116 : vector<1x33x8xf32> to vector<33x8xf32>
    %118 = vector.extract_strided_slice %117 {offsets = [0, 0], sizes = [32, 8], strides = [1, 1]} : vector<33x8xf32> to vector<32x8xf32>
    %cst_49 = arith.constant dense<0.000000e+00> : vector<16x8xf32>
    %119 = tpu.matmul %34, %118, %cst_49 {dimension_numbers = #tpu.dot_dimension_numbers<[1], [0], [0], [1], [0, 0, 1, 1], [], []>} : vector<16x32xf32>, vector<32x8xf32>, vector<16x8xf32> -> vector<16x8xf32>
    %120 = vector.extract_strided_slice %117 {offsets = [32, 0], sizes = [1, 8], strides = [1, 1]} : vector<33x8xf32> to vector<1x8xf32>
    %121 = vector.broadcast %120 : vector<1x8xf32> to vector<16x8xf32>
    %122 = arith.addf %119, %121 : vector<16x8xf32>
    %c1_50 = arith.constant 1 : index
    %c0_51 = arith.constant 0 : index
    %c0_52 = arith.constant 0 : index
    %123 = vector.load %arg6[%c1_50, %c0_51, %c0_52] : memref<8x8x32xf32, #tpu.memory_space<vmem>>, vector<1x8x32xf32>
    %124 = vector.shape_cast %123 : vector<1x8x32xf32> to vector<8x32xf32>
    %125 = vector.extract_strided_slice %108 {offsets = [0, 0], sizes = [8, 8], strides = [1, 1]} : vector<16x8xf32> to vector<8x8xf32>
    %126 = vector.extract_strided_slice %115 {offsets = [0, 0], sizes = [8, 8], strides = [1, 1]} : vector<16x8xf32> to vector<8x8xf32>
    %cst_53 = arith.constant dense<0.000000e+00> : vector<8x8xf32>
    %127 = tpu.matmul %125, %126, %cst_53 {dimension_numbers = #tpu.dot_dimension_numbers<[1], [1], [0], [0], [0, 0, 1, 0], [], []>} : vector<8x8xf32>, vector<8x8xf32>, vector<8x8xf32> -> vector<8x8xf32>
    %128 = arith.addf %127, %43 : vector<8x8xf32>
    %cst_54 = arith.constant dense<0xFF800000> : vector<8xf32>
    %129 = vector.multi_reduction <maximumf>, %128, %cst_54 [1] : vector<8x8xf32> to vector<8xf32>
    %130 = vector.shape_cast %129 : vector<8xf32> to vector<8x1xf32>
    %131 = vector.broadcast %130 : vector<8x1xf32> to vector<8x8xf32>
    %132 = arith.subf %128, %131 : vector<8x8xf32>
    %133 = math.exp %132 : vector<8x8xf32>
    %cst_55 = arith.constant dense<0.000000e+00> : vector<8xf32>
    %134 = vector.multi_reduction <add>, %133, %cst_55 [1] : vector<8x8xf32> to vector<8xf32>
    %135 = vector.shape_cast %134 : vector<8xf32> to vector<8x1xf32>
    %136 = vector.broadcast %135 : vector<8x1xf32> to vector<8x8xf32>
    %137 = arith.divf %133, %136 : vector<8x8xf32>
    %138 = vector.extract_strided_slice %122 {offsets = [0, 0], sizes = [8, 8], strides = [1, 1]} : vector<16x8xf32> to vector<8x8xf32>
    %cst_56 = arith.constant dense<0.000000e+00> : vector<8x8xf32>
    %139 = tpu.matmul %137, %138, %cst_56 {dimension_numbers = #tpu.dot_dimension_numbers<[1], [0], [0], [1], [0, 0, 1, 1], [], []>} : vector<8x8xf32>, vector<8x8xf32>, vector<8x8xf32> -> vector<8x8xf32>
    %cst_57 = arith.constant dense<0.000000e+00> : vector<8x32xf32>
    %140 = tpu.matmul %139, %124, %cst_57 {dimension_numbers = #tpu.dot_dimension_numbers<[1], [0], [0], [1], [0, 0, 1, 1], [], []>} : vector<8x8xf32>, vector<8x32xf32>, vector<8x32xf32> -> vector<8x32xf32>
    %141 = arith.addf %85, %140 : vector<8x32xf32>
    %142 = vector.extract_strided_slice %108 {offsets = [8, 0], sizes = [8, 8], strides = [1, 1]} : vector<16x8xf32> to vector<8x8xf32>
    %143 = vector.extract_strided_slice %115 {offsets = [8, 0], sizes = [8, 8], strides = [1, 1]} : vector<16x8xf32> to vector<8x8xf32>
    %cst_58 = arith.constant dense<0.000000e+00> : vector<8x8xf32>
    %144 = tpu.matmul %142, %143, %cst_58 {dimension_numbers = #tpu.dot_dimension_numbers<[1], [1], [0], [0], [0, 0, 1, 0], [], []>} : vector<8x8xf32>, vector<8x8xf32>, vector<8x8xf32> -> vector<8x8xf32>
    %145 = arith.addf %144, %46 : vector<8x8xf32>
    %cst_59 = arith.constant dense<0xFF800000> : vector<8xf32>
    %146 = vector.multi_reduction <maximumf>, %145, %cst_59 [1] : vector<8x8xf32> to vector<8xf32>
    %147 = vector.shape_cast %146 : vector<8xf32> to vector<8x1xf32>
    %148 = vector.broadcast %147 : vector<8x1xf32> to vector<8x8xf32>
    %149 = arith.subf %145, %148 : vector<8x8xf32>
    %150 = math.exp %149 : vector<8x8xf32>
    %cst_60 = arith.constant dense<0.000000e+00> : vector<8xf32>
    %151 = vector.multi_reduction <add>, %150, %cst_60 [1] : vector<8x8xf32> to vector<8xf32>
    %152 = vector.shape_cast %151 : vector<8xf32> to vector<8x1xf32>
    %153 = vector.broadcast %152 : vector<8x1xf32> to vector<8x8xf32>
    %154 = arith.divf %150, %153 : vector<8x8xf32>
    %155 = vector.extract_strided_slice %122 {offsets = [8, 0], sizes = [8, 8], strides = [1, 1]} : vector<16x8xf32> to vector<8x8xf32>
    %cst_61 = arith.constant dense<0.000000e+00> : vector<8x8xf32>
    %156 = tpu.matmul %154, %155, %cst_61 {dimension_numbers = #tpu.dot_dimension_numbers<[1], [0], [0], [1], [0, 0, 1, 1], [], []>} : vector<8x8xf32>, vector<8x8xf32>, vector<8x8xf32> -> vector<8x8xf32>
    %cst_62 = arith.constant dense<0.000000e+00> : vector<8x32xf32>
    %157 = tpu.matmul %156, %124, %cst_62 {dimension_numbers = #tpu.dot_dimension_numbers<[1], [0], [0], [1], [0, 0, 1, 1], [], []>} : vector<8x8xf32>, vector<8x32xf32>, vector<8x32xf32> -> vector<8x32xf32>
    %158 = arith.addf %101, %157 : vector<8x32xf32>
    %c2 = arith.constant 2 : index
    %c0_63 = arith.constant 0 : index
    %c0_64 = arith.constant 0 : index
    %159 = vector.load %arg5[%c2, %c0_63, %c0_64] : memref<24x33x8xf32, #tpu.memory_space<vmem>>, vector<1x33x8xf32>
    %160 = vector.shape_cast %159 : vector<1x33x8xf32> to vector<33x8xf32>
    %161 = vector.extract_strided_slice %160 {offsets = [0, 0], sizes = [32, 8], strides = [1, 1]} : vector<33x8xf32> to vector<32x8xf32>
    %cst_65 = arith.constant dense<0.000000e+00> : vector<16x8xf32>
    %162 = tpu.matmul %34, %161, %cst_65 {dimension_numbers = #tpu.dot_dimension_numbers<[1], [0], [0], [1], [0, 0, 1, 1], [], []>} : vector<16x32xf32>, vector<32x8xf32>, vector<16x8xf32> -> vector<16x8xf32>
    %163 = vector.extract_strided_slice %160 {offsets = [32, 0], sizes = [1, 8], strides = [1, 1]} : vector<33x8xf32> to vector<1x8xf32>
    %164 = vector.broadcast %163 : vector<1x8xf32> to vector<16x8xf32>
    %165 = arith.addf %162, %164 : vector<16x8xf32>
    %c6 = arith.constant 6 : index
    %c0_66 = arith.constant 0 : index
    %c0_67 = arith.constant 0 : index
    %166 = vector.load %arg5[%c6, %c0_66, %c0_67] : memref<24x33x8xf32, #tpu.memory_space<vmem>>, vector<1x33x8xf32>
    %167 = vector.shape_cast %166 : vector<1x33x8xf32> to vector<33x8xf32>
    %168 = vector.extract_strided_slice %167 {offsets = [0, 0], sizes = [32, 8], strides = [1, 1]} : vector<33x8xf32> to vector<32x8xf32>
    %cst_68 = arith.constant dense<0.000000e+00> : vector<16x8xf32>
    %169 = tpu.matmul %34, %168, %cst_68 {dimension_numbers = #tpu.dot_dimension_numbers<[1], [0], [0], [1], [0, 0, 1, 1], [], []>} : vector<16x32xf32>, vector<32x8xf32>, vector<16x8xf32> -> vector<16x8xf32>
    %170 = vector.extract_strided_slice %167 {offsets = [32, 0], sizes = [1, 8], strides = [1, 1]} : vector<33x8xf32> to vector<1x8xf32>
    %171 = vector.broadcast %170 : vector<1x8xf32> to vector<16x8xf32>
    %172 = arith.addf %169, %171 : vector<16x8xf32>
    %c10 = arith.constant 10 : index
    %c0_69 = arith.constant 0 : index
    %c0_70 = arith.constant 0 : index
    %173 = vector.load %arg5[%c10, %c0_69, %c0_70] : memref<24x33x8xf32, #tpu.memory_space<vmem>>, vector<1x33x8xf32>
    %174 = vector.shape_cast %173 : vector<1x33x8xf32> to vector<33x8xf32>
    %175 = vector.extract_strided_slice %174 {offsets = [0, 0], sizes = [32, 8], strides = [1, 1]} : vector<33x8xf32> to vector<32x8xf32>
    %cst_71 = arith.constant dense<0.000000e+00> : vector<16x8xf32>
    %176 = tpu.matmul %34, %175, %cst_71 {dimension_numbers = #tpu.dot_dimension_numbers<[1], [0], [0], [1], [0, 0, 1, 1], [], []>} : vector<16x32xf32>, vector<32x8xf32>, vector<16x8xf32> -> vector<16x8xf32>
    %177 = vector.extract_strided_slice %174 {offsets = [32, 0], sizes = [1, 8], strides = [1, 1]} : vector<33x8xf32> to vector<1x8xf32>
    %178 = vector.broadcast %177 : vector<1x8xf32> to vector<16x8xf32>
    %179 = arith.addf %176, %178 : vector<16x8xf32>
    %c2_72 = arith.constant 2 : index
    %c0_73 = arith.constant 0 : index
    %c0_74 = arith.constant 0 : index
    %180 = vector.load %arg6[%c2_72, %c0_73, %c0_74] : memref<8x8x32xf32, #tpu.memory_space<vmem>>, vector<1x8x32xf32>
    %181 = vector.shape_cast %180 : vector<1x8x32xf32> to vector<8x32xf32>
    %182 = vector.extract_strided_slice %165 {offsets = [0, 0], sizes = [8, 8], strides = [1, 1]} : vector<16x8xf32> to vector<8x8xf32>
    %183 = vector.extract_strided_slice %172 {offsets = [0, 0], sizes = [8, 8], strides = [1, 1]} : vector<16x8xf32> to vector<8x8xf32>
    %cst_75 = arith.constant dense<0.000000e+00> : vector<8x8xf32>
    %184 = tpu.matmul %182, %183, %cst_75 {dimension_numbers = #tpu.dot_dimension_numbers<[1], [1], [0], [0], [0, 0, 1, 0], [], []>} : vector<8x8xf32>, vector<8x8xf32>, vector<8x8xf32> -> vector<8x8xf32>
    %185 = arith.addf %184, %43 : vector<8x8xf32>
    %cst_76 = arith.constant dense<0xFF800000> : vector<8xf32>
    %186 = vector.multi_reduction <maximumf>, %185, %cst_76 [1] : vector<8x8xf32> to vector<8xf32>
    %187 = vector.shape_cast %186 : vector<8xf32> to vector<8x1xf32>
    %188 = vector.broadcast %187 : vector<8x1xf32> to vector<8x8xf32>
    %189 = arith.subf %185, %188 : vector<8x8xf32>
    %190 = math.exp %189 : vector<8x8xf32>
    %cst_77 = arith.constant dense<0.000000e+00> : vector<8xf32>
    %191 = vector.multi_reduction <add>, %190, %cst_77 [1] : vector<8x8xf32> to vector<8xf32>
    %192 = vector.shape_cast %191 : vector<8xf32> to vector<8x1xf32>
    %193 = vector.broadcast %192 : vector<8x1xf32> to vector<8x8xf32>
    %194 = arith.divf %190, %193 : vector<8x8xf32>
    %195 = vector.extract_strided_slice %179 {offsets = [0, 0], sizes = [8, 8], strides = [1, 1]} : vector<16x8xf32> to vector<8x8xf32>
    %cst_78 = arith.constant dense<0.000000e+00> : vector<8x8xf32>
    %196 = tpu.matmul %194, %195, %cst_78 {dimension_numbers = #tpu.dot_dimension_numbers<[1], [0], [0], [1], [0, 0, 1, 1], [], []>} : vector<8x8xf32>, vector<8x8xf32>, vector<8x8xf32> -> vector<8x8xf32>
    %cst_79 = arith.constant dense<0.000000e+00> : vector<8x32xf32>
    %197 = tpu.matmul %196, %181, %cst_79 {dimension_numbers = #tpu.dot_dimension_numbers<[1], [0], [0], [1], [0, 0, 1, 1], [], []>} : vector<8x8xf32>, vector<8x32xf32>, vector<8x32xf32> -> vector<8x32xf32>
    %198 = arith.addf %141, %197 : vector<8x32xf32>
    %199 = vector.extract_strided_slice %165 {offsets = [8, 0], sizes = [8, 8], strides = [1, 1]} : vector<16x8xf32> to vector<8x8xf32>
    %200 = vector.extract_strided_slice %172 {offsets = [8, 0], sizes = [8, 8], strides = [1, 1]} : vector<16x8xf32> to vector<8x8xf32>
    %cst_80 = arith.constant dense<0.000000e+00> : vector<8x8xf32>
    %201 = tpu.matmul %199, %200, %cst_80 {dimension_numbers = #tpu.dot_dimension_numbers<[1], [1], [0], [0], [0, 0, 1, 0], [], []>} : vector<8x8xf32>, vector<8x8xf32>, vector<8x8xf32> -> vector<8x8xf32>
    %202 = arith.addf %201, %46 : vector<8x8xf32>
    %cst_81 = arith.constant dense<0xFF800000> : vector<8xf32>
    %203 = vector.multi_reduction <maximumf>, %202, %cst_81 [1] : vector<8x8xf32> to vector<8xf32>
    %204 = vector.shape_cast %203 : vector<8xf32> to vector<8x1xf32>
    %205 = vector.broadcast %204 : vector<8x1xf32> to vector<8x8xf32>
    %206 = arith.subf %202, %205 : vector<8x8xf32>
    %207 = math.exp %206 : vector<8x8xf32>
    %cst_82 = arith.constant dense<0.000000e+00> : vector<8xf32>
    %208 = vector.multi_reduction <add>, %207, %cst_82 [1] : vector<8x8xf32> to vector<8xf32>
    %209 = vector.shape_cast %208 : vector<8xf32> to vector<8x1xf32>
    %210 = vector.broadcast %209 : vector<8x1xf32> to vector<8x8xf32>
    %211 = arith.divf %207, %210 : vector<8x8xf32>
    %212 = vector.extract_strided_slice %179 {offsets = [8, 0], sizes = [8, 8], strides = [1, 1]} : vector<16x8xf32> to vector<8x8xf32>
    %cst_83 = arith.constant dense<0.000000e+00> : vector<8x8xf32>
    %213 = tpu.matmul %211, %212, %cst_83 {dimension_numbers = #tpu.dot_dimension_numbers<[1], [0], [0], [1], [0, 0, 1, 1], [], []>} : vector<8x8xf32>, vector<8x8xf32>, vector<8x8xf32> -> vector<8x8xf32>
    %cst_84 = arith.constant dense<0.000000e+00> : vector<8x32xf32>
    %214 = tpu.matmul %213, %181, %cst_84 {dimension_numbers = #tpu.dot_dimension_numbers<[1], [0], [0], [1], [0, 0, 1, 1], [], []>} : vector<8x8xf32>, vector<8x32xf32>, vector<8x32xf32> -> vector<8x32xf32>
    %215 = arith.addf %158, %214 : vector<8x32xf32>
    %c3 = arith.constant 3 : index
    %c0_85 = arith.constant 0 : index
    %c0_86 = arith.constant 0 : index
    %216 = vector.load %arg5[%c3, %c0_85, %c0_86] : memref<24x33x8xf32, #tpu.memory_space<vmem>>, vector<1x33x8xf32>
    %217 = vector.shape_cast %216 : vector<1x33x8xf32> to vector<33x8xf32>
    %218 = vector.extract_strided_slice %217 {offsets = [0, 0], sizes = [32, 8], strides = [1, 1]} : vector<33x8xf32> to vector<32x8xf32>
    %cst_87 = arith.constant dense<0.000000e+00> : vector<16x8xf32>
    %219 = tpu.matmul %34, %218, %cst_87 {dimension_numbers = #tpu.dot_dimension_numbers<[1], [0], [0], [1], [0, 0, 1, 1], [], []>} : vector<16x32xf32>, vector<32x8xf32>, vector<16x8xf32> -> vector<16x8xf32>
    %220 = vector.extract_strided_slice %217 {offsets = [32, 0], sizes = [1, 8], strides = [1, 1]} : vector<33x8xf32> to vector<1x8xf32>
    %221 = vector.broadcast %220 : vector<1x8xf32> to vector<16x8xf32>
    %222 = arith.addf %219, %221 : vector<16x8xf32>
    %c7 = arith.constant 7 : index
    %c0_88 = arith.constant 0 : index
    %c0_89 = arith.constant 0 : index
    %223 = vector.load %arg5[%c7, %c0_88, %c0_89] : memref<24x33x8xf32, #tpu.memory_space<vmem>>, vector<1x33x8xf32>
    %224 = vector.shape_cast %223 : vector<1x33x8xf32> to vector<33x8xf32>
    %225 = vector.extract_strided_slice %224 {offsets = [0, 0], sizes = [32, 8], strides = [1, 1]} : vector<33x8xf32> to vector<32x8xf32>
    %cst_90 = arith.constant dense<0.000000e+00> : vector<16x8xf32>
    %226 = tpu.matmul %34, %225, %cst_90 {dimension_numbers = #tpu.dot_dimension_numbers<[1], [0], [0], [1], [0, 0, 1, 1], [], []>} : vector<16x32xf32>, vector<32x8xf32>, vector<16x8xf32> -> vector<16x8xf32>
    %227 = vector.extract_strided_slice %224 {offsets = [32, 0], sizes = [1, 8], strides = [1, 1]} : vector<33x8xf32> to vector<1x8xf32>
    %228 = vector.broadcast %227 : vector<1x8xf32> to vector<16x8xf32>
    %229 = arith.addf %226, %228 : vector<16x8xf32>
    %c11 = arith.constant 11 : index
    %c0_91 = arith.constant 0 : index
    %c0_92 = arith.constant 0 : index
    %230 = vector.load %arg5[%c11, %c0_91, %c0_92] : memref<24x33x8xf32, #tpu.memory_space<vmem>>, vector<1x33x8xf32>
    %231 = vector.shape_cast %230 : vector<1x33x8xf32> to vector<33x8xf32>
    %232 = vector.extract_strided_slice %231 {offsets = [0, 0], sizes = [32, 8], strides = [1, 1]} : vector<33x8xf32> to vector<32x8xf32>
    %cst_93 = arith.constant dense<0.000000e+00> : vector<16x8xf32>
    %233 = tpu.matmul %34, %232, %cst_93 {dimension_numbers = #tpu.dot_dimension_numbers<[1], [0], [0], [1], [0, 0, 1, 1], [], []>} : vector<16x32xf32>, vector<32x8xf32>, vector<16x8xf32> -> vector<16x8xf32>
    %234 = vector.extract_strided_slice %231 {offsets = [32, 0], sizes = [1, 8], strides = [1, 1]} : vector<33x8xf32> to vector<1x8xf32>
    %235 = vector.broadcast %234 : vector<1x8xf32> to vector<16x8xf32>
    %236 = arith.addf %233, %235 : vector<16x8xf32>
    %c3_94 = arith.constant 3 : index
    %c0_95 = arith.constant 0 : index
    %c0_96 = arith.constant 0 : index
    %237 = vector.load %arg6[%c3_94, %c0_95, %c0_96] : memref<8x8x32xf32, #tpu.memory_space<vmem>>, vector<1x8x32xf32>
    %238 = vector.shape_cast %237 : vector<1x8x32xf32> to vector<8x32xf32>
    %239 = vector.extract_strided_slice %222 {offsets = [0, 0], sizes = [8, 8], strides = [1, 1]} : vector<16x8xf32> to vector<8x8xf32>
    %240 = vector.extract_strided_slice %229 {offsets = [0, 0], sizes = [8, 8], strides = [1, 1]} : vector<16x8xf32> to vector<8x8xf32>
    %cst_97 = arith.constant dense<0.000000e+00> : vector<8x8xf32>
    %241 = tpu.matmul %239, %240, %cst_97 {dimension_numbers = #tpu.dot_dimension_numbers<[1], [1], [0], [0], [0, 0, 1, 0], [], []>} : vector<8x8xf32>, vector<8x8xf32>, vector<8x8xf32> -> vector<8x8xf32>
    %242 = arith.addf %241, %43 : vector<8x8xf32>
    %cst_98 = arith.constant dense<0xFF800000> : vector<8xf32>
    %243 = vector.multi_reduction <maximumf>, %242, %cst_98 [1] : vector<8x8xf32> to vector<8xf32>
    %244 = vector.shape_cast %243 : vector<8xf32> to vector<8x1xf32>
    %245 = vector.broadcast %244 : vector<8x1xf32> to vector<8x8xf32>
    %246 = arith.subf %242, %245 : vector<8x8xf32>
    %247 = math.exp %246 : vector<8x8xf32>
    %cst_99 = arith.constant dense<0.000000e+00> : vector<8xf32>
    %248 = vector.multi_reduction <add>, %247, %cst_99 [1] : vector<8x8xf32> to vector<8xf32>
    %249 = vector.shape_cast %248 : vector<8xf32> to vector<8x1xf32>
    %250 = vector.broadcast %249 : vector<8x1xf32> to vector<8x8xf32>
    %251 = arith.divf %247, %250 : vector<8x8xf32>
    %252 = vector.extract_strided_slice %236 {offsets = [0, 0], sizes = [8, 8], strides = [1, 1]} : vector<16x8xf32> to vector<8x8xf32>
    %cst_100 = arith.constant dense<0.000000e+00> : vector<8x8xf32>
    %253 = tpu.matmul %251, %252, %cst_100 {dimension_numbers = #tpu.dot_dimension_numbers<[1], [0], [0], [1], [0, 0, 1, 1], [], []>} : vector<8x8xf32>, vector<8x8xf32>, vector<8x8xf32> -> vector<8x8xf32>
    %cst_101 = arith.constant dense<0.000000e+00> : vector<8x32xf32>
    %254 = tpu.matmul %253, %238, %cst_101 {dimension_numbers = #tpu.dot_dimension_numbers<[1], [0], [0], [1], [0, 0, 1, 1], [], []>} : vector<8x8xf32>, vector<8x32xf32>, vector<8x32xf32> -> vector<8x32xf32>
    %255 = arith.addf %198, %254 : vector<8x32xf32>
    %256 = vector.extract_strided_slice %222 {offsets = [8, 0], sizes = [8, 8], strides = [1, 1]} : vector<16x8xf32> to vector<8x8xf32>
    %257 = vector.extract_strided_slice %229 {offsets = [8, 0], sizes = [8, 8], strides = [1, 1]} : vector<16x8xf32> to vector<8x8xf32>
    %cst_102 = arith.constant dense<0.000000e+00> : vector<8x8xf32>
    %258 = tpu.matmul %256, %257, %cst_102 {dimension_numbers = #tpu.dot_dimension_numbers<[1], [1], [0], [0], [0, 0, 1, 0], [], []>} : vector<8x8xf32>, vector<8x8xf32>, vector<8x8xf32> -> vector<8x8xf32>
    %259 = arith.addf %258, %46 : vector<8x8xf32>
    %cst_103 = arith.constant dense<0xFF800000> : vector<8xf32>
    %260 = vector.multi_reduction <maximumf>, %259, %cst_103 [1] : vector<8x8xf32> to vector<8xf32>
    %261 = vector.shape_cast %260 : vector<8xf32> to vector<8x1xf32>
    %262 = vector.broadcast %261 : vector<8x1xf32> to vector<8x8xf32>
    %263 = arith.subf %259, %262 : vector<8x8xf32>
    %264 = math.exp %263 : vector<8x8xf32>
    %cst_104 = arith.constant dense<0.000000e+00> : vector<8xf32>
    %265 = vector.multi_reduction <add>, %264, %cst_104 [1] : vector<8x8xf32> to vector<8xf32>
    %266 = vector.shape_cast %265 : vector<8xf32> to vector<8x1xf32>
    %267 = vector.broadcast %266 : vector<8x1xf32> to vector<8x8xf32>
    %268 = arith.divf %264, %267 : vector<8x8xf32>
    %269 = vector.extract_strided_slice %236 {offsets = [8, 0], sizes = [8, 8], strides = [1, 1]} : vector<16x8xf32> to vector<8x8xf32>
    %cst_105 = arith.constant dense<0.000000e+00> : vector<8x8xf32>
    %270 = tpu.matmul %268, %269, %cst_105 {dimension_numbers = #tpu.dot_dimension_numbers<[1], [0], [0], [1], [0, 0, 1, 1], [], []>} : vector<8x8xf32>, vector<8x8xf32>, vector<8x8xf32> -> vector<8x8xf32>
    %cst_106 = arith.constant dense<0.000000e+00> : vector<8x32xf32>
    %271 = tpu.matmul %270, %238, %cst_106 {dimension_numbers = #tpu.dot_dimension_numbers<[1], [0], [0], [1], [0, 0, 1, 1], [], []>} : vector<8x8xf32>, vector<8x32xf32>, vector<8x32xf32> -> vector<8x32xf32>
    %272 = arith.addf %215, %271 : vector<8x32xf32>
    %273 = tpu.concatenate %255, %272 in 0 : vector<8x32xf32>, vector<8x32xf32> -> vector<16x32xf32>
    %c0_107 = arith.constant 0 : index
    %c0_108 = arith.constant 0 : index
    %274 = vector.load %arg7[%c0_107, %c0_108] : memref<10x32xf32, #tpu.memory_space<vmem>>, vector<1x32xf32>
    %275 = vector.broadcast %274 : vector<1x32xf32> to vector<16x32xf32>
    %276 = arith.addf %273, %275 : vector<16x32xf32>
    %277 = arith.addf %276, %34 : vector<16x32xf32>
    %c1_109 = arith.constant 1 : index
    %c0_110 = arith.constant 0 : index
    %278 = vector.load %arg7[%c1_109, %c0_110] : memref<10x32xf32, #tpu.memory_space<vmem>>, vector<1x32xf32>
    %c2_111 = arith.constant 2 : index
    %c0_112 = arith.constant 0 : index
    %279 = vector.load %arg7[%c2_111, %c0_112] : memref<10x32xf32, #tpu.memory_space<vmem>>, vector<1x32xf32>
    %cst_113 = arith.constant dense<0.000000e+00> : vector<16xf32>
    %280 = vector.multi_reduction <add>, %277, %cst_113 [1] : vector<16x32xf32> to vector<16xf32>
    %281 = vector.shape_cast %280 : vector<16xf32> to vector<16x1xf32>
    %cst_114 = arith.constant 3.200000e+01 : f32
    %282 = vector.broadcast %cst_114 : f32 to vector<16x1xf32>
    %283 = arith.divf %281, %282 : vector<16x1xf32>
    %284 = vector.broadcast %283 : vector<16x1xf32> to vector<16x32xf32>
    %285 = arith.subf %277, %284 : vector<16x32xf32>
    %286 = arith.mulf %285, %285 : vector<16x32xf32>
    %cst_115 = arith.constant dense<0.000000e+00> : vector<16xf32>
    %287 = vector.multi_reduction <add>, %286, %cst_115 [1] : vector<16x32xf32> to vector<16xf32>
    %288 = vector.shape_cast %287 : vector<16xf32> to vector<16x1xf32>
    %cst_116 = arith.constant 3.200000e+01 : f32
    %289 = vector.broadcast %cst_116 : f32 to vector<16x1xf32>
    %290 = arith.divf %288, %289 : vector<16x1xf32>
    %291 = vector.broadcast %283 : vector<16x1xf32> to vector<16x32xf32>
    %292 = arith.subf %277, %291 : vector<16x32xf32>
    %cst_117 = arith.constant 9.99999996E-13 : f32
    %293 = vector.broadcast %cst_117 : f32 to vector<16x1xf32>
    %294 = arith.addf %290, %293 : vector<16x1xf32>
    %295 = math.rsqrt %294 : vector<16x1xf32>
    %296 = vector.broadcast %295 : vector<16x1xf32> to vector<16x32xf32>
    %297 = arith.mulf %292, %296 : vector<16x32xf32>
    %298 = vector.broadcast %278 : vector<1x32xf32> to vector<16x32xf32>
    %299 = arith.mulf %297, %298 : vector<16x32xf32>
    %300 = vector.broadcast %279 : vector<1x32xf32> to vector<16x32xf32>
    %301 = arith.addf %299, %300 : vector<16x32xf32>
    %c0_118 = arith.constant 0 : index
    %c0_119 = arith.constant 0 : index
    %c0_120 = arith.constant 0 : index
    %302 = vector.load %arg8[%c0_118, %c0_119, %c0_120] : memref<2x33x64xf32, #tpu.memory_space<vmem>>, vector<1x33x64xf32>
    %303 = vector.shape_cast %302 : vector<1x33x64xf32> to vector<33x64xf32>
    %304 = vector.extract_strided_slice %303 {offsets = [0, 0], sizes = [32, 64], strides = [1, 1]} : vector<33x64xf32> to vector<32x64xf32>
    %cst_121 = arith.constant dense<0.000000e+00> : vector<16x64xf32>
    %305 = tpu.matmul %301, %304, %cst_121 {dimension_numbers = #tpu.dot_dimension_numbers<[1], [0], [0], [1], [0, 0, 1, 1], [], []>} : vector<16x32xf32>, vector<32x64xf32>, vector<16x64xf32> -> vector<16x64xf32>
    %306 = vector.extract_strided_slice %303 {offsets = [32, 0], sizes = [1, 64], strides = [1, 1]} : vector<33x64xf32> to vector<1x64xf32>
    %307 = vector.broadcast %306 : vector<1x64xf32> to vector<16x64xf32>
    %308 = arith.addf %305, %307 : vector<16x64xf32>
    %cst_122 = arith.constant 5.000000e-01 : f32
    %309 = vector.broadcast %cst_122 : f32 to vector<16x64xf32>
    %310 = arith.mulf %309, %308 : vector<16x64xf32>
    %cst_123 = arith.constant 4.471500e-02 : f32
    %311 = vector.broadcast %cst_123 : f32 to vector<16x64xf32>
    %312 = arith.mulf %311, %308 : vector<16x64xf32>
    %313 = arith.mulf %312, %308 : vector<16x64xf32>
    %314 = arith.mulf %313, %308 : vector<16x64xf32>
    %315 = arith.addf %308, %314 : vector<16x64xf32>
    %cst_124 = arith.constant 0.797884583 : f32
    %316 = vector.broadcast %cst_124 : f32 to vector<16x64xf32>
    %317 = arith.mulf %316, %315 : vector<16x64xf32>
    %318 = math.tanh %317 : vector<16x64xf32>
    %cst_125 = arith.constant 1.000000e+00 : f32
    %319 = vector.broadcast %cst_125 : f32 to vector<16x64xf32>
    %320 = arith.addf %319, %318 : vector<16x64xf32>
    %321 = arith.mulf %310, %320 : vector<16x64xf32>
    %c0_126 = arith.constant 0 : index
    %c0_127 = arith.constant 0 : index
    %c0_128 = arith.constant 0 : index
    %322 = vector.load %arg9[%c0_126, %c0_127, %c0_128] : memref<2x65x32xf32, #tpu.memory_space<vmem>>, vector<1x65x32xf32>
    %323 = vector.shape_cast %322 : vector<1x65x32xf32> to vector<65x32xf32>
    %324 = vector.extract_strided_slice %323 {offsets = [0, 0], sizes = [64, 32], strides = [1, 1]} : vector<65x32xf32> to vector<64x32xf32>
    %cst_129 = arith.constant dense<0.000000e+00> : vector<16x32xf32>
    %325 = tpu.matmul %321, %324, %cst_129 {dimension_numbers = #tpu.dot_dimension_numbers<[1], [0], [0], [1], [0, 0, 1, 1], [], []>} : vector<16x64xf32>, vector<64x32xf32>, vector<16x32xf32> -> vector<16x32xf32>
    %326 = vector.extract_strided_slice %323 {offsets = [64, 0], sizes = [1, 32], strides = [1, 1]} : vector<65x32xf32> to vector<1x32xf32>
    %327 = vector.broadcast %326 : vector<1x32xf32> to vector<16x32xf32>
    %328 = arith.addf %325, %327 : vector<16x32xf32>
    %329 = arith.addf %328, %301 : vector<16x32xf32>
    %c3_130 = arith.constant 3 : index
    %c0_131 = arith.constant 0 : index
    %330 = vector.load %arg7[%c3_130, %c0_131] : memref<10x32xf32, #tpu.memory_space<vmem>>, vector<1x32xf32>
    %c4_132 = arith.constant 4 : index
    %c0_133 = arith.constant 0 : index
    %331 = vector.load %arg7[%c4_132, %c0_133] : memref<10x32xf32, #tpu.memory_space<vmem>>, vector<1x32xf32>
    %cst_134 = arith.constant dense<0.000000e+00> : vector<16xf32>
    %332 = vector.multi_reduction <add>, %329, %cst_134 [1] : vector<16x32xf32> to vector<16xf32>
    %333 = vector.shape_cast %332 : vector<16xf32> to vector<16x1xf32>
    %cst_135 = arith.constant 3.200000e+01 : f32
    %334 = vector.broadcast %cst_135 : f32 to vector<16x1xf32>
    %335 = arith.divf %333, %334 : vector<16x1xf32>
    %336 = vector.broadcast %335 : vector<16x1xf32> to vector<16x32xf32>
    %337 = arith.subf %329, %336 : vector<16x32xf32>
    %338 = arith.mulf %337, %337 : vector<16x32xf32>
    %cst_136 = arith.constant dense<0.000000e+00> : vector<16xf32>
    %339 = vector.multi_reduction <add>, %338, %cst_136 [1] : vector<16x32xf32> to vector<16xf32>
    %340 = vector.shape_cast %339 : vector<16xf32> to vector<16x1xf32>
    %cst_137 = arith.constant 3.200000e+01 : f32
    %341 = vector.broadcast %cst_137 : f32 to vector<16x1xf32>
    %342 = arith.divf %340, %341 : vector<16x1xf32>
    %343 = vector.broadcast %335 : vector<16x1xf32> to vector<16x32xf32>
    %344 = arith.subf %329, %343 : vector<16x32xf32>
    %cst_138 = arith.constant 9.99999996E-13 : f32
    %345 = vector.broadcast %cst_138 : f32 to vector<16x1xf32>
    %346 = arith.addf %342, %345 : vector<16x1xf32>
    %347 = math.rsqrt %346 : vector<16x1xf32>
    %348 = vector.broadcast %347 : vector<16x1xf32> to vector<16x32xf32>
    %349 = arith.mulf %344, %348 : vector<16x32xf32>
    %350 = vector.broadcast %330 : vector<1x32xf32> to vector<16x32xf32>
    %351 = arith.mulf %349, %350 : vector<16x32xf32>
    %352 = vector.broadcast %331 : vector<1x32xf32> to vector<16x32xf32>
    %353 = arith.addf %351, %352 : vector<16x32xf32>
    %c12 = arith.constant 12 : index
    %c0_139 = arith.constant 0 : index
    %c0_140 = arith.constant 0 : index
    %354 = vector.load %arg5[%c12, %c0_139, %c0_140] : memref<24x33x8xf32, #tpu.memory_space<vmem>>, vector<1x33x8xf32>
    %355 = vector.shape_cast %354 : vector<1x33x8xf32> to vector<33x8xf32>
    %356 = vector.extract_strided_slice %355 {offsets = [0, 0], sizes = [32, 8], strides = [1, 1]} : vector<33x8xf32> to vector<32x8xf32>
    %cst_141 = arith.constant dense<0.000000e+00> : vector<16x8xf32>
    %357 = tpu.matmul %353, %356, %cst_141 {dimension_numbers = #tpu.dot_dimension_numbers<[1], [0], [0], [1], [0, 0, 1, 1], [], []>} : vector<16x32xf32>, vector<32x8xf32>, vector<16x8xf32> -> vector<16x8xf32>
    %358 = vector.extract_strided_slice %355 {offsets = [32, 0], sizes = [1, 8], strides = [1, 1]} : vector<33x8xf32> to vector<1x8xf32>
    %359 = vector.broadcast %358 : vector<1x8xf32> to vector<16x8xf32>
    %360 = arith.addf %357, %359 : vector<16x8xf32>
    %c16 = arith.constant 16 : index
    %c0_142 = arith.constant 0 : index
    %c0_143 = arith.constant 0 : index
    %361 = vector.load %arg5[%c16, %c0_142, %c0_143] : memref<24x33x8xf32, #tpu.memory_space<vmem>>, vector<1x33x8xf32>
    %362 = vector.shape_cast %361 : vector<1x33x8xf32> to vector<33x8xf32>
    %363 = vector.extract_strided_slice %362 {offsets = [0, 0], sizes = [32, 8], strides = [1, 1]} : vector<33x8xf32> to vector<32x8xf32>
    %cst_144 = arith.constant dense<0.000000e+00> : vector<16x8xf32>
    %364 = tpu.matmul %353, %363, %cst_144 {dimension_numbers = #tpu.dot_dimension_numbers<[1], [0], [0], [1], [0, 0, 1, 1], [], []>} : vector<16x32xf32>, vector<32x8xf32>, vector<16x8xf32> -> vector<16x8xf32>
    %365 = vector.extract_strided_slice %362 {offsets = [32, 0], sizes = [1, 8], strides = [1, 1]} : vector<33x8xf32> to vector<1x8xf32>
    %366 = vector.broadcast %365 : vector<1x8xf32> to vector<16x8xf32>
    %367 = arith.addf %364, %366 : vector<16x8xf32>
    %c20 = arith.constant 20 : index
    %c0_145 = arith.constant 0 : index
    %c0_146 = arith.constant 0 : index
    %368 = vector.load %arg5[%c20, %c0_145, %c0_146] : memref<24x33x8xf32, #tpu.memory_space<vmem>>, vector<1x33x8xf32>
    %369 = vector.shape_cast %368 : vector<1x33x8xf32> to vector<33x8xf32>
    %370 = vector.extract_strided_slice %369 {offsets = [0, 0], sizes = [32, 8], strides = [1, 1]} : vector<33x8xf32> to vector<32x8xf32>
    %cst_147 = arith.constant dense<0.000000e+00> : vector<16x8xf32>
    %371 = tpu.matmul %353, %370, %cst_147 {dimension_numbers = #tpu.dot_dimension_numbers<[1], [0], [0], [1], [0, 0, 1, 1], [], []>} : vector<16x32xf32>, vector<32x8xf32>, vector<16x8xf32> -> vector<16x8xf32>
    %372 = vector.extract_strided_slice %369 {offsets = [32, 0], sizes = [1, 8], strides = [1, 1]} : vector<33x8xf32> to vector<1x8xf32>
    %373 = vector.broadcast %372 : vector<1x8xf32> to vector<16x8xf32>
    %374 = arith.addf %371, %373 : vector<16x8xf32>
    %c4_148 = arith.constant 4 : index
    %c0_149 = arith.constant 0 : index
    %c0_150 = arith.constant 0 : index
    %375 = vector.load %arg6[%c4_148, %c0_149, %c0_150] : memref<8x8x32xf32, #tpu.memory_space<vmem>>, vector<1x8x32xf32>
    %376 = vector.shape_cast %375 : vector<1x8x32xf32> to vector<8x32xf32>
    %377 = vector.extract_strided_slice %360 {offsets = [0, 0], sizes = [8, 8], strides = [1, 1]} : vector<16x8xf32> to vector<8x8xf32>
    %378 = vector.extract_strided_slice %367 {offsets = [0, 0], sizes = [8, 8], strides = [1, 1]} : vector<16x8xf32> to vector<8x8xf32>
    %cst_151 = arith.constant dense<0.000000e+00> : vector<8x8xf32>
    %379 = tpu.matmul %377, %378, %cst_151 {dimension_numbers = #tpu.dot_dimension_numbers<[1], [1], [0], [0], [0, 0, 1, 0], [], []>} : vector<8x8xf32>, vector<8x8xf32>, vector<8x8xf32> -> vector<8x8xf32>
    %380 = arith.addf %379, %43 : vector<8x8xf32>
    %cst_152 = arith.constant dense<0xFF800000> : vector<8xf32>
    %381 = vector.multi_reduction <maximumf>, %380, %cst_152 [1] : vector<8x8xf32> to vector<8xf32>
    %382 = vector.shape_cast %381 : vector<8xf32> to vector<8x1xf32>
    %383 = vector.broadcast %382 : vector<8x1xf32> to vector<8x8xf32>
    %384 = arith.subf %380, %383 : vector<8x8xf32>
    %385 = math.exp %384 : vector<8x8xf32>
    %cst_153 = arith.constant dense<0.000000e+00> : vector<8xf32>
    %386 = vector.multi_reduction <add>, %385, %cst_153 [1] : vector<8x8xf32> to vector<8xf32>
    %387 = vector.shape_cast %386 : vector<8xf32> to vector<8x1xf32>
    %388 = vector.broadcast %387 : vector<8x1xf32> to vector<8x8xf32>
    %389 = arith.divf %385, %388 : vector<8x8xf32>
    %390 = vector.extract_strided_slice %374 {offsets = [0, 0], sizes = [8, 8], strides = [1, 1]} : vector<16x8xf32> to vector<8x8xf32>
    %cst_154 = arith.constant dense<0.000000e+00> : vector<8x8xf32>
    %391 = tpu.matmul %389, %390, %cst_154 {dimension_numbers = #tpu.dot_dimension_numbers<[1], [0], [0], [1], [0, 0, 1, 1], [], []>} : vector<8x8xf32>, vector<8x8xf32>, vector<8x8xf32> -> vector<8x8xf32>
    %cst_155 = arith.constant dense<0.000000e+00> : vector<8x32xf32>
    %392 = tpu.matmul %391, %376, %cst_155 {dimension_numbers = #tpu.dot_dimension_numbers<[1], [0], [0], [1], [0, 0, 1, 1], [], []>} : vector<8x8xf32>, vector<8x32xf32>, vector<8x32xf32> -> vector<8x32xf32>
    %393 = vector.extract_strided_slice %360 {offsets = [8, 0], sizes = [8, 8], strides = [1, 1]} : vector<16x8xf32> to vector<8x8xf32>
    %394 = vector.extract_strided_slice %367 {offsets = [8, 0], sizes = [8, 8], strides = [1, 1]} : vector<16x8xf32> to vector<8x8xf32>
    %cst_156 = arith.constant dense<0.000000e+00> : vector<8x8xf32>
    %395 = tpu.matmul %393, %394, %cst_156 {dimension_numbers = #tpu.dot_dimension_numbers<[1], [1], [0], [0], [0, 0, 1, 0], [], []>} : vector<8x8xf32>, vector<8x8xf32>, vector<8x8xf32> -> vector<8x8xf32>
    %396 = arith.addf %395, %46 : vector<8x8xf32>
    %cst_157 = arith.constant dense<0xFF800000> : vector<8xf32>
    %397 = vector.multi_reduction <maximumf>, %396, %cst_157 [1] : vector<8x8xf32> to vector<8xf32>
    %398 = vector.shape_cast %397 : vector<8xf32> to vector<8x1xf32>
    %399 = vector.broadcast %398 : vector<8x1xf32> to vector<8x8xf32>
    %400 = arith.subf %396, %399 : vector<8x8xf32>
    %401 = math.exp %400 : vector<8x8xf32>
    %cst_158 = arith.constant dense<0.000000e+00> : vector<8xf32>
    %402 = vector.multi_reduction <add>, %401, %cst_158 [1] : vector<8x8xf32> to vector<8xf32>
    %403 = vector.shape_cast %402 : vector<8xf32> to vector<8x1xf32>
    %404 = vector.broadcast %403 : vector<8x1xf32> to vector<8x8xf32>
    %405 = arith.divf %401, %404 : vector<8x8xf32>
    %406 = vector.extract_strided_slice %374 {offsets = [8, 0], sizes = [8, 8], strides = [1, 1]} : vector<16x8xf32> to vector<8x8xf32>
    %cst_159 = arith.constant dense<0.000000e+00> : vector<8x8xf32>
    %407 = tpu.matmul %405, %406, %cst_159 {dimension_numbers = #tpu.dot_dimension_numbers<[1], [0], [0], [1], [0, 0, 1, 1], [], []>} : vector<8x8xf32>, vector<8x8xf32>, vector<8x8xf32> -> vector<8x8xf32>
    %cst_160 = arith.constant dense<0.000000e+00> : vector<8x32xf32>
    %408 = tpu.matmul %407, %376, %cst_160 {dimension_numbers = #tpu.dot_dimension_numbers<[1], [0], [0], [1], [0, 0, 1, 1], [], []>} : vector<8x8xf32>, vector<8x32xf32>, vector<8x32xf32> -> vector<8x32xf32>
    %c13 = arith.constant 13 : index
    %c0_161 = arith.constant 0 : index
    %c0_162 = arith.constant 0 : index
    %409 = vector.load %arg5[%c13, %c0_161, %c0_162] : memref<24x33x8xf32, #tpu.memory_space<vmem>>, vector<1x33x8xf32>
    %410 = vector.shape_cast %409 : vector<1x33x8xf32> to vector<33x8xf32>
    %411 = vector.extract_strided_slice %410 {offsets = [0, 0], sizes = [32, 8], strides = [1, 1]} : vector<33x8xf32> to vector<32x8xf32>
    %cst_163 = arith.constant dense<0.000000e+00> : vector<16x8xf32>
    %412 = tpu.matmul %353, %411, %cst_163 {dimension_numbers = #tpu.dot_dimension_numbers<[1], [0], [0], [1], [0, 0, 1, 1], [], []>} : vector<16x32xf32>, vector<32x8xf32>, vector<16x8xf32> -> vector<16x8xf32>
    %413 = vector.extract_strided_slice %410 {offsets = [32, 0], sizes = [1, 8], strides = [1, 1]} : vector<33x8xf32> to vector<1x8xf32>
    %414 = vector.broadcast %413 : vector<1x8xf32> to vector<16x8xf32>
    %415 = arith.addf %412, %414 : vector<16x8xf32>
    %c17 = arith.constant 17 : index
    %c0_164 = arith.constant 0 : index
    %c0_165 = arith.constant 0 : index
    %416 = vector.load %arg5[%c17, %c0_164, %c0_165] : memref<24x33x8xf32, #tpu.memory_space<vmem>>, vector<1x33x8xf32>
    %417 = vector.shape_cast %416 : vector<1x33x8xf32> to vector<33x8xf32>
    %418 = vector.extract_strided_slice %417 {offsets = [0, 0], sizes = [32, 8], strides = [1, 1]} : vector<33x8xf32> to vector<32x8xf32>
    %cst_166 = arith.constant dense<0.000000e+00> : vector<16x8xf32>
    %419 = tpu.matmul %353, %418, %cst_166 {dimension_numbers = #tpu.dot_dimension_numbers<[1], [0], [0], [1], [0, 0, 1, 1], [], []>} : vector<16x32xf32>, vector<32x8xf32>, vector<16x8xf32> -> vector<16x8xf32>
    %420 = vector.extract_strided_slice %417 {offsets = [32, 0], sizes = [1, 8], strides = [1, 1]} : vector<33x8xf32> to vector<1x8xf32>
    %421 = vector.broadcast %420 : vector<1x8xf32> to vector<16x8xf32>
    %422 = arith.addf %419, %421 : vector<16x8xf32>
    %c21 = arith.constant 21 : index
    %c0_167 = arith.constant 0 : index
    %c0_168 = arith.constant 0 : index
    %423 = vector.load %arg5[%c21, %c0_167, %c0_168] : memref<24x33x8xf32, #tpu.memory_space<vmem>>, vector<1x33x8xf32>
    %424 = vector.shape_cast %423 : vector<1x33x8xf32> to vector<33x8xf32>
    %425 = vector.extract_strided_slice %424 {offsets = [0, 0], sizes = [32, 8], strides = [1, 1]} : vector<33x8xf32> to vector<32x8xf32>
    %cst_169 = arith.constant dense<0.000000e+00> : vector<16x8xf32>
    %426 = tpu.matmul %353, %425, %cst_169 {dimension_numbers = #tpu.dot_dimension_numbers<[1], [0], [0], [1], [0, 0, 1, 1], [], []>} : vector<16x32xf32>, vector<32x8xf32>, vector<16x8xf32> -> vector<16x8xf32>
    %427 = vector.extract_strided_slice %424 {offsets = [32, 0], sizes = [1, 8], strides = [1, 1]} : vector<33x8xf32> to vector<1x8xf32>
    %428 = vector.broadcast %427 : vector<1x8xf32> to vector<16x8xf32>
    %429 = arith.addf %426, %428 : vector<16x8xf32>
    %c5_170 = arith.constant 5 : index
    %c0_171 = arith.constant 0 : index
    %c0_172 = arith.constant 0 : index
    %430 = vector.load %arg6[%c5_170, %c0_171, %c0_172] : memref<8x8x32xf32, #tpu.memory_space<vmem>>, vector<1x8x32xf32>
    %431 = vector.shape_cast %430 : vector<1x8x32xf32> to vector<8x32xf32>
    %432 = vector.extract_strided_slice %415 {offsets = [0, 0], sizes = [8, 8], strides = [1, 1]} : vector<16x8xf32> to vector<8x8xf32>
    %433 = vector.extract_strided_slice %422 {offsets = [0, 0], sizes = [8, 8], strides = [1, 1]} : vector<16x8xf32> to vector<8x8xf32>
    %cst_173 = arith.constant dense<0.000000e+00> : vector<8x8xf32>
    %434 = tpu.matmul %432, %433, %cst_173 {dimension_numbers = #tpu.dot_dimension_numbers<[1], [1], [0], [0], [0, 0, 1, 0], [], []>} : vector<8x8xf32>, vector<8x8xf32>, vector<8x8xf32> -> vector<8x8xf32>
    %435 = arith.addf %434, %43 : vector<8x8xf32>
    %cst_174 = arith.constant dense<0xFF800000> : vector<8xf32>
    %436 = vector.multi_reduction <maximumf>, %435, %cst_174 [1] : vector<8x8xf32> to vector<8xf32>
    %437 = vector.shape_cast %436 : vector<8xf32> to vector<8x1xf32>
    %438 = vector.broadcast %437 : vector<8x1xf32> to vector<8x8xf32>
    %439 = arith.subf %435, %438 : vector<8x8xf32>
    %440 = math.exp %439 : vector<8x8xf32>
    %cst_175 = arith.constant dense<0.000000e+00> : vector<8xf32>
    %441 = vector.multi_reduction <add>, %440, %cst_175 [1] : vector<8x8xf32> to vector<8xf32>
    %442 = vector.shape_cast %441 : vector<8xf32> to vector<8x1xf32>
    %443 = vector.broadcast %442 : vector<8x1xf32> to vector<8x8xf32>
    %444 = arith.divf %440, %443 : vector<8x8xf32>
    %445 = vector.extract_strided_slice %429 {offsets = [0, 0], sizes = [8, 8], strides = [1, 1]} : vector<16x8xf32> to vector<8x8xf32>
    %cst_176 = arith.constant dense<0.000000e+00> : vector<8x8xf32>
    %446 = tpu.matmul %444, %445, %cst_176 {dimension_numbers = #tpu.dot_dimension_numbers<[1], [0], [0], [1], [0, 0, 1, 1], [], []>} : vector<8x8xf32>, vector<8x8xf32>, vector<8x8xf32> -> vector<8x8xf32>
    %cst_177 = arith.constant dense<0.000000e+00> : vector<8x32xf32>
    %447 = tpu.matmul %446, %431, %cst_177 {dimension_numbers = #tpu.dot_dimension_numbers<[1], [0], [0], [1], [0, 0, 1, 1], [], []>} : vector<8x8xf32>, vector<8x32xf32>, vector<8x32xf32> -> vector<8x32xf32>
    %448 = arith.addf %392, %447 : vector<8x32xf32>
    %449 = vector.extract_strided_slice %415 {offsets = [8, 0], sizes = [8, 8], strides = [1, 1]} : vector<16x8xf32> to vector<8x8xf32>
    %450 = vector.extract_strided_slice %422 {offsets = [8, 0], sizes = [8, 8], strides = [1, 1]} : vector<16x8xf32> to vector<8x8xf32>
    %cst_178 = arith.constant dense<0.000000e+00> : vector<8x8xf32>
    %451 = tpu.matmul %449, %450, %cst_178 {dimension_numbers = #tpu.dot_dimension_numbers<[1], [1], [0], [0], [0, 0, 1, 0], [], []>} : vector<8x8xf32>, vector<8x8xf32>, vector<8x8xf32> -> vector<8x8xf32>
    %452 = arith.addf %451, %46 : vector<8x8xf32>
    %cst_179 = arith.constant dense<0xFF800000> : vector<8xf32>
    %453 = vector.multi_reduction <maximumf>, %452, %cst_179 [1] : vector<8x8xf32> to vector<8xf32>
    %454 = vector.shape_cast %453 : vector<8xf32> to vector<8x1xf32>
    %455 = vector.broadcast %454 : vector<8x1xf32> to vector<8x8xf32>
    %456 = arith.subf %452, %455 : vector<8x8xf32>
    %457 = math.exp %456 : vector<8x8xf32>
    %cst_180 = arith.constant dense<0.000000e+00> : vector<8xf32>
    %458 = vector.multi_reduction <add>, %457, %cst_180 [1] : vector<8x8xf32> to vector<8xf32>
    %459 = vector.shape_cast %458 : vector<8xf32> to vector<8x1xf32>
    %460 = vector.broadcast %459 : vector<8x1xf32> to vector<8x8xf32>
    %461 = arith.divf %457, %460 : vector<8x8xf32>
    %462 = vector.extract_strided_slice %429 {offsets = [8, 0], sizes = [8, 8], strides = [1, 1]} : vector<16x8xf32> to vector<8x8xf32>
    %cst_181 = arith.constant dense<0.000000e+00> : vector<8x8xf32>
    %463 = tpu.matmul %461, %462, %cst_181 {dimension_numbers = #tpu.dot_dimension_numbers<[1], [0], [0], [1], [0, 0, 1, 1], [], []>} : vector<8x8xf32>, vector<8x8xf32>, vector<8x8xf32> -> vector<8x8xf32>
    %cst_182 = arith.constant dense<0.000000e+00> : vector<8x32xf32>
    %464 = tpu.matmul %463, %431, %cst_182 {dimension_numbers = #tpu.dot_dimension_numbers<[1], [0], [0], [1], [0, 0, 1, 1], [], []>} : vector<8x8xf32>, vector<8x32xf32>, vector<8x32xf32> -> vector<8x32xf32>
    %465 = arith.addf %408, %464 : vector<8x32xf32>
    %c14 = arith.constant 14 : index
    %c0_183 = arith.constant 0 : index
    %c0_184 = arith.constant 0 : index
    %466 = vector.load %arg5[%c14, %c0_183, %c0_184] : memref<24x33x8xf32, #tpu.memory_space<vmem>>, vector<1x33x8xf32>
    %467 = vector.shape_cast %466 : vector<1x33x8xf32> to vector<33x8xf32>
    %468 = vector.extract_strided_slice %467 {offsets = [0, 0], sizes = [32, 8], strides = [1, 1]} : vector<33x8xf32> to vector<32x8xf32>
    %cst_185 = arith.constant dense<0.000000e+00> : vector<16x8xf32>
    %469 = tpu.matmul %353, %468, %cst_185 {dimension_numbers = #tpu.dot_dimension_numbers<[1], [0], [0], [1], [0, 0, 1, 1], [], []>} : vector<16x32xf32>, vector<32x8xf32>, vector<16x8xf32> -> vector<16x8xf32>
    %470 = vector.extract_strided_slice %467 {offsets = [32, 0], sizes = [1, 8], strides = [1, 1]} : vector<33x8xf32> to vector<1x8xf32>
    %471 = vector.broadcast %470 : vector<1x8xf32> to vector<16x8xf32>
    %472 = arith.addf %469, %471 : vector<16x8xf32>
    %c18 = arith.constant 18 : index
    %c0_186 = arith.constant 0 : index
    %c0_187 = arith.constant 0 : index
    %473 = vector.load %arg5[%c18, %c0_186, %c0_187] : memref<24x33x8xf32, #tpu.memory_space<vmem>>, vector<1x33x8xf32>
    %474 = vector.shape_cast %473 : vector<1x33x8xf32> to vector<33x8xf32>
    %475 = vector.extract_strided_slice %474 {offsets = [0, 0], sizes = [32, 8], strides = [1, 1]} : vector<33x8xf32> to vector<32x8xf32>
    %cst_188 = arith.constant dense<0.000000e+00> : vector<16x8xf32>
    %476 = tpu.matmul %353, %475, %cst_188 {dimension_numbers = #tpu.dot_dimension_numbers<[1], [0], [0], [1], [0, 0, 1, 1], [], []>} : vector<16x32xf32>, vector<32x8xf32>, vector<16x8xf32> -> vector<16x8xf32>
    %477 = vector.extract_strided_slice %474 {offsets = [32, 0], sizes = [1, 8], strides = [1, 1]} : vector<33x8xf32> to vector<1x8xf32>
    %478 = vector.broadcast %477 : vector<1x8xf32> to vector<16x8xf32>
    %479 = arith.addf %476, %478 : vector<16x8xf32>
    %c22 = arith.constant 22 : index
    %c0_189 = arith.constant 0 : index
    %c0_190 = arith.constant 0 : index
    %480 = vector.load %arg5[%c22, %c0_189, %c0_190] : memref<24x33x8xf32, #tpu.memory_space<vmem>>, vector<1x33x8xf32>
    %481 = vector.shape_cast %480 : vector<1x33x8xf32> to vector<33x8xf32>
    %482 = vector.extract_strided_slice %481 {offsets = [0, 0], sizes = [32, 8], strides = [1, 1]} : vector<33x8xf32> to vector<32x8xf32>
    %cst_191 = arith.constant dense<0.000000e+00> : vector<16x8xf32>
    %483 = tpu.matmul %353, %482, %cst_191 {dimension_numbers = #tpu.dot_dimension_numbers<[1], [0], [0], [1], [0, 0, 1, 1], [], []>} : vector<16x32xf32>, vector<32x8xf32>, vector<16x8xf32> -> vector<16x8xf32>
    %484 = vector.extract_strided_slice %481 {offsets = [32, 0], sizes = [1, 8], strides = [1, 1]} : vector<33x8xf32> to vector<1x8xf32>
    %485 = vector.broadcast %484 : vector<1x8xf32> to vector<16x8xf32>
    %486 = arith.addf %483, %485 : vector<16x8xf32>
    %c6_192 = arith.constant 6 : index
    %c0_193 = arith.constant 0 : index
    %c0_194 = arith.constant 0 : index
    %487 = vector.load %arg6[%c6_192, %c0_193, %c0_194] : memref<8x8x32xf32, #tpu.memory_space<vmem>>, vector<1x8x32xf32>
    %488 = vector.shape_cast %487 : vector<1x8x32xf32> to vector<8x32xf32>
    %489 = vector.extract_strided_slice %472 {offsets = [0, 0], sizes = [8, 8], strides = [1, 1]} : vector<16x8xf32> to vector<8x8xf32>
    %490 = vector.extract_strided_slice %479 {offsets = [0, 0], sizes = [8, 8], strides = [1, 1]} : vector<16x8xf32> to vector<8x8xf32>
    %cst_195 = arith.constant dense<0.000000e+00> : vector<8x8xf32>
    %491 = tpu.matmul %489, %490, %cst_195 {dimension_numbers = #tpu.dot_dimension_numbers<[1], [1], [0], [0], [0, 0, 1, 0], [], []>} : vector<8x8xf32>, vector<8x8xf32>, vector<8x8xf32> -> vector<8x8xf32>
    %492 = arith.addf %491, %43 : vector<8x8xf32>
    %cst_196 = arith.constant dense<0xFF800000> : vector<8xf32>
    %493 = vector.multi_reduction <maximumf>, %492, %cst_196 [1] : vector<8x8xf32> to vector<8xf32>
    %494 = vector.shape_cast %493 : vector<8xf32> to vector<8x1xf32>
    %495 = vector.broadcast %494 : vector<8x1xf32> to vector<8x8xf32>
    %496 = arith.subf %492, %495 : vector<8x8xf32>
    %497 = math.exp %496 : vector<8x8xf32>
    %cst_197 = arith.constant dense<0.000000e+00> : vector<8xf32>
    %498 = vector.multi_reduction <add>, %497, %cst_197 [1] : vector<8x8xf32> to vector<8xf32>
    %499 = vector.shape_cast %498 : vector<8xf32> to vector<8x1xf32>
    %500 = vector.broadcast %499 : vector<8x1xf32> to vector<8x8xf32>
    %501 = arith.divf %497, %500 : vector<8x8xf32>
    %502 = vector.extract_strided_slice %486 {offsets = [0, 0], sizes = [8, 8], strides = [1, 1]} : vector<16x8xf32> to vector<8x8xf32>
    %cst_198 = arith.constant dense<0.000000e+00> : vector<8x8xf32>
    %503 = tpu.matmul %501, %502, %cst_198 {dimension_numbers = #tpu.dot_dimension_numbers<[1], [0], [0], [1], [0, 0, 1, 1], [], []>} : vector<8x8xf32>, vector<8x8xf32>, vector<8x8xf32> -> vector<8x8xf32>
    %cst_199 = arith.constant dense<0.000000e+00> : vector<8x32xf32>
    %504 = tpu.matmul %503, %488, %cst_199 {dimension_numbers = #tpu.dot_dimension_numbers<[1], [0], [0], [1], [0, 0, 1, 1], [], []>} : vector<8x8xf32>, vector<8x32xf32>, vector<8x32xf32> -> vector<8x32xf32>
    %505 = arith.addf %448, %504 : vector<8x32xf32>
    %506 = vector.extract_strided_slice %472 {offsets = [8, 0], sizes = [8, 8], strides = [1, 1]} : vector<16x8xf32> to vector<8x8xf32>
    %507 = vector.extract_strided_slice %479 {offsets = [8, 0], sizes = [8, 8], strides = [1, 1]} : vector<16x8xf32> to vector<8x8xf32>
    %cst_200 = arith.constant dense<0.000000e+00> : vector<8x8xf32>
    %508 = tpu.matmul %506, %507, %cst_200 {dimension_numbers = #tpu.dot_dimension_numbers<[1], [1], [0], [0], [0, 0, 1, 0], [], []>} : vector<8x8xf32>, vector<8x8xf32>, vector<8x8xf32> -> vector<8x8xf32>
    %509 = arith.addf %508, %46 : vector<8x8xf32>
    %cst_201 = arith.constant dense<0xFF800000> : vector<8xf32>
    %510 = vector.multi_reduction <maximumf>, %509, %cst_201 [1] : vector<8x8xf32> to vector<8xf32>
    %511 = vector.shape_cast %510 : vector<8xf32> to vector<8x1xf32>
    %512 = vector.broadcast %511 : vector<8x1xf32> to vector<8x8xf32>
    %513 = arith.subf %509, %512 : vector<8x8xf32>
    %514 = math.exp %513 : vector<8x8xf32>
    %cst_202 = arith.constant dense<0.000000e+00> : vector<8xf32>
    %515 = vector.multi_reduction <add>, %514, %cst_202 [1] : vector<8x8xf32> to vector<8xf32>
    %516 = vector.shape_cast %515 : vector<8xf32> to vector<8x1xf32>
    %517 = vector.broadcast %516 : vector<8x1xf32> to vector<8x8xf32>
    %518 = arith.divf %514, %517 : vector<8x8xf32>
    %519 = vector.extract_strided_slice %486 {offsets = [8, 0], sizes = [8, 8], strides = [1, 1]} : vector<16x8xf32> to vector<8x8xf32>
    %cst_203 = arith.constant dense<0.000000e+00> : vector<8x8xf32>
    %520 = tpu.matmul %518, %519, %cst_203 {dimension_numbers = #tpu.dot_dimension_numbers<[1], [0], [0], [1], [0, 0, 1, 1], [], []>} : vector<8x8xf32>, vector<8x8xf32>, vector<8x8xf32> -> vector<8x8xf32>
    %cst_204 = arith.constant dense<0.000000e+00> : vector<8x32xf32>
    %521 = tpu.matmul %520, %488, %cst_204 {dimension_numbers = #tpu.dot_dimension_numbers<[1], [0], [0], [1], [0, 0, 1, 1], [], []>} : vector<8x8xf32>, vector<8x32xf32>, vector<8x32xf32> -> vector<8x32xf32>
    %522 = arith.addf %465, %521 : vector<8x32xf32>
    %c15 = arith.constant 15 : index
    %c0_205 = arith.constant 0 : index
    %c0_206 = arith.constant 0 : index
    %523 = vector.load %arg5[%c15, %c0_205, %c0_206] : memref<24x33x8xf32, #tpu.memory_space<vmem>>, vector<1x33x8xf32>
    %524 = vector.shape_cast %523 : vector<1x33x8xf32> to vector<33x8xf32>
    %525 = vector.extract_strided_slice %524 {offsets = [0, 0], sizes = [32, 8], strides = [1, 1]} : vector<33x8xf32> to vector<32x8xf32>
    %cst_207 = arith.constant dense<0.000000e+00> : vector<16x8xf32>
    %526 = tpu.matmul %353, %525, %cst_207 {dimension_numbers = #tpu.dot_dimension_numbers<[1], [0], [0], [1], [0, 0, 1, 1], [], []>} : vector<16x32xf32>, vector<32x8xf32>, vector<16x8xf32> -> vector<16x8xf32>
    %527 = vector.extract_strided_slice %524 {offsets = [32, 0], sizes = [1, 8], strides = [1, 1]} : vector<33x8xf32> to vector<1x8xf32>
    %528 = vector.broadcast %527 : vector<1x8xf32> to vector<16x8xf32>
    %529 = arith.addf %526, %528 : vector<16x8xf32>
    %c19 = arith.constant 19 : index
    %c0_208 = arith.constant 0 : index
    %c0_209 = arith.constant 0 : index
    %530 = vector.load %arg5[%c19, %c0_208, %c0_209] : memref<24x33x8xf32, #tpu.memory_space<vmem>>, vector<1x33x8xf32>
    %531 = vector.shape_cast %530 : vector<1x33x8xf32> to vector<33x8xf32>
    %532 = vector.extract_strided_slice %531 {offsets = [0, 0], sizes = [32, 8], strides = [1, 1]} : vector<33x8xf32> to vector<32x8xf32>
    %cst_210 = arith.constant dense<0.000000e+00> : vector<16x8xf32>
    %533 = tpu.matmul %353, %532, %cst_210 {dimension_numbers = #tpu.dot_dimension_numbers<[1], [0], [0], [1], [0, 0, 1, 1], [], []>} : vector<16x32xf32>, vector<32x8xf32>, vector<16x8xf32> -> vector<16x8xf32>
    %534 = vector.extract_strided_slice %531 {offsets = [32, 0], sizes = [1, 8], strides = [1, 1]} : vector<33x8xf32> to vector<1x8xf32>
    %535 = vector.broadcast %534 : vector<1x8xf32> to vector<16x8xf32>
    %536 = arith.addf %533, %535 : vector<16x8xf32>
    %c23 = arith.constant 23 : index
    %c0_211 = arith.constant 0 : index
    %c0_212 = arith.constant 0 : index
    %537 = vector.load %arg5[%c23, %c0_211, %c0_212] : memref<24x33x8xf32, #tpu.memory_space<vmem>>, vector<1x33x8xf32>
    %538 = vector.shape_cast %537 : vector<1x33x8xf32> to vector<33x8xf32>
    %539 = vector.extract_strided_slice %538 {offsets = [0, 0], sizes = [32, 8], strides = [1, 1]} : vector<33x8xf32> to vector<32x8xf32>
    %cst_213 = arith.constant dense<0.000000e+00> : vector<16x8xf32>
    %540 = tpu.matmul %353, %539, %cst_213 {dimension_numbers = #tpu.dot_dimension_numbers<[1], [0], [0], [1], [0, 0, 1, 1], [], []>} : vector<16x32xf32>, vector<32x8xf32>, vector<16x8xf32> -> vector<16x8xf32>
    %541 = vector.extract_strided_slice %538 {offsets = [32, 0], sizes = [1, 8], strides = [1, 1]} : vector<33x8xf32> to vector<1x8xf32>
    %542 = vector.broadcast %541 : vector<1x8xf32> to vector<16x8xf32>
    %543 = arith.addf %540, %542 : vector<16x8xf32>
    %c7_214 = arith.constant 7 : index
    %c0_215 = arith.constant 0 : index
    %c0_216 = arith.constant 0 : index
    %544 = vector.load %arg6[%c7_214, %c0_215, %c0_216] : memref<8x8x32xf32, #tpu.memory_space<vmem>>, vector<1x8x32xf32>
    %545 = vector.shape_cast %544 : vector<1x8x32xf32> to vector<8x32xf32>
    %546 = vector.extract_strided_slice %529 {offsets = [0, 0], sizes = [8, 8], strides = [1, 1]} : vector<16x8xf32> to vector<8x8xf32>
    %547 = vector.extract_strided_slice %536 {offsets = [0, 0], sizes = [8, 8], strides = [1, 1]} : vector<16x8xf32> to vector<8x8xf32>
    %cst_217 = arith.constant dense<0.000000e+00> : vector<8x8xf32>
    %548 = tpu.matmul %546, %547, %cst_217 {dimension_numbers = #tpu.dot_dimension_numbers<[1], [1], [0], [0], [0, 0, 1, 0], [], []>} : vector<8x8xf32>, vector<8x8xf32>, vector<8x8xf32> -> vector<8x8xf32>
    %549 = arith.addf %548, %43 : vector<8x8xf32>
    %cst_218 = arith.constant dense<0xFF800000> : vector<8xf32>
    %550 = vector.multi_reduction <maximumf>, %549, %cst_218 [1] : vector<8x8xf32> to vector<8xf32>
    %551 = vector.shape_cast %550 : vector<8xf32> to vector<8x1xf32>
    %552 = vector.broadcast %551 : vector<8x1xf32> to vector<8x8xf32>
    %553 = arith.subf %549, %552 : vector<8x8xf32>
    %554 = math.exp %553 : vector<8x8xf32>
    %cst_219 = arith.constant dense<0.000000e+00> : vector<8xf32>
    %555 = vector.multi_reduction <add>, %554, %cst_219 [1] : vector<8x8xf32> to vector<8xf32>
    %556 = vector.shape_cast %555 : vector<8xf32> to vector<8x1xf32>
    %557 = vector.broadcast %556 : vector<8x1xf32> to vector<8x8xf32>
    %558 = arith.divf %554, %557 : vector<8x8xf32>
    %559 = vector.extract_strided_slice %543 {offsets = [0, 0], sizes = [8, 8], strides = [1, 1]} : vector<16x8xf32> to vector<8x8xf32>
    %cst_220 = arith.constant dense<0.000000e+00> : vector<8x8xf32>
    %560 = tpu.matmul %558, %559, %cst_220 {dimension_numbers = #tpu.dot_dimension_numbers<[1], [0], [0], [1], [0, 0, 1, 1], [], []>} : vector<8x8xf32>, vector<8x8xf32>, vector<8x8xf32> -> vector<8x8xf32>
    %cst_221 = arith.constant dense<0.000000e+00> : vector<8x32xf32>
    %561 = tpu.matmul %560, %545, %cst_221 {dimension_numbers = #tpu.dot_dimension_numbers<[1], [0], [0], [1], [0, 0, 1, 1], [], []>} : vector<8x8xf32>, vector<8x32xf32>, vector<8x32xf32> -> vector<8x32xf32>
    %562 = arith.addf %505, %561 : vector<8x32xf32>
    %563 = vector.extract_strided_slice %529 {offsets = [8, 0], sizes = [8, 8], strides = [1, 1]} : vector<16x8xf32> to vector<8x8xf32>
    %564 = vector.extract_strided_slice %536 {offsets = [8, 0], sizes = [8, 8], strides = [1, 1]} : vector<16x8xf32> to vector<8x8xf32>
    %cst_222 = arith.constant dense<0.000000e+00> : vector<8x8xf32>
    %565 = tpu.matmul %563, %564, %cst_222 {dimension_numbers = #tpu.dot_dimension_numbers<[1], [1], [0], [0], [0, 0, 1, 0], [], []>} : vector<8x8xf32>, vector<8x8xf32>, vector<8x8xf32> -> vector<8x8xf32>
    %566 = arith.addf %565, %46 : vector<8x8xf32>
    %cst_223 = arith.constant dense<0xFF800000> : vector<8xf32>
    %567 = vector.multi_reduction <maximumf>, %566, %cst_223 [1] : vector<8x8xf32> to vector<8xf32>
    %568 = vector.shape_cast %567 : vector<8xf32> to vector<8x1xf32>
    %569 = vector.broadcast %568 : vector<8x1xf32> to vector<8x8xf32>
    %570 = arith.subf %566, %569 : vector<8x8xf32>
    %571 = math.exp %570 : vector<8x8xf32>
    %cst_224 = arith.constant dense<0.000000e+00> : vector<8xf32>
    %572 = vector.multi_reduction <add>, %571, %cst_224 [1] : vector<8x8xf32> to vector<8xf32>
    %573 = vector.shape_cast %572 : vector<8xf32> to vector<8x1xf32>
    %574 = vector.broadcast %573 : vector<8x1xf32> to vector<8x8xf32>
    %575 = arith.divf %571, %574 : vector<8x8xf32>
    %576 = vector.extract_strided_slice %543 {offsets = [8, 0], sizes = [8, 8], strides = [1, 1]} : vector<16x8xf32> to vector<8x8xf32>
    %cst_225 = arith.constant dense<0.000000e+00> : vector<8x8xf32>
    %577 = tpu.matmul %575, %576, %cst_225 {dimension_numbers = #tpu.dot_dimension_numbers<[1], [0], [0], [1], [0, 0, 1, 1], [], []>} : vector<8x8xf32>, vector<8x8xf32>, vector<8x8xf32> -> vector<8x8xf32>
    %cst_226 = arith.constant dense<0.000000e+00> : vector<8x32xf32>
    %578 = tpu.matmul %577, %545, %cst_226 {dimension_numbers = #tpu.dot_dimension_numbers<[1], [0], [0], [1], [0, 0, 1, 1], [], []>} : vector<8x8xf32>, vector<8x32xf32>, vector<8x32xf32> -> vector<8x32xf32>
    %579 = arith.addf %522, %578 : vector<8x32xf32>
    %580 = tpu.concatenate %562, %579 in 0 : vector<8x32xf32>, vector<8x32xf32> -> vector<16x32xf32>
    %c5_227 = arith.constant 5 : index
    %c0_228 = arith.constant 0 : index
    %581 = vector.load %arg7[%c5_227, %c0_228] : memref<10x32xf32, #tpu.memory_space<vmem>>, vector<1x32xf32>
    %582 = vector.broadcast %581 : vector<1x32xf32> to vector<16x32xf32>
    %583 = arith.addf %580, %582 : vector<16x32xf32>
    %584 = arith.addf %583, %353 : vector<16x32xf32>
    %c6_229 = arith.constant 6 : index
    %c0_230 = arith.constant 0 : index
    %585 = vector.load %arg7[%c6_229, %c0_230] : memref<10x32xf32, #tpu.memory_space<vmem>>, vector<1x32xf32>
    %c7_231 = arith.constant 7 : index
    %c0_232 = arith.constant 0 : index
    %586 = vector.load %arg7[%c7_231, %c0_232] : memref<10x32xf32, #tpu.memory_space<vmem>>, vector<1x32xf32>
    %cst_233 = arith.constant dense<0.000000e+00> : vector<16xf32>
    %587 = vector.multi_reduction <add>, %584, %cst_233 [1] : vector<16x32xf32> to vector<16xf32>
    %588 = vector.shape_cast %587 : vector<16xf32> to vector<16x1xf32>
    %cst_234 = arith.constant 3.200000e+01 : f32
    %589 = vector.broadcast %cst_234 : f32 to vector<16x1xf32>
    %590 = arith.divf %588, %589 : vector<16x1xf32>
    %591 = vector.broadcast %590 : vector<16x1xf32> to vector<16x32xf32>
    %592 = arith.subf %584, %591 : vector<16x32xf32>
    %593 = arith.mulf %592, %592 : vector<16x32xf32>
    %cst_235 = arith.constant dense<0.000000e+00> : vector<16xf32>
    %594 = vector.multi_reduction <add>, %593, %cst_235 [1] : vector<16x32xf32> to vector<16xf32>
    %595 = vector.shape_cast %594 : vector<16xf32> to vector<16x1xf32>
    %cst_236 = arith.constant 3.200000e+01 : f32
    %596 = vector.broadcast %cst_236 : f32 to vector<16x1xf32>
    %597 = arith.divf %595, %596 : vector<16x1xf32>
    %598 = vector.broadcast %590 : vector<16x1xf32> to vector<16x32xf32>
    %599 = arith.subf %584, %598 : vector<16x32xf32>
    %cst_237 = arith.constant 9.99999996E-13 : f32
    %600 = vector.broadcast %cst_237 : f32 to vector<16x1xf32>
    %601 = arith.addf %597, %600 : vector<16x1xf32>
    %602 = math.rsqrt %601 : vector<16x1xf32>
    %603 = vector.broadcast %602 : vector<16x1xf32> to vector<16x32xf32>
    %604 = arith.mulf %599, %603 : vector<16x32xf32>
    %605 = vector.broadcast %585 : vector<1x32xf32> to vector<16x32xf32>
    %606 = arith.mulf %604, %605 : vector<16x32xf32>
    %607 = vector.broadcast %586 : vector<1x32xf32> to vector<16x32xf32>
    %608 = arith.addf %606, %607 : vector<16x32xf32>
    %c1_238 = arith.constant 1 : index
    %c0_239 = arith.constant 0 : index
    %c0_240 = arith.constant 0 : index
    %609 = vector.load %arg8[%c1_238, %c0_239, %c0_240] : memref<2x33x64xf32, #tpu.memory_space<vmem>>, vector<1x33x64xf32>
    %610 = vector.shape_cast %609 : vector<1x33x64xf32> to vector<33x64xf32>
    %611 = vector.extract_strided_slice %610 {offsets = [0, 0], sizes = [32, 64], strides = [1, 1]} : vector<33x64xf32> to vector<32x64xf32>
    %cst_241 = arith.constant dense<0.000000e+00> : vector<16x64xf32>
    %612 = tpu.matmul %608, %611, %cst_241 {dimension_numbers = #tpu.dot_dimension_numbers<[1], [0], [0], [1], [0, 0, 1, 1], [], []>} : vector<16x32xf32>, vector<32x64xf32>, vector<16x64xf32> -> vector<16x64xf32>
    %613 = vector.extract_strided_slice %610 {offsets = [32, 0], sizes = [1, 64], strides = [1, 1]} : vector<33x64xf32> to vector<1x64xf32>
    %614 = vector.broadcast %613 : vector<1x64xf32> to vector<16x64xf32>
    %615 = arith.addf %612, %614 : vector<16x64xf32>
    %cst_242 = arith.constant 5.000000e-01 : f32
    %616 = vector.broadcast %cst_242 : f32 to vector<16x64xf32>
    %617 = arith.mulf %616, %615 : vector<16x64xf32>
    %cst_243 = arith.constant 4.471500e-02 : f32
    %618 = vector.broadcast %cst_243 : f32 to vector<16x64xf32>
    %619 = arith.mulf %618, %615 : vector<16x64xf32>
    %620 = arith.mulf %619, %615 : vector<16x64xf32>
    %621 = arith.mulf %620, %615 : vector<16x64xf32>
    %622 = arith.addf %615, %621 : vector<16x64xf32>
    %cst_244 = arith.constant 0.797884583 : f32
    %623 = vector.broadcast %cst_244 : f32 to vector<16x64xf32>
    %624 = arith.mulf %623, %622 : vector<16x64xf32>
    %625 = math.tanh %624 : vector<16x64xf32>
    %cst_245 = arith.constant 1.000000e+00 : f32
    %626 = vector.broadcast %cst_245 : f32 to vector<16x64xf32>
    %627 = arith.addf %626, %625 : vector<16x64xf32>
    %628 = arith.mulf %617, %627 : vector<16x64xf32>
    %c1_246 = arith.constant 1 : index
    %c0_247 = arith.constant 0 : index
    %c0_248 = arith.constant 0 : index
    %629 = vector.load %arg9[%c1_246, %c0_247, %c0_248] : memref<2x65x32xf32, #tpu.memory_space<vmem>>, vector<1x65x32xf32>
    %630 = vector.shape_cast %629 : vector<1x65x32xf32> to vector<65x32xf32>
    %631 = vector.extract_strided_slice %630 {offsets = [0, 0], sizes = [64, 32], strides = [1, 1]} : vector<65x32xf32> to vector<64x32xf32>
    %cst_249 = arith.constant dense<0.000000e+00> : vector<16x32xf32>
    %632 = tpu.matmul %628, %631, %cst_249 {dimension_numbers = #tpu.dot_dimension_numbers<[1], [0], [0], [1], [0, 0, 1, 1], [], []>} : vector<16x64xf32>, vector<64x32xf32>, vector<16x32xf32> -> vector<16x32xf32>
    %633 = vector.extract_strided_slice %630 {offsets = [64, 0], sizes = [1, 32], strides = [1, 1]} : vector<65x32xf32> to vector<1x32xf32>
    %634 = vector.broadcast %633 : vector<1x32xf32> to vector<16x32xf32>
    %635 = arith.addf %632, %634 : vector<16x32xf32>
    %636 = arith.addf %635, %608 : vector<16x32xf32>
    %c8_250 = arith.constant 8 : index
    %c0_251 = arith.constant 0 : index
    %637 = vector.load %arg7[%c8_250, %c0_251] : memref<10x32xf32, #tpu.memory_space<vmem>>, vector<1x32xf32>
    %c9_252 = arith.constant 9 : index
    %c0_253 = arith.constant 0 : index
    %638 = vector.load %arg7[%c9_252, %c0_253] : memref<10x32xf32, #tpu.memory_space<vmem>>, vector<1x32xf32>
    %cst_254 = arith.constant dense<0.000000e+00> : vector<16xf32>
    %639 = vector.multi_reduction <add>, %636, %cst_254 [1] : vector<16x32xf32> to vector<16xf32>
    %640 = vector.shape_cast %639 : vector<16xf32> to vector<16x1xf32>
    %cst_255 = arith.constant 3.200000e+01 : f32
    %641 = vector.broadcast %cst_255 : f32 to vector<16x1xf32>
    %642 = arith.divf %640, %641 : vector<16x1xf32>
    %643 = vector.broadcast %642 : vector<16x1xf32> to vector<16x32xf32>
    %644 = arith.subf %636, %643 : vector<16x32xf32>
    %645 = arith.mulf %644, %644 : vector<16x32xf32>
    %cst_256 = arith.constant dense<0.000000e+00> : vector<16xf32>
    %646 = vector.multi_reduction <add>, %645, %cst_256 [1] : vector<16x32xf32> to vector<16xf32>
    %647 = vector.shape_cast %646 : vector<16xf32> to vector<16x1xf32>
    %cst_257 = arith.constant 3.200000e+01 : f32
    %648 = vector.broadcast %cst_257 : f32 to vector<16x1xf32>
    %649 = arith.divf %647, %648 : vector<16x1xf32>
    %650 = vector.broadcast %642 : vector<16x1xf32> to vector<16x32xf32>
    %651 = arith.subf %636, %650 : vector<16x32xf32>
    %cst_258 = arith.constant 9.99999996E-13 : f32
    %652 = vector.broadcast %cst_258 : f32 to vector<16x1xf32>
    %653 = arith.addf %649, %652 : vector<16x1xf32>
    %654 = math.rsqrt %653 : vector<16x1xf32>
    %655 = vector.broadcast %654 : vector<16x1xf32> to vector<16x32xf32>
    %656 = arith.mulf %651, %655 : vector<16x32xf32>
    %657 = vector.broadcast %637 : vector<1x32xf32> to vector<16x32xf32>
    %658 = arith.mulf %656, %657 : vector<16x32xf32>
    %659 = vector.broadcast %638 : vector<1x32xf32> to vector<16x32xf32>
    %660 = arith.addf %658, %659 : vector<16x32xf32>
    %661 = vector.extract_strided_slice %660 {offsets = [0, 0], sizes = [1, 32], strides = [1, 1]} : vector<16x32xf32> to vector<1x32xf32>
    %662 = vector.extract_strided_slice %660 {offsets = [8, 0], sizes = [1, 32], strides = [1, 1]} : vector<16x32xf32> to vector<1x32xf32>
    %663 = tpu.concatenate %661, %662 in 0 : vector<1x32xf32>, vector<1x32xf32> -> vector<2x32xf32>
    %c0_259 = arith.constant 0 : index
    %c0_260 = arith.constant 0 : index
    %664 = vector.load %arg10[%c0_259, %c0_260] : memref<33x32xf32, #tpu.memory_space<vmem>>, vector<32x32xf32>
    %cst_261 = arith.constant dense<0.000000e+00> : vector<2x32xf32>
    %665 = tpu.matmul %663, %664, %cst_261 {dimension_numbers = #tpu.dot_dimension_numbers<[1], [0], [0], [1], [0, 0, 1, 1], [], []>} : vector<2x32xf32>, vector<32x32xf32>, vector<2x32xf32> -> vector<2x32xf32>
    %c32 = arith.constant 32 : index
    %c0_262 = arith.constant 0 : index
    %666 = vector.load %arg10[%c32, %c0_262] : memref<33x32xf32, #tpu.memory_space<vmem>>, vector<1x32xf32>
    %667 = vector.broadcast %666 : vector<1x32xf32> to vector<2x32xf32>
    %668 = arith.addf %665, %667 : vector<2x32xf32>
    %669 = math.tanh %668 : vector<2x32xf32>
    %c0_263 = arith.constant 0 : index
    %c0_264 = arith.constant 0 : index
    %670 = vector.load %arg11[%c0_263, %c0_264] : memref<33x128xf32, #tpu.memory_space<vmem>>, vector<32x128xf32>
    %cst_265 = arith.constant dense<0.000000e+00> : vector<2x128xf32>
    %671 = tpu.matmul %669, %670, %cst_265 {dimension_numbers = #tpu.dot_dimension_numbers<[1], [0], [0], [1], [0, 0, 1, 1], [], []>} : vector<2x32xf32>, vector<32x128xf32>, vector<2x128xf32> -> vector<2x128xf32>
    %c32_266 = arith.constant 32 : index
    %c0_267 = arith.constant 0 : index
    %672 = vector.load %arg11[%c32_266, %c0_267] : memref<33x128xf32, #tpu.memory_space<vmem>>, vector<1x128xf32>
    %673 = vector.broadcast %672 : vector<1x128xf32> to vector<2x128xf32>
    %674 = arith.addf %671, %673 : vector<2x128xf32>
    %c0_268 = arith.constant 0 : index
    %c0_269 = arith.constant 0 : index
    %675 = vector.load %arg12[%c0_268, %c0_269] : memref<2x128xf32, #tpu.memory_space<vmem>>, vector<2x128xf32>
    tpu.vector_store %arg12[%c0_268, %c0_269], %674 {strides = array<i32>} : memref<2x128xf32, #tpu.memory_space<vmem>>, vector<2x128xf32>,
    return
  }
}

</mosaic_0001>

<llo_original>
// kernel: bert_multilabel_forward.1
$region0: #{bert_multilabel_forward.1}
  #allocation0 [shape = 'u32[]', space=smem, size = 0x4, offset = 0x4, fixed_abs, tag = 'smem constant byte address 0x4 - core index']
  #allocation1 [shape = 'u32[72,128]{1,0:T(1,128)}', space=vmem, size = 0x9000, scoped, tag = 'internal scratch']
  %s0 = inlined_call_operand.vmem [shape: s32[16,1], index: 0, kind: input, shape index: {}]
  %s1 = inlined_call_operand.vmem [shape: s32[2,8], index: 1, kind: input, shape index: {}]
  %s2 = inlined_call_operand.vmem [shape: f32[128,32], index: 2, kind: input, shape index: {}]
  %s3 = inlined_call_operand.vmem [shape: f32[16,32], index: 3, kind: input, shape index: {}]
  %s4 = inlined_call_operand.vmem [shape: f32[2,32], index: 4, kind: input, shape index: {}]
  %s5 = inlined_call_operand.vmem [shape: f32[24,33,8], index: 5, kind: input, shape index: {}]
  %s6 = inlined_call_operand.vmem [shape: f32[8,8,32], index: 6, kind: input, shape index: {}]
  %s7 = inlined_call_operand.vmem [shape: f32[10,32], index: 7, kind: input, shape index: {}]
  %s8 = inlined_call_operand.vmem [shape: f32[2,33,64], index: 8, kind: input, shape index: {}]
  %s9 = inlined_call_operand.vmem [shape: f32[2,65,32], index: 9, kind: input, shape index: {}]
  %s10 = inlined_call_operand.vmem [shape: f32[33,32], index: 10, kind: input, shape index: {}]
  %s11 = inlined_call_operand.vmem [shape: f32[33,128], index: 11, kind: input, shape index: {}]
  %s12 = inlined_call_operand.hbm [shape: f32[2,128], index: 12, kind: output, shape index: {}]
  %s13 = sld [smem:[#allocation0]]
  $region58: #{bert_multilabel_forward.1} parent=0
    _
  %s15 = ssub.s32 1, %s13
  %s16 = scalar_select 0, %s15, %s13
  $region1: #{bert_multilabel_forward.1} parent=0
    #allocation2 [shape = 'u8[1024]{0}', space=vmem, size = 0x400, scoped, tag = 'output window, operand 0, single buffered']
    #allocation3 [shape = 's32[1]{0}', space=sflag, size = 0x4, scoped, tag = 'scoped memory for bert_multilabel_forward.1']
    %17 = vsyncpa [#allocation3], 0
    // Predicated region
    $region2: #{bert_multilabel_forward.1} parent=1 // pred_check
      _
    $region3: #{bert_multilabel_forward.1} parent=1 // pred_check_branch
      %19 = sbr.rel (0) target = $region5
    $region4: #{bert_multilabel_forward.1} parent=1 // pred_region
      _
    $region5: #{bert_multilabel_forward.1} parent=1 // pred_fallthru
      _
    // Predicated region
    $region6: #{bert_multilabel_forward.1} parent=1 // pred_check
      _
    $region7: #{bert_multilabel_forward.1} parent=1 // pred_check_branch
      %21 = sbr.rel (0) target = $region9
    $region8: #{bert_multilabel_forward.1} parent=1 // pred_region
      _
    $region9: #{bert_multilabel_forward.1} parent=1 // pred_fallthru
      _
    // Predicated region
    $region10: #{bert_multilabel_forward.1} parent=1 // pred_check
      _
    $region11: #{bert_multilabel_forward.1} parent=1 // pred_check_branch
      %23 = sbr.rel (0) target = $region13
    $region12: #{bert_multilabel_forward.1} parent=1 // pred_region
      _
    $region13: #{bert_multilabel_forward.1} parent=1 // pred_fallthru
      _
    // Predicated region
    $region14: #{bert_multilabel_forward.1} parent=1 // pred_check
      _
    $region15: #{bert_multilabel_forward.1} parent=1 // pred_check_branch
      %25 = sbr.rel (0) target = $region17
    $region16: #{bert_multilabel_forward.1} parent=1 // pred_region
      _
    $region17: #{bert_multilabel_forward.1} parent=1 // pred_fallthru
      _
    // Predicated region
    $region18: #{bert_multilabel_forward.1} parent=1 // pred_check
      _
    $region19: #{bert_multilabel_forward.1} parent=1 // pred_check_branch
      %27 = sbr.rel (0) target = $region21
    $region20: #{bert_multilabel_forward.1} parent=1 // pred_region
      _
    $region21: #{bert_multilabel_forward.1} parent=1 // pred_fallthru
      _
    // Predicated region
    $region22: #{bert_multilabel_forward.1} parent=1 // pred_check
      _
    $region23: #{bert_multilabel_forward.1} parent=1 // pred_check_branch
      %29 = sbr.rel (0) target = $region25
    $region24: #{bert_multilabel_forward.1} parent=1 // pred_region
      _
    $region25: #{bert_multilabel_forward.1} parent=1 // pred_fallthru
      _
    // Predicated region
    $region26: #{bert_multilabel_forward.1} parent=1 // pred_check
      _
    $region27: #{bert_multilabel_forward.1} parent=1 // pred_check_branch
      %31 = sbr.rel (0) target = $region29
    $region28: #{bert_multilabel_forward.1} parent=1 // pred_region
      _
    $region29: #{bert_multilabel_forward.1} parent=1 // pred_fallthru
      _
    // Predicated region
    $region30: #{bert_multilabel_forward.1} parent=1 // pred_check
      _
    $region31: #{bert_multilabel_forward.1} parent=1 // pred_check_branch
      %33 = sbr.rel (0) target = $region33
    $region32: #{bert_multilabel_forward.1} parent=1 // pred_region
      _
    $region33: #{bert_multilabel_forward.1} parent=1 // pred_fallthru
      _
    // Predicated region
    $region34: #{bert_multilabel_forward.1} parent=1 // pred_check
      _
    $region35: #{bert_multilabel_forward.1} parent=1 // pred_check_branch
      %35 = sbr.rel (0) target = $region37
    $region36: #{bert_multilabel_forward.1} parent=1 // pred_region
      _
    $region37: #{bert_multilabel_forward.1} parent=1 // pred_fallthru
      _
    // Predicated region
    $region38: #{bert_multilabel_forward.1} parent=1 // pred_check
      _
    $region39: #{bert_multilabel_forward.1} parent=1 // pred_check_branch
      %37 = sbr.rel (0) target = $region41
    $region40: #{bert_multilabel_forward.1} parent=1 // pred_region
      _
    $region41: #{bert_multilabel_forward.1} parent=1 // pred_fallthru
      _
    // Predicated region
    $region42: #{bert_multilabel_forward.1} parent=1 // pred_check
      _
    $region43: #{bert_multilabel_forward.1} parent=1 // pred_check_branch
      %39 = sbr.rel (0) target = $region45
    $region44: #{bert_multilabel_forward.1} parent=1 // pred_region
      _
    $region45: #{bert_multilabel_forward.1} parent=1 // pred_fallthru
      _
    // Predicated region
    $region46: #{bert_multilabel_forward.1} parent=1 // pred_check
      _
    $region47: #{bert_multilabel_forward.1} parent=1 // pred_check_branch
      %41 = sbr.rel (0) target = $region49
    $region48: #{bert_multilabel_forward.1} parent=1 // pred_region
      _
    $region49: #{bert_multilabel_forward.1} parent=1 // pred_fallthru
      _
    %v42 = vld [vmem:[%s0] sm:$0xff]
    %v43 = vld [vmem:[%s0 + $0x8] sm:$0xff]
    %v44 = vlaneseq
    %v45 = vand.u32 %v44, 127
    %46 = vset.pattern.permute.xlu0 0
    %47 = vperm.xlu0 %46, %v42
    %v48 = vpop.permute.xlu0 %47
    %49 = vset.pattern.permute.xlu0 0
    %50 = vperm.xlu0 %49, %v43
    %v51 = vpop.permute.xlu0 %50
    %vm52 = vcmp.eq.s32.totalorder %v45, %v48
    %vm53 = vcmp.eq.s32.totalorder %v45, %v51
    %v54 = vsel %vm52, 1, 0
    %v55 = vsel %vm53, 1, 0
    %v56 = vcvt.s32.f32 %v54
    %v57 = vcvt.s32.f32 %v55
    %v58 = vld [vmem:[%s2] sm:$0xff]
    %v59 = vld [vmem:[%s2 + $0x8] sm:$0xff]
    %v60 = vld [vmem:[%s2 + $0x10] sm:$0xff]
    %v61 = vld [vmem:[%s2 + $0x18] sm:$0xff]
    %v62 = vld [vmem:[%s2 + $0x20] sm:$0xff]
    %v63 = vld [vmem:[%s2 + $0x28] sm:$0xff]
    %v64 = vld [vmem:[%s2 + $0x30] sm:$0xff]
    %v65 = vld [vmem:[%s2 + $0x38] sm:$0xff]
    %v66 = vld [vmem:[%s2 + $0x40] sm:$0xff]
    %v67 = vld [vmem:[%s2 + $0x48] sm:$0xff]
    %v68 = vld [vmem:[%s2 + $0x50] sm:$0xff]
    %v69 = vld [vmem:[%s2 + $0x58] sm:$0xff]
    %v70 = vld [vmem:[%s2 + $0x60] sm:$0xff]
    %v71 = vld [vmem:[%s2 + $0x68] sm:$0xff]
    %v72 = vld [vmem:[%s2 + $0x70] sm:$0xff]
    %v73 = vld [vmem:[%s2 + $0x78] sm:$0xff]
    %v74 = vld [vmem:[%s3] sm:$0xff]
    %75 = vmatpush.msra.mxu0 %v73
    %76 = vmatpush.msra.mxu0 %v72
    %77 = vmatpush.msra.mxu0 %v71
    %78 = vmatpush.msra.mxu0 %v70
    %79 = vmatpush.msra.mxu0 %v69
    %80 = vmatpush.msra.mxu0 %v68
    %81 = vmatpush.msra.mxu0 %v67
    %82 = vmatpush.msra.mxu0 %v66
    %83 = vmatpush.msra.mxu0 %v65
    %84 = vmatpush.msra.mxu0 %v64
    %85 = vmatpush.msra.mxu0 %v63
    %86 = vmatpush.msra.mxu0 %v62
    %87 = vmatpush.msra.mxu0 %v61
    %88 = vmatpush.msra.mxu0 %v60
    %89 = vmatpush.msra.mxu0 %v59
    %90 = vmatpush.msra.mxu0 %v58
    %91 = vmatmul.f32.gmra.mxu0 %v56
    %v92 = vpop.f32.mrf.mxu0
    %v93 = vadd.f32 %v74, %v92
    %94 = vmatmul.f32.gmra.mxu0 %v57
    %v95 = vpop.f32.mrf.mxu0
    %v96 = vadd.f32 %v74, %v95
    %97 = vdwg.mxu0
    %v98 = vld [vmem:[%s4] sm:$0x1]
    %v99 = vld [vmem:[%s4 + $0x1] sm:$0x1]
    %vm100 = vcmask 261120
    %v101 = vsel %vm100, %v93, 0.0
    %102 = vadd.xlane.f32.xlu0 %v101
    %v103 = vpop.xlane.xlu0 %102
    %v104 = vsel %vm100, %v96, 0.0
    %105 = vadd.xlane.f32.xlu0 %v104
    %v106 = vpop.xlane.xlu0 %105
    %v107 = vrcp.pop 32.0
    %v108 = vmul.f32 32.0, %v107
    %v109 = vsub.f32 1.0, %v108
    %v110 = vmul.f32 %v107, %v109
    %v111 = vadd.f32 %v107, %v110
    %vm112 = vweird.f32 %v107
    %v113 = vsel %vm112, %v107, %v111
    %v114 = vmul.f32 %v103, %v113
    %v115 = vmul.f32 %v106, %v113
    %v116 = vsub.f32 %v93, %v114
    %v117 = vsub.f32 %v96, %v115
    %v118 = vmul.f32 %v116, %v116
    %v119 = vmul.f32 %v117, %v117
    %v120 = vsel %vm100, %v118, 0.0
    %121 = vadd.xlane.f32.xlu0 %v120
    %v122 = vpop.xlane.xlu0 %121
    %v123 = vsel %vm100, %v119, 0.0
    %124 = vadd.xlane.f32.xlu0 %v123
    %v125 = vpop.xlane.xlu0 %124
    %v126 = vmul.f32 %v122, %v113
    %v127 = vmul.f32 %v125, %v113
    %v128 = vadd.f32 %v126, 1e-12
    %v129 = vadd.f32 %v127, 1e-12
    %v130 = vrsqrt.pop %v128
    %v131 = vmul.f32 %v130, %v128
    %v132 = vmul.f32 %v131, %v130
    %v133 = vmul.f32 0.5, %v132
    %v134 = vsub.f32 1.5, %v133
    %v135 = vmul.f32 %v130, %v134
    %vm136 = vweird.f32 %v128
    %vm137 = vweird.f32 %v130
    %vm138 = vmor %vm136, %vm137
    %v139 = vsel %vm138, %v130, %v135
    %v140 = vrsqrt.pop %v129
    %v141 = vmul.f32 %v140, %v129
    %v142 = vmul.f32 %v141, %v140
    %v143 = vmul.f32 0.5, %v142
    %v144 = vsub.f32 1.5, %v143
    %v145 = vmul.f32 %v140, %v144
    %vm146 = vweird.f32 %v129
    %vm147 = vweird.f32 %v140
    %vm148 = vmor %vm146, %vm147
    %v149 = vsel %vm148, %v140, %v145
    %v150 = vmul.f32 %v116, %v139
    %v151 = vmul.f32 %v117, %v149
    %v152 = vperm.slane %v98, 0
    %v153 = vmul.f32 %v150, %v152
    %v154 = vmul.f32 %v151, %v152
    %v155 = vperm.slane %v99, 0
    %v156 = vadd.f32 %v153, %v155
    %v157 = vadd.f32 %v154, %v155
    %v158 = vld [vmem:[%s1] sm:$0x3]
    %v159 = vcvt.s32.f32 %v158
    %v160 = vsub.f32 1.0, %v159
    %v161 = vmul.f32 %v160, -1e+09
    %v162 = vperm.slane %v161, 0
    %v163 = vperm.slane %v161, 1
    %v164 = vld [vmem:[%s5] sm:$0xff]
    %v165 = vld [vmem:[%s5 + $0x8] sm:$0xff]
    %v166 = vld [vmem:[%s5 + $0x10] sm:$0xff]
    %v167 = vld [vmem:[%s5 + $0x18] sm:$0xff]
    %v168 = vld [vmem:[%s5 + $0x20] sm:$0x1]
    %v169 = vperm.slane %v168, 0
    %v171 = vsel %vm100, %v156, 0
    %v174 = vsel %vm100, %v157, 0
    %176 = vmatpush.msra.mxu0 0.0
    %177 = vmatpush.msra.mxu0 0.0
    %178 = vmatpush.msra.mxu0 0.0
    %179 = vmatpush.msra.mxu0 0.0
    %180 = vmatpush.msra.mxu0 0.0
    %181 = vmatpush.msra.mxu0 0.0
    %182 = vmatpush.msra.mxu0 0.0
    %183 = vmatpush.msra.mxu0 0.0
    %184 = vmatpush.msra.mxu0 0.0
    %185 = vmatpush.msra.mxu0 0.0
    %186 = vmatpush.msra.mxu0 0.0
    %187 = vmatpush.msra.mxu0 0.0
    %188 = vmatpush.msra.mxu0 %v167
    %189 = vmatpush.msra.mxu0 %v166
    %190 = vmatpush.msra.mxu0 %v165
    %191 = vmatpush.msra.mxu0 %v164
    %192 = vmatmul.f32.gmra.mxu0 %v171
    %v193 = vpop.f32.mrf.mxu0
    %v194 = vadd.f32 %v169, %v193
    %195 = vmatmul.f32.gmra.mxu0 %v174
    %v196 = vpop.f32.mrf.mxu0
    %v197 = vadd.f32 %v169, %v196
    %198 = vdwg.mxu0
    %s199 = scalar_lea.vmem %s5, 160
    %v200 = vld [vmem:[%s199] sm:$0xff]
    %v201 = vld [vmem:[%s199 + $0x8] sm:$0xff]
    %v202 = vld [vmem:[%s199 + $0x10] sm:$0xff]
    %v203 = vld [vmem:[%s199 + $0x18] sm:$0xff]
    %v204 = vld [vmem:[%s199 + $0x20] sm:$0x1]
    %v205 = vperm.slane %v204, 0
    %206 = vmatpush.msra.mxu0 0.0
    %207 = vmatpush.msra.mxu0 0.0
    %208 = vmatpush.msra.mxu0 0.0
    %209 = vmatpush.msra.mxu0 0.0
    %210 = vmatpush.msra.mxu0 0.0
    %211 = vmatpush.msra.mxu0 0.0
    %212 = vmatpush.msra.mxu0 0.0
    %213 = vmatpush.msra.mxu0 0.0
    %214 = vmatpush.msra.mxu0 0.0
    %215 = vmatpush.msra.mxu0 0.0
    %216 = vmatpush.msra.mxu0 0.0
    %217 = vmatpush.msra.mxu0 0.0
    %218 = vmatpush.msra.mxu0 %v203
    %219 = vmatpush.msra.mxu0 %v202
    %220 = vmatpush.msra.mxu0 %v201
    %221 = vmatpush.msra.mxu0 %v200
    %222 = vmatmul.f32.gmra.mxu0 %v171
    %v223 = vpop.f32.mrf.mxu0
    %v224 = vadd.f32 %v205, %v223
    %225 = vmatmul.f32.gmra.mxu0 %v174
    %v226 = vpop.f32.mrf.mxu0
    %v227 = vadd.f32 %v205, %v226
    %228 = vdwg.mxu0
    %s229 = scalar_lea.vmem %s5, 320
    %v230 = vld [vmem:[%s229] sm:$0xff]
    %v231 = vld [vmem:[%s229 + $0x8] sm:$0xff]
    %v232 = vld [vmem:[%s229 + $0x10] sm:$0xff]
    %v233 = vld [vmem:[%s229 + $0x18] sm:$0xff]
    %v234 = vld [vmem:[%s229 + $0x20] sm:$0x1]
    %v235 = vperm.slane %v234, 0
    %236 = vmatpush.msra.mxu0 0.0
    %237 = vmatpush.msra.mxu0 0.0
    %238 = vmatpush.msra.mxu0 0.0
    %239 = vmatpush.msra.mxu0 0.0
    %240 = vmatpush.msra.mxu0 0.0
    %241 = vmatpush.msra.mxu0 0.0
    %242 = vmatpush.msra.mxu0 0.0
    %243 = vmatpush.msra.mxu0 0.0
    %244 = vmatpush.msra.mxu0 0.0
    %245 = vmatpush.msra.mxu0 0.0
    %246 = vmatpush.msra.mxu0 0.0
    %247 = vmatpush.msra.mxu0 0.0
    %248 = vmatpush.msra.mxu0 %v233
    %249 = vmatpush.msra.mxu0 %v232
    %250 = vmatpush.msra.mxu0 %v231
    %251 = vmatpush.msra.mxu0 %v230
    %252 = vmatmul.f32.gmra.mxu0 %v171
    %v253 = vpop.f32.mrf.mxu0
    %v254 = vadd.f32 %v235, %v253
    %255 = vmatmul.f32.gmra.mxu0 %v174
    %v256 = vpop.f32.mrf.mxu0
    %v257 = vadd.f32 %v235, %v256
    %258 = vdwg.mxu0
    %v259 = vld [vmem:[%s6] sm:$0xff]
    %vm260 = vcmask 64512
    %v262 = vsel %vm260, %v194, 0
    %v265 = vsel %vm260, %v224, 0
    %267 = vmatpush.xpose.msra.mxu0 0.0
    %268 = vmatpush.xpose.msra.mxu0 0.0
    %269 = vmatpush.xpose.msra.mxu0 0.0
    %270 = vmatpush.xpose.msra.mxu0 0.0
    %271 = vmatpush.xpose.msra.mxu0 0.0
    %272 = vmatpush.xpose.msra.mxu0 0.0
    %273 = vmatpush.xpose.msra.mxu0 0.0
    %274 = vmatpush.xpose.msra.mxu0 0.0
    %275 = vmatpush.xpose.msra.mxu0 0.0
    %276 = vmatpush.xpose.msra.mxu0 0.0
    %277 = vmatpush.xpose.msra.mxu0 0.0
    %278 = vmatpush.xpose.msra.mxu0 0.0
    %279 = vmatpush.xpose.msra.mxu0 0.0
    %280 = vmatpush.xpose.msra.mxu0 0.0
    %281 = vmatpush.xpose.msra.mxu0 0.0
    %282 = vmatpush.xpose.msra.mxu0 %v265
    %283 = vmatmul.f32.gmra.mxu0 %v262
    %v284 = vpop.f32.mrf.mxu0
    %v285 = vadd.f32 %v162, %v284
    %286 = vdwg.mxu0
    %v287 = vsel %vm260, %v285, -inf
    %288 = vmax.xlane.f32.xlu0 %v287
    %v289 = vpop.xlane.xlu0 %288
    %v290 = vsub.f32 %v285, %v289
    %v291 = vmul.f32 %v290, 1.442695
    %v292 = vpow.pop %v291
    %v293 = vsel %vm260, %v292, 0.0
    %294 = vadd.xlane.f32.xlu0 %v293
    %v295 = vpop.xlane.xlu0 %294
    %v296 = vrcp.pop %v295
    %v297 = vmul.f32 %v295, %v296
    %v298 = vsub.f32 1.0, %v297
    %v299 = vmul.f32 %v296, %v298
    %v300 = vadd.f32 %v296, %v299
    %vm301 = vweird.f32 %v295
    %vm302 = vweird.f32 %v296
    %vm303 = vmor %vm301, %vm302
    %v304 = vsel %vm303, %v296, %v300
    %v305 = vand.u32 2147483647, %v295
    %vm306 = vcmp.eq.f32.partialorder %v305, 8.507059e+37
    %v307 = vand.u32 %v295, 2147483648
    %v308 = vor.u32 1.1754944e-38, %v307
    %v309 = vsel %vm306, %v308, %v304
    %v310 = vmul.f32 %v292, %v309
    %v312 = vsel %vm260, %v310, 0
    %314 = vmatpush.msra.mxu0 0.0
    %315 = vmatpush.msra.mxu0 0.0
    %316 = vmatpush.msra.mxu0 0.0
    %317 = vmatpush.msra.mxu0 0.0
    %318 = vmatpush.msra.mxu0 0.0
    %319 = vmatpush.msra.mxu0 0.0
    %320 = vmatpush.msra.mxu0 0.0
    %321 = vmatpush.msra.mxu0 0.0
    %322 = vmatpush.msra.mxu0 0.0
    %323 = vmatpush.msra.mxu0 0.0
    %324 = vmatpush.msra.mxu0 0.0
    %325 = vmatpush.msra.mxu0 0.0
    %326 = vmatpush.msra.mxu0 0.0
    %327 = vmatpush.msra.mxu0 0.0
    %328 = vmatpush.msra.mxu0 0.0
    %329 = vmatpush.msra.mxu0 %v254
    %330 = vmatmul.f32.gmra.mxu0 %v312
    %v331 = vpop.f32.mrf.mxu0
    %v332 = vadd.f32 0.0, %v331
    %333 = vdwg.mxu0
    %v335 = vsel %vm260, %v197, 0
    %v338 = vsel %vm260, %v227, 0
    %340 = vmatpush.xpose.msra.mxu0 0.0
    %341 = vmatpush.xpose.msra.mxu0 0.0
    %342 = vmatpush.xpose.msra.mxu0 0.0
    %343 = vmatpush.xpose.msra.mxu0 0.0
    %344 = vmatpush.xpose.msra.mxu0 0.0
    %345 = vmatpush.xpose.msra.mxu0 0.0
    %346 = vmatpush.xpose.msra.mxu0 0.0
    %347 = vmatpush.xpose.msra.mxu0 0.0
    %348 = vmatpush.xpose.msra.mxu0 0.0
    %349 = vmatpush.xpose.msra.mxu0 0.0
    %350 = vmatpush.xpose.msra.mxu0 0.0
    %351 = vmatpush.xpose.msra.mxu0 0.0
    %352 = vmatpush.xpose.msra.mxu0 0.0
    %353 = vmatpush.xpose.msra.mxu0 0.0
    %354 = vmatpush.xpose.msra.mxu0 0.0
    %355 = vmatpush.xpose.msra.mxu0 %v338
    %356 = vmatmul.f32.gmra.mxu0 %v335
    %v357 = vpop.f32.mrf.mxu0
    %v358 = vadd.f32 %v163, %v357
    %359 = vdwg.mxu0
    %v360 = vsel %vm260, %v358, -inf
    %361 = vmax.xlane.f32.xlu0 %v360
    %v362 = vpop.xlane.xlu0 %361
    %v363 = vsub.f32 %v358, %v362
    %v364 = vmul.f32 %v363, 1.442695
    %v365 = vpow.pop %v364
    %v366 = vsel %vm260, %v365, 0.0
    %367 = vadd.xlane.f32.xlu0 %v366
    %v368 = vpop.xlane.xlu0 %367
    %v369 = vrcp.pop %v368
    %v370 = vmul.f32 %v368, %v369
    %v371 = vsub.f32 1.0, %v370
    %v372 = vmul.f32 %v369, %v371
    %v373 = vadd.f32 %v369, %v372
    %vm374 = vweird.f32 %v368
    %vm375 = vweird.f32 %v369
    %vm376 = vmor %vm374, %vm375
    %v377 = vsel %vm376, %v369, %v373
    %v378 = vand.u32 2147483647, %v368
    %vm379 = vcmp.eq.f32.partialorder %v378, 8.507059e+37
    %v380 = vand.u32 %v368, 2147483648
    %v381 = vor.u32 1.1754944e-38, %v380
    %v382 = vsel %vm379, %v381, %v377
    %v383 = vmul.f32 %v365, %v382
    %v385 = vsel %vm260, %v383, 0
    %387 = vmatpush.msra.mxu0 0.0
    %388 = vmatpush.msra.mxu0 0.0
    %389 = vmatpush.msra.mxu0 0.0
    %390 = vmatpush.msra.mxu0 0.0
    %391 = vmatpush.msra.mxu0 0.0
    %392 = vmatpush.msra.mxu0 0.0
    %393 = vmatpush.msra.mxu0 0.0
    %394 = vmatpush.msra.mxu0 0.0
    %395 = vmatpush.msra.mxu0 0.0
    %396 = vmatpush.msra.mxu0 0.0
    %397 = vmatpush.msra.mxu0 0.0
    %398 = vmatpush.msra.mxu0 0.0
    %399 = vmatpush.msra.mxu0 0.0
    %400 = vmatpush.msra.mxu0 0.0
    %401 = vmatpush.msra.mxu0 0.0
    %402 = vmatpush.msra.mxu0 %v257
    %403 = vmatmul.f32.gmra.mxu0 %v385
    %v404 = vpop.f32.mrf.mxu0
    %v405 = vadd.f32 0.0, %v404
    %406 = vdwg.mxu0
    %s407 = scalar_lea.vmem %s5, 40
    %v408 = vld [vmem:[%s407] sm:$0xff]
    %v409 = vld [vmem:[%s407 + $0x8] sm:$0xff]
    %v410 = vld [vmem:[%s407 + $0x10] sm:$0xff]
    %v411 = vld [vmem:[%s407 + $0x18] sm:$0xff]
    %v412 = vld [vmem:[%s407 + $0x20] sm:$0x1]
    %v413 = vperm.slane %v412, 0
    %414 = vmatpush.msra.mxu0 0.0
    %415 = vmatpush.msra.mxu0 0.0
    %416 = vmatpush.msra.mxu0 0.0
    %417 = vmatpush.msra.mxu0 0.0
    %418 = vmatpush.msra.mxu0 0.0
    %419 = vmatpush.msra.mxu0 0.0
    %420 = vmatpush.msra.mxu0 0.0
    %421 = vmatpush.msra.mxu0 0.0
    %422 = vmatpush.msra.mxu0 0.0
    %423 = vmatpush.msra.mxu0 0.0
    %424 = vmatpush.msra.mxu0 0.0
    %425 = vmatpush.msra.mxu0 0.0
    %426 = vmatpush.msra.mxu0 %v411
    %427 = vmatpush.msra.mxu0 %v410
    %428 = vmatpush.msra.mxu0 %v409
    %429 = vmatpush.msra.mxu0 %v408
    %430 = vmatmul.f32.gmra.mxu0 %v171
    %v431 = vpop.f32.mrf.mxu0
    %v432 = vadd.f32 %v413, %v431
    %433 = vmatmul.f32.gmra.mxu0 %v174
    %v434 = vpop.f32.mrf.mxu0
    %v435 = vadd.f32 %v413, %v434
    %436 = vdwg.mxu0
    %s437 = scalar_lea.vmem %s5, 200
    %v438 = vld [vmem:[%s437] sm:$0xff]
    %v439 = vld [vmem:[%s437 + $0x8] sm:$0xff]
    %v440 = vld [vmem:[%s437 + $0x10] sm:$0xff]
    %v441 = vld [vmem:[%s437 + $0x18] sm:$0xff]
    %v442 = vld [vmem:[%s437 + $0x20] sm:$0x1]
    %v443 = vperm.slane %v442, 0
    %444 = vmatpush.msra.mxu0 0.0
    %445 = vmatpush.msra.mxu0 0.0
    %446 = vmatpush.msra.mxu0 0.0
    %447 = vmatpush.msra.mxu0 0.0
    %448 = vmatpush.msra.mxu0 0.0
    %449 = vmatpush.msra.mxu0 0.0
    %450 = vmatpush.msra.mxu0 0.0
    %451 = vmatpush.msra.mxu0 0.0
    %452 = vmatpush.msra.mxu0 0.0
    %453 = vmatpush.msra.mxu0 0.0
    %454 = vmatpush.msra.mxu0 0.0
    %455 = vmatpush.msra.mxu0 0.0
    %456 = vmatpush.msra.mxu0 %v441
    %457 = vmatpush.msra.mxu0 %v440
    %458 = vmatpush.msra.mxu0 %v439
    %459 = vmatpush.msra.mxu0 %v438
    %460 = vmatmul.f32.gmra.mxu0 %v171
    %v461 = vpop.f32.mrf.mxu0
    %v462 = vadd.f32 %v443, %v461
    %463 = vmatmul.f32.gmra.mxu0 %v174
    %v464 = vpop.f32.mrf.mxu0
    %v465 = vadd.f32 %v443, %v464
    %466 = vdwg.mxu0
    %s467 = scalar_lea.vmem %s5, 360
    %v468 = vld [vmem:[%s467] sm:$0xff]
    %v469 = vld [vmem:[%s467 + $0x8] sm:$0xff]
    %v470 = vld [vmem:[%s467 + $0x10] sm:$0xff]
    %v471 = vld [vmem:[%s467 + $0x18] sm:$0xff]
    %v472 = vld [vmem:[%s467 + $0x20] sm:$0x1]
    %v473 = vperm.slane %v472, 0
    %474 = vmatpush.msra.mxu0 0.0
    %475 = vmatpush.msra.mxu0 0.0
    %476 = vmatpush.msra.mxu0 0.0
    %477 = vmatpush.msra.mxu0 0.0
    %478 = vmatpush.msra.mxu0 0.0
    %479 = vmatpush.msra.mxu0 0.0
    %480 = vmatpush.msra.mxu0 0.0
    %481 = vmatpush.msra.mxu0 0.0
    %482 = vmatpush.msra.mxu0 0.0
    %483 = vmatpush.msra.mxu0 0.0
    %484 = vmatpush.msra.mxu0 0.0
    %485 = vmatpush.msra.mxu0 0.0
    %486 = vmatpush.msra.mxu0 %v471
    %487 = vmatpush.msra.mxu0 %v470
    %488 = vmatpush.msra.mxu0 %v469
    %489 = vmatpush.msra.mxu0 %v468
    %490 = vmatmul.f32.gmra.mxu0 %v171
    %v491 = vpop.f32.mrf.mxu0
    %v492 = vadd.f32 %v473, %v491
    %493 = vmatmul.f32.gmra.mxu0 %v174
    %v494 = vpop.f32.mrf.mxu0
    %v495 = vadd.f32 %v473, %v494
    %496 = vdwg.mxu0
    %s497 = scalar_lea.vmem %s6, 8
    %v498 = vld [vmem:[%s497] sm:$0xff]
    %v500 = vsel %vm260, %v432, 0
    %v503 = vsel %vm260, %v462, 0
    %505 = vmatpush.xpose.msra.mxu0 0.0
    %506 = vmatpush.xpose.msra.mxu0 0.0
    %507 = vmatpush.xpose.msra.mxu0 0.0
    %508 = vmatpush.xpose.msra.mxu0 0.0
    %509 = vmatpush.xpose.msra.mxu0 0.0
    %510 = vmatpush.xpose.msra.mxu0 0.0
    %511 = vmatpush.xpose.msra.mxu0 0.0
    %512 = vmatpush.xpose.msra.mxu0 0.0
    %513 = vmatpush.xpose.msra.mxu0 0.0
    %514 = vmatpush.xpose.msra.mxu0 0.0
    %515 = vmatpush.xpose.msra.mxu0 0.0
    %516 = vmatpush.xpose.msra.mxu0 0.0
    %517 = vmatpush.xpose.msra.mxu0 0.0
    %518 = vmatpush.xpose.msra.mxu0 0.0
    %519 = vmatpush.xpose.msra.mxu0 0.0
    %520 = vmatpush.xpose.msra.mxu0 %v503
    %521 = vmatmul.f32.gmra.mxu0 %v500
    %v522 = vpop.f32.mrf.mxu0
    %v523 = vadd.f32 %v162, %v522
    %524 = vdwg.mxu0
    %v525 = vsel %vm260, %v523, -inf
    %526 = vmax.xlane.f32.xlu0 %v525
    %v527 = vpop.xlane.xlu0 %526
    %v528 = vsub.f32 %v523, %v527
    %v529 = vmul.f32 %v528, 1.442695
    %v530 = vpow.pop %v529
    %v531 = vsel %vm260, %v530, 0.0
    %532 = vadd.xlane.f32.xlu0 %v531
    %v533 = vpop.xlane.xlu0 %532
    %v534 = vrcp.pop %v533
    %v535 = vmul.f32 %v533, %v534
    %v536 = vsub.f32 1.0, %v535
    %v537 = vmul.f32 %v534, %v536
    %v538 = vadd.f32 %v534, %v537
    %vm539 = vweird.f32 %v533
    %vm540 = vweird.f32 %v534
    %vm541 = vmor %vm539, %vm540
    %v542 = vsel %vm541, %v534, %v538
    %v543 = vand.u32 2147483647, %v533
    %vm544 = vcmp.eq.f32.partialorder %v543, 8.507059e+37
    %v545 = vand.u32 %v533, 2147483648
    %v546 = vor.u32 1.1754944e-38, %v545
    %v547 = vsel %vm544, %v546, %v542
    %v548 = vmul.f32 %v530, %v547
    %v550 = vsel %vm260, %v548, 0
    %552 = vmatpush.msra.mxu0 0.0
    %553 = vmatpush.msra.mxu0 0.0
    %554 = vmatpush.msra.mxu0 0.0
    %555 = vmatpush.msra.mxu0 0.0
    %556 = vmatpush.msra.mxu0 0.0
    %557 = vmatpush.msra.mxu0 0.0
    %558 = vmatpush.msra.mxu0 0.0
    %559 = vmatpush.msra.mxu0 0.0
    %560 = vmatpush.msra.mxu0 0.0
    %561 = vmatpush.msra.mxu0 0.0
    %562 = vmatpush.msra.mxu0 0.0
    %563 = vmatpush.msra.mxu0 0.0
    %564 = vmatpush.msra.mxu0 0.0
    %565 = vmatpush.msra.mxu0 0.0
    %566 = vmatpush.msra.mxu0 0.0
    %567 = vmatpush.msra.mxu0 %v492
    %568 = vmatmul.f32.gmra.mxu0 %v550
    %v569 = vpop.f32.mrf.mxu0
    %v570 = vadd.f32 0.0, %v569
    %571 = vdwg.mxu0
    %v573 = vsel %vm260, %v570, 0
    %575 = vmatpush.msra.mxu0 0.0
    %576 = vmatpush.msra.mxu0 0.0
    %577 = vmatpush.msra.mxu0 0.0
    %578 = vmatpush.msra.mxu0 0.0
    %579 = vmatpush.msra.mxu0 0.0
    %580 = vmatpush.msra.mxu0 0.0
    %581 = vmatpush.msra.mxu0 0.0
    %582 = vmatpush.msra.mxu0 0.0
    %583 = vmatpush.msra.mxu0 0.0
    %584 = vmatpush.msra.mxu0 0.0
    %585 = vmatpush.msra.mxu0 0.0
    %586 = vmatpush.msra.mxu0 0.0
    %587 = vmatpush.msra.mxu0 0.0
    %588 = vmatpush.msra.mxu0 0.0
    %589 = vmatpush.msra.mxu0 0.0
    %590 = vmatpush.msra.mxu0 %v498
    %591 = vmatmul.f32.gmra.mxu0 %v573
    %v592 = vpop.f32.mrf.mxu0
    %v593 = vadd.f32 0.0, %v592
    %594 = vdwg.mxu0
    %v596 = vsel %vm260, %v332, 0
    %598 = vmatpush.msra.mxu0 0.0
    %599 = vmatpush.msra.mxu0 0.0
    %600 = vmatpush.msra.mxu0 0.0
    %601 = vmatpush.msra.mxu0 0.0
    %602 = vmatpush.msra.mxu0 0.0
    %603 = vmatpush.msra.mxu0 0.0
    %604 = vmatpush.msra.mxu0 0.0
    %605 = vmatpush.msra.mxu0 0.0
    %606 = vmatpush.msra.mxu0 0.0
    %607 = vmatpush.msra.mxu0 0.0
    %608 = vmatpush.msra.mxu0 0.0
    %609 = vmatpush.msra.mxu0 0.0
    %610 = vmatpush.msra.mxu0 0.0
    %611 = vmatpush.msra.mxu0 0.0
    %612 = vmatpush.msra.mxu0 0.0
    %613 = vmatpush.msra.mxu0 %v259
    %614 = vmatmul.f32.gmra.mxu0 %v596
    %v615 = vpop.f32.mrf.mxu0
    %v616 = vadd.f32 %v593, %v615
    %617 = vdwg.mxu0
    %v619 = vsel %vm260, %v435, 0
    %v622 = vsel %vm260, %v465, 0
    %624 = vmatpush.xpose.msra.mxu0 0.0
    %625 = vmatpush.xpose.msra.mxu0 0.0
    %626 = vmatpush.xpose.msra.mxu0 0.0
    %627 = vmatpush.xpose.msra.mxu0 0.0
    %628 = vmatpush.xpose.msra.mxu0 0.0
    %629 = vmatpush.xpose.msra.mxu0 0.0
    %630 = vmatpush.xpose.msra.mxu0 0.0
    %631 = vmatpush.xpose.msra.mxu0 0.0
    %632 = vmatpush.xpose.msra.mxu0 0.0
    %633 = vmatpush.xpose.msra.mxu0 0.0
    %634 = vmatpush.xpose.msra.mxu0 0.0
    %635 = vmatpush.xpose.msra.mxu0 0.0
    %636 = vmatpush.xpose.msra.mxu0 0.0
    %637 = vmatpush.xpose.msra.mxu0 0.0
    %638 = vmatpush.xpose.msra.mxu0 0.0
    %639 = vmatpush.xpose.msra.mxu0 %v622
    %640 = vmatmul.f32.gmra.mxu0 %v619
    %v641 = vpop.f32.mrf.mxu0
    %v642 = vadd.f32 %v163, %v641
    %643 = vdwg.mxu0
    %v644 = vsel %vm260, %v642, -inf
    %645 = vmax.xlane.f32.xlu0 %v644
    %v646 = vpop.xlane.xlu0 %645
    %v647 = vsub.f32 %v642, %v646
    %v648 = vmul.f32 %v647, 1.442695
    %v649 = vpow.pop %v648
    %v650 = vsel %vm260, %v649, 0.0
    %651 = vadd.xlane.f32.xlu0 %v650
    %v652 = vpop.xlane.xlu0 %651
    %v653 = vrcp.pop %v652
    %v654 = vmul.f32 %v652, %v653
    %v655 = vsub.f32 1.0, %v654
    %v656 = vmul.f32 %v653, %v655
    %v657 = vadd.f32 %v653, %v656
    %vm658 = vweird.f32 %v652
    %vm659 = vweird.f32 %v653
    %vm660 = vmor %vm658, %vm659
    %v661 = vsel %vm660, %v653, %v657
    %v662 = vand.u32 2147483647, %v652
    %vm663 = vcmp.eq.f32.partialorder %v662, 8.507059e+37
    %v664 = vand.u32 %v652, 2147483648
    %v665 = vor.u32 1.1754944e-38, %v664
    %v666 = vsel %vm663, %v665, %v661
    %v667 = vmul.f32 %v649, %v666
    %v669 = vsel %vm260, %v667, 0
    %671 = vmatpush.msra.mxu0 0.0
    %672 = vmatpush.msra.mxu0 0.0
    %673 = vmatpush.msra.mxu0 0.0
    %674 = vmatpush.msra.mxu0 0.0
    %675 = vmatpush.msra.mxu0 0.0
    %676 = vmatpush.msra.mxu0 0.0
    %677 = vmatpush.msra.mxu0 0.0
    %678 = vmatpush.msra.mxu0 0.0
    %679 = vmatpush.msra.mxu0 0.0
    %680 = vmatpush.msra.mxu0 0.0
    %681 = vmatpush.msra.mxu0 0.0
    %682 = vmatpush.msra.mxu0 0.0
    %683 = vmatpush.msra.mxu0 0.0
    %684 = vmatpush.msra.mxu0 0.0
    %685 = vmatpush.msra.mxu0 0.0
    %686 = vmatpush.msra.mxu0 %v495
    %687 = vmatmul.f32.gmra.mxu0 %v669
    %v688 = vpop.f32.mrf.mxu0
    %v689 = vadd.f32 0.0, %v688
    %690 = vdwg.mxu0
    %v692 = vsel %vm260, %v689, 0
    %694 = vmatpush.msra.mxu0 0.0
    %695 = vmatpush.msra.mxu0 0.0
    %696 = vmatpush.msra.mxu0 0.0
    %697 = vmatpush.msra.mxu0 0.0
    %698 = vmatpush.msra.mxu0 0.0
    %699 = vmatpush.msra.mxu0 0.0
    %700 = vmatpush.msra.mxu0 0.0
    %701 = vmatpush.msra.mxu0 0.0
    %702 = vmatpush.msra.mxu0 0.0
    %703 = vmatpush.msra.mxu0 0.0
    %704 = vmatpush.msra.mxu0 0.0
    %705 = vmatpush.msra.mxu0 0.0
    %706 = vmatpush.msra.mxu0 0.0
    %707 = vmatpush.msra.mxu0 0.0
    %708 = vmatpush.msra.mxu0 0.0
    %709 = vmatpush.msra.mxu0 %v498
    %710 = vmatmul.f32.gmra.mxu0 %v692
    %v711 = vpop.f32.mrf.mxu0
    %v712 = vadd.f32 0.0, %v711
    %713 = vdwg.mxu0
    %v715 = vsel %vm260, %v405, 0
    %717 = vmatpush.msra.mxu0 0.0
    %718 = vmatpush.msra.mxu0 0.0
    %719 = vmatpush.msra.mxu0 0.0
    %720 = vmatpush.msra.mxu0 0.0
    %721 = vmatpush.msra.mxu0 0.0
    %722 = vmatpush.msra.mxu0 0.0
    %723 = vmatpush.msra.mxu0 0.0
    %724 = vmatpush.msra.mxu0 0.0
    %725 = vmatpush.msra.mxu0 0.0
    %726 = vmatpush.msra.mxu0 0.0
    %727 = vmatpush.msra.mxu0 0.0
    %728 = vmatpush.msra.mxu0 0.0
    %729 = vmatpush.msra.mxu0 0.0
    %730 = vmatpush.msra.mxu0 0.0
    %731 = vmatpush.msra.mxu0 0.0
    %732 = vmatpush.msra.mxu0 %v259
    %733 = vmatmul.f32.gmra.mxu0 %v715
    %v734 = vpop.f32.mrf.mxu0
    %v735 = vadd.f32 %v712, %v734
    %736 = vdwg.mxu0
    %s737 = scalar_lea.vmem %s5, 80
    %v738 = vld [vmem:[%s737] sm:$0xff]
    %v739 = vld [vmem:[%s737 + $0x8] sm:$0xff]
    %v740 = vld [vmem:[%s737 + $0x10] sm:$0xff]
    %v741 = vld [vmem:[%s737 + $0x18] sm:$0xff]
    %v742 = vld [vmem:[%s737 + $0x20] sm:$0x1]
    %v743 = vperm.slane %v742, 0
    %744 = vmatpush.msra.mxu0 0.0
    %745 = vmatpush.msra.mxu0 0.0
    %746 = vmatpush.msra.mxu0 0.0
    %747 = vmatpush.msra.mxu0 0.0
    %748 = vmatpush.msra.mxu0 0.0
    %749 = vmatpush.msra.mxu0 0.0
    %750 = vmatpush.msra.mxu0 0.0
    %751 = vmatpush.msra.mxu0 0.0
    %752 = vmatpush.msra.mxu0 0.0
    %753 = vmatpush.msra.mxu0 0.0
    %754 = vmatpush.msra.mxu0 0.0
    %755 = vmatpush.msra.mxu0 0.0
    %756 = vmatpush.msra.mxu0 %v741
    %757 = vmatpush.msra.mxu0 %v740
    %758 = vmatpush.msra.mxu0 %v739
    %759 = vmatpush.msra.mxu0 %v738
    %760 = vmatmul.f32.gmra.mxu0 %v171
    %v761 = vpop.f32.mrf.mxu0
    %v762 = vadd.f32 %v743, %v761
    %763 = vmatmul.f32.gmra.mxu0 %v174
    %v764 = vpop.f32.mrf.mxu0
    %v765 = vadd.f32 %v743, %v764
    %766 = vdwg.mxu0
    %s767 = scalar_lea.vmem %s5, 240
    %v768 = vld [vmem:[%s767] sm:$0xff]
    %v769 = vld [vmem:[%s767 + $0x8] sm:$0xff]
    %v770 = vld [vmem:[%s767 + $0x10] sm:$0xff]
    %v771 = vld [vmem:[%s767 + $0x18] sm:$0xff]
    %v772 = vld [vmem:[%s767 + $0x20] sm:$0x1]
    %v773 = vperm.slane %v772, 0
    %774 = vmatpush.msra.mxu0 0.0
    %775 = vmatpush.msra.mxu0 0.0
    %776 = vmatpush.msra.mxu0 0.0
    %777 = vmatpush.msra.mxu0 0.0
    %778 = vmatpush.msra.mxu0 0.0
    %779 = vmatpush.msra.mxu0 0.0
    %780 = vmatpush.msra.mxu0 0.0
    %781 = vmatpush.msra.mxu0 0.0
    %782 = vmatpush.msra.mxu0 0.0
    %783 = vmatpush.msra.mxu0 0.0
    %784 = vmatpush.msra.mxu0 0.0
    %785 = vmatpush.msra.mxu0 0.0
    %786 = vmatpush.msra.mxu0 %v771
    %787 = vmatpush.msra.mxu0 %v770
    %788 = vmatpush.msra.mxu0 %v769
    %789 = vmatpush.msra.mxu0 %v768
    %790 = vmatmul.f32.gmra.mxu0 %v171
    %v791 = vpop.f32.mrf.mxu0
    %v792 = vadd.f32 %v773, %v791
    %793 = vmatmul.f32.gmra.mxu0 %v174
    %v794 = vpop.f32.mrf.mxu0
    %v795 = vadd.f32 %v773, %v794
    %796 = vdwg.mxu0
    %s797 = scalar_lea.vmem %s5, 400
    %v798 = vld [vmem:[%s797] sm:$0xff]
    %v799 = vld [vmem:[%s797 + $0x8] sm:$0xff]
    %v800 = vld [vmem:[%s797 + $0x10] sm:$0xff]
    %v801 = vld [vmem:[%s797 + $0x18] sm:$0xff]
    %v802 = vld [vmem:[%s797 + $0x20] sm:$0x1]
    %v803 = vperm.slane %v802, 0
    %804 = vmatpush.msra.mxu0 0.0
    %805 = vmatpush.msra.mxu0 0.0
    %806 = vmatpush.msra.mxu0 0.0
    %807 = vmatpush.msra.mxu0 0.0
    %808 = vmatpush.msra.mxu0 0.0
    %809 = vmatpush.msra.mxu0 0.0
    %810 = vmatpush.msra.mxu0 0.0
    %811 = vmatpush.msra.mxu0 0.0
    %812 = vmatpush.msra.mxu0 0.0
    %813 = vmatpush.msra.mxu0 0.0
    %814 = vmatpush.msra.mxu0 0.0
    %815 = vmatpush.msra.mxu0 0.0
    %816 = vmatpush.msra.mxu0 %v801
    %817 = vmatpush.msra.mxu0 %v800
    %818 = vmatpush.msra.mxu0 %v799
    %819 = vmatpush.msra.mxu0 %v798
    %820 = vmatmul.f32.gmra.mxu0 %v171
    %v821 = vpop.f32.mrf.mxu0
    %v822 = vadd.f32 %v803, %v821
    %823 = vmatmul.f32.gmra.mxu0 %v174
    %v824 = vpop.f32.mrf.mxu0
    %v825 = vadd.f32 %v803, %v824
    %826 = vdwg.mxu0
    %s827 = scalar_lea.vmem %s6, 16
    %v828 = vld [vmem:[%s827] sm:$0xff]
    %v830 = vsel %vm260, %v762, 0
    %v833 = vsel %vm260, %v792, 0
    %835 = vmatpush.xpose.msra.mxu0 0.0
    %836 = vmatpush.xpose.msra.mxu0 0.0
    %837 = vmatpush.xpose.msra.mxu0 0.0
    %838 = vmatpush.xpose.msra.mxu0 0.0
    %839 = vmatpush.xpose.msra.mxu0 0.0
    %840 = vmatpush.xpose.msra.mxu0 0.0
    %841 = vmatpush.xpose.msra.mxu0 0.0
    %842 = vmatpush.xpose.msra.mxu0 0.0
    %843 = vmatpush.xpose.msra.mxu0 0.0
    %844 = vmatpush.xpose.msra.mxu0 0.0
    %845 = vmatpush.xpose.msra.mxu0 0.0
    %846 = vmatpush.xpose.msra.mxu0 0.0
    %847 = vmatpush.xpose.msra.mxu0 0.0
    %848 = vmatpush.xpose.msra.mxu0 0.0
    %849 = vmatpush.xpose.msra.mxu0 0.0
    %850 = vmatpush.xpose.msra.mxu0 %v833
    %851 = vmatmul.f32.gmra.mxu0 %v830
    %v852 = vpop.f32.mrf.mxu0
    %v853 = vadd.f32 %v162, %v852
    %854 = vdwg.mxu0
    %v855 = vsel %vm260, %v853, -inf
    %856 = vmax.xlane.f32.xlu0 %v855
    %v857 = vpop.xlane.xlu0 %856
    %v858 = vsub.f32 %v853, %v857
    %v859 = vmul.f32 %v858, 1.442695
    %v860 = vpow.pop %v859
    %v861 = vsel %vm260, %v860, 0.0
    %862 = vadd.xlane.f32.xlu0 %v861
    %v863 = vpop.xlane.xlu0 %862
    %v864 = vrcp.pop %v863
    %v865 = vmul.f32 %v863, %v864
    %v866 = vsub.f32 1.0, %v865
    %v867 = vmul.f32 %v864, %v866
    %v868 = vadd.f32 %v864, %v867
    %vm869 = vweird.f32 %v863
    %vm870 = vweird.f32 %v864
    %vm871 = vmor %vm869, %vm870
    %v872 = vsel %vm871, %v864, %v868
    %v873 = vand.u32 2147483647, %v863
    %vm874 = vcmp.eq.f32.partialorder %v873, 8.507059e+37
    %v875 = vand.u32 %v863, 2147483648
    %v876 = vor.u32 1.1754944e-38, %v875
    %v877 = vsel %vm874, %v876, %v872
    %v878 = vmul.f32 %v860, %v877
    %v880 = vsel %vm260, %v878, 0
    %882 = vmatpush.msra.mxu0 0.0
    %883 = vmatpush.msra.mxu0 0.0
    %884 = vmatpush.msra.mxu0 0.0
    %885 = vmatpush.msra.mxu0 0.0
    %886 = vmatpush.msra.mxu0 0.0
    %887 = vmatpush.msra.mxu0 0.0
    %888 = vmatpush.msra.mxu0 0.0
    %889 = vmatpush.msra.mxu0 0.0
    %890 = vmatpush.msra.mxu0 0.0
    %891 = vmatpush.msra.mxu0 0.0
    %892 = vmatpush.msra.mxu0 0.0
    %893 = vmatpush.msra.mxu0 0.0
    %894 = vmatpush.msra.mxu0 0.0
    %895 = vmatpush.msra.mxu0 0.0
    %896 = vmatpush.msra.mxu0 0.0
    %897 = vmatpush.msra.mxu0 %v822
    %898 = vmatmul.f32.gmra.mxu0 %v880
    %v899 = vpop.f32.mrf.mxu0
    %v900 = vadd.f32 0.0, %v899
    %901 = vdwg.mxu0
    %v903 = vsel %vm260, %v900, 0
    %905 = vmatpush.msra.mxu0 0.0
    %906 = vmatpush.msra.mxu0 0.0
    %907 = vmatpush.msra.mxu0 0.0
    %908 = vmatpush.msra.mxu0 0.0
    %909 = vmatpush.msra.mxu0 0.0
    %910 = vmatpush.msra.mxu0 0.0
    %911 = vmatpush.msra.mxu0 0.0
    %912 = vmatpush.msra.mxu0 0.0
    %913 = vmatpush.msra.mxu0 0.0
    %914 = vmatpush.msra.mxu0 0.0
    %915 = vmatpush.msra.mxu0 0.0
    %916 = vmatpush.msra.mxu0 0.0
    %917 = vmatpush.msra.mxu0 0.0
    %918 = vmatpush.msra.mxu0 0.0
    %919 = vmatpush.msra.mxu0 0.0
    %920 = vmatpush.msra.mxu0 %v828
    %921 = vmatmul.f32.gmra.mxu0 %v903
    %v922 = vpop.f32.mrf.mxu0
    %v923 = vadd.f32 0.0, %v922
    %924 = vdwg.mxu0
    %v925 = vadd.f32 %v616, %v923
    %v927 = vsel %vm260, %v765, 0
    %v930 = vsel %vm260, %v795, 0
    %932 = vmatpush.xpose.msra.mxu0 0.0
    %933 = vmatpush.xpose.msra.mxu0 0.0
    %934 = vmatpush.xpose.msra.mxu0 0.0
    %935 = vmatpush.xpose.msra.mxu0 0.0
    %936 = vmatpush.xpose.msra.mxu0 0.0
    %937 = vmatpush.xpose.msra.mxu0 0.0
    %938 = vmatpush.xpose.msra.mxu0 0.0
    %939 = vmatpush.xpose.msra.mxu0 0.0
    %940 = vmatpush.xpose.msra.mxu0 0.0
    %941 = vmatpush.xpose.msra.mxu0 0.0
    %942 = vmatpush.xpose.msra.mxu0 0.0
    %943 = vmatpush.xpose.msra.mxu0 0.0
    %944 = vmatpush.xpose.msra.mxu0 0.0
    %945 = vmatpush.xpose.msra.mxu0 0.0
    %946 = vmatpush.xpose.msra.mxu0 0.0
    %947 = vmatpush.xpose.msra.mxu0 %v930
    %948 = vmatmul.f32.gmra.mxu0 %v927
    %v949 = vpop.f32.mrf.mxu0
    %v950 = vadd.f32 %v163, %v949
    %951 = vdwg.mxu0
    %v952 = vsel %vm260, %v950, -inf
    %953 = vmax.xlane.f32.xlu0 %v952
    %v954 = vpop.xlane.xlu0 %953
    %v955 = vsub.f32 %v950, %v954
    %v956 = vmul.f32 %v955, 1.442695
    %v957 = vpow.pop %v956
    %v958 = vsel %vm260, %v957, 0.0
    %959 = vadd.xlane.f32.xlu0 %v958
    %v960 = vpop.xlane.xlu0 %959
    %v961 = vrcp.pop %v960
    %v962 = vmul.f32 %v960, %v961
    %v963 = vsub.f32 1.0, %v962
    %v964 = vmul.f32 %v961, %v963
    %v965 = vadd.f32 %v961, %v964
    %vm966 = vweird.f32 %v960
    %vm967 = vweird.f32 %v961
    %vm968 = vmor %vm966, %vm967
    %v969 = vsel %vm968, %v961, %v965
    %v970 = vand.u32 2147483647, %v960
    %vm971 = vcmp.eq.f32.partialorder %v970, 8.507059e+37
    %v972 = vand.u32 %v960, 2147483648
    %v973 = vor.u32 1.1754944e-38, %v972
    %v974 = vsel %vm971, %v973, %v969
    %v975 = vmul.f32 %v957, %v974
    %v977 = vsel %vm260, %v975, 0
    %979 = vmatpush.msra.mxu0 0.0
    %980 = vmatpush.msra.mxu0 0.0
    %981 = vmatpush.msra.mxu0 0.0
    %982 = vmatpush.msra.mxu0 0.0
    %983 = vmatpush.msra.mxu0 0.0
    %984 = vmatpush.msra.mxu0 0.0
    %985 = vmatpush.msra.mxu0 0.0
    %986 = vmatpush.msra.mxu0 0.0
    %987 = vmatpush.msra.mxu0 0.0
    %988 = vmatpush.msra.mxu0 0.0
    %989 = vmatpush.msra.mxu0 0.0
    %990 = vmatpush.msra.mxu0 0.0
    %991 = vmatpush.msra.mxu0 0.0
    %992 = vmatpush.msra.mxu0 0.0
    %993 = vmatpush.msra.mxu0 0.0
    %994 = vmatpush.msra.mxu0 %v825
    %995 = vmatmul.f32.gmra.mxu0 %v977
    %v996 = vpop.f32.mrf.mxu0
    %v997 = vadd.f32 0.0, %v996
    %998 = vdwg.mxu0
    %v1000 = vsel %vm260, %v997, 0
    %1002 = vmatpush.msra.mxu0 0.0
    %1003 = vmatpush.msra.mxu0 0.0
    %1004 = vmatpush.msra.mxu0 0.0
    %1005 = vmatpush.msra.mxu0 0.0
    %1006 = vmatpush.msra.mxu0 0.0
    %1007 = vmatpush.msra.mxu0 0.0
    %1008 = vmatpush.msra.mxu0 0.0
    %1009 = vmatpush.msra.mxu0 0.0
    %1010 = vmatpush.msra.mxu0 0.0
    %1011 = vmatpush.msra.mxu0 0.0
    %1012 = vmatpush.msra.mxu0 0.0
    %1013 = vmatpush.msra.mxu0 0.0
    %1014 = vmatpush.msra.mxu0 0.0
    %1015 = vmatpush.msra.mxu0 0.0
    %1016 = vmatpush.msra.mxu0 0.0
    %1017 = vmatpush.msra.mxu0 %v828
    %1018 = vmatmul.f32.gmra.mxu0 %v1000
    %v1019 = vpop.f32.mrf.mxu0
    %v1020 = vadd.f32 0.0, %v1019
    %1021 = vdwg.mxu0
    %v1022 = vadd.f32 %v735, %v1020
    %s1023 = scalar_lea.vmem %s5, 120
    %v1024 = vld [vmem:[%s1023] sm:$0xff]
    %v1025 = vld [vmem:[%s1023 + $0x8] sm:$0xff]
    %v1026 = vld [vmem:[%s1023 + $0x10] sm:$0xff]
    %v1027 = vld [vmem:[%s1023 + $0x18] sm:$0xff]
    %v1028 = vld [vmem:[%s1023 + $0x20] sm:$0x1]
    %v1029 = vperm.slane %v1028, 0
    %1030 = vmatpush.msra.mxu0 0.0
    %1031 = vmatpush.msra.mxu0 0.0
    %1032 = vmatpush.msra.mxu0 0.0
    %1033 = vmatpush.msra.mxu0 0.0
    %1034 = vmatpush.msra.mxu0 0.0
    %1035 = vmatpush.msra.mxu0 0.0
    %1036 = vmatpush.msra.mxu0 0.0
    %1037 = vmatpush.msra.mxu0 0.0
    %1038 = vmatpush.msra.mxu0 0.0
    %1039 = vmatpush.msra.mxu0 0.0
    %1040 = vmatpush.msra.mxu0 0.0
    %1041 = vmatpush.msra.mxu0 0.0
    %1042 = vmatpush.msra.mxu0 %v1027
    %1043 = vmatpush.msra.mxu0 %v1026
    %1044 = vmatpush.msra.mxu0 %v1025
    %1045 = vmatpush.msra.mxu0 %v1024
    %1046 = vmatmul.f32.gmra.mxu0 %v171
    %v1047 = vpop.f32.mrf.mxu0
    %v1048 = vadd.f32 %v1029, %v1047
    %1049 = vmatmul.f32.gmra.mxu0 %v174
    %v1050 = vpop.f32.mrf.mxu0
    %v1051 = vadd.f32 %v1029, %v1050
    %1052 = vdwg.mxu0
    %s1053 = scalar_lea.vmem %s5, 280
    %v1054 = vld [vmem:[%s1053] sm:$0xff]
    %v1055 = vld [vmem:[%s1053 + $0x8] sm:$0xff]
    %v1056 = vld [vmem:[%s1053 + $0x10] sm:$0xff]
    %v1057 = vld [vmem:[%s1053 + $0x18] sm:$0xff]
    %v1058 = vld [vmem:[%s1053 + $0x20] sm:$0x1]
    %v1059 = vperm.slane %v1058, 0
    %1060 = vmatpush.msra.mxu0 0.0
    %1061 = vmatpush.msra.mxu0 0.0
    %1062 = vmatpush.msra.mxu0 0.0
    %1063 = vmatpush.msra.mxu0 0.0
    %1064 = vmatpush.msra.mxu0 0.0
    %1065 = vmatpush.msra.mxu0 0.0
    %1066 = vmatpush.msra.mxu0 0.0
    %1067 = vmatpush.msra.mxu0 0.0
    %1068 = vmatpush.msra.mxu0 0.0
    %1069 = vmatpush.msra.mxu0 0.0
    %1070 = vmatpush.msra.mxu0 0.0
    %1071 = vmatpush.msra.mxu0 0.0
    %1072 = vmatpush.msra.mxu0 %v1057
    %1073 = vmatpush.msra.mxu0 %v1056
    %1074 = vmatpush.msra.mxu0 %v1055
    %1075 = vmatpush.msra.mxu0 %v1054
    %1076 = vmatmul.f32.gmra.mxu0 %v171
    %v1077 = vpop.f32.mrf.mxu0
    %v1078 = vadd.f32 %v1059, %v1077
    %1079 = vmatmul.f32.gmra.mxu0 %v174
    %v1080 = vpop.f32.mrf.mxu0
    %v1081 = vadd.f32 %v1059, %v1080
    %1082 = vdwg.mxu0
    %s1083 = scalar_lea.vmem %s5, 440
    %v1084 = vld [vmem:[%s1083] sm:$0xff]
    %v1085 = vld [vmem:[%s1083 + $0x8] sm:$0xff]
    %v1086 = vld [vmem:[%s1083 + $0x10] sm:$0xff]
    %v1087 = vld [vmem:[%s1083 + $0x18] sm:$0xff]
    %v1088 = vld [vmem:[%s1083 + $0x20] sm:$0x1]
    %v1089 = vperm.slane %v1088, 0
    %1090 = vmatpush.msra.mxu0 0.0
    %1091 = vmatpush.msra.mxu0 0.0
    %1092 = vmatpush.msra.mxu0 0.0
    %1093 = vmatpush.msra.mxu0 0.0
    %1094 = vmatpush.msra.mxu0 0.0
    %1095 = vmatpush.msra.mxu0 0.0
    %1096 = vmatpush.msra.mxu0 0.0
    %1097 = vmatpush.msra.mxu0 0.0
    %1098 = vmatpush.msra.mxu0 0.0
    %1099 = vmatpush.msra.mxu0 0.0
    %1100 = vmatpush.msra.mxu0 0.0
    %1101 = vmatpush.msra.mxu0 0.0
    %1102 = vmatpush.msra.mxu0 %v1087
    %1103 = vmatpush.msra.mxu0 %v1086
    %1104 = vmatpush.msra.mxu0 %v1085
    %1105 = vmatpush.msra.mxu0 %v1084
    %1106 = vmatmul.f32.gmra.mxu0 %v171
    %v1107 = vpop.f32.mrf.mxu0
    %v1108 = vadd.f32 %v1089, %v1107
    %1109 = vmatmul.f32.gmra.mxu0 %v174
    %v1110 = vpop.f32.mrf.mxu0
    %v1111 = vadd.f32 %v1089, %v1110
    %1112 = vdwg.mxu0
    %s1113 = scalar_lea.vmem %s6, 24
    %v1114 = vld [vmem:[%s1113] sm:$0xff]
    %v1116 = vsel %vm260, %v1048, 0
    %v1119 = vsel %vm260, %v1078, 0
    %1121 = vmatpush.xpose.msra.mxu0 0.0
    %1122 = vmatpush.xpose.msra.mxu0 0.0
    %1123 = vmatpush.xpose.msra.mxu0 0.0
    %1124 = vmatpush.xpose.msra.mxu0 0.0
    %1125 = vmatpush.xpose.msra.mxu0 0.0
    %1126 = vmatpush.xpose.msra.mxu0 0.0
    %1127 = vmatpush.xpose.msra.mxu0 0.0
    %1128 = vmatpush.xpose.msra.mxu0 0.0
    %1129 = vmatpush.xpose.msra.mxu0 0.0
    %1130 = vmatpush.xpose.msra.mxu0 0.0
    %1131 = vmatpush.xpose.msra.mxu0 0.0
    %1132 = vmatpush.xpose.msra.mxu0 0.0
    %1133 = vmatpush.xpose.msra.mxu0 0.0
    %1134 = vmatpush.xpose.msra.mxu0 0.0
    %1135 = vmatpush.xpose.msra.mxu0 0.0
    %1136 = vmatpush.xpose.msra.mxu0 %v1119
    %1137 = vmatmul.f32.gmra.mxu0 %v1116
    %v1138 = vpop.f32.mrf.mxu0
    %v1139 = vadd.f32 %v162, %v1138
    %1140 = vdwg.mxu0
    %v1141 = vsel %vm260, %v1139, -inf
    %1142 = vmax.xlane.f32.xlu0 %v1141
    %v1143 = vpop.xlane.xlu0 %1142
    %v1144 = vsub.f32 %v1139, %v1143
    %v1145 = vmul.f32 %v1144, 1.442695
    %v1146 = vpow.pop %v1145
    %v1147 = vsel %vm260, %v1146, 0.0
    %1148 = vadd.xlane.f32.xlu0 %v1147
    %v1149 = vpop.xlane.xlu0 %1148
    %v1150 = vrcp.pop %v1149
    %v1151 = vmul.f32 %v1149, %v1150
    %v1152 = vsub.f32 1.0, %v1151
    %v1153 = vmul.f32 %v1150, %v1152
    %v1154 = vadd.f32 %v1150, %v1153
    %vm1155 = vweird.f32 %v1149
    %vm1156 = vweird.f32 %v1150
    %vm1157 = vmor %vm1155, %vm1156
    %v1158 = vsel %vm1157, %v1150, %v1154
    %v1159 = vand.u32 2147483647, %v1149
    %vm1160 = vcmp.eq.f32.partialorder %v1159, 8.507059e+37
    %v1161 = vand.u32 %v1149, 2147483648
    %v1162 = vor.u32 1.1754944e-38, %v1161
    %v1163 = vsel %vm1160, %v1162, %v1158
    %v1164 = vmul.f32 %v1146, %v1163
    %v1166 = vsel %vm260, %v1164, 0
    %1168 = vmatpush.msra.mxu0 0.0
    %1169 = vmatpush.msra.mxu0 0.0
    %1170 = vmatpush.msra.mxu0 0.0
    %1171 = vmatpush.msra.mxu0 0.0
    %1172 = vmatpush.msra.mxu0 0.0
    %1173 = vmatpush.msra.mxu0 0.0
    %1174 = vmatpush.msra.mxu0 0.0
    %1175 = vmatpush.msra.mxu0 0.0
    %1176 = vmatpush.msra.mxu0 0.0
    %1177 = vmatpush.msra.mxu0 0.0
    %1178 = vmatpush.msra.mxu0 0.0
    %1179 = vmatpush.msra.mxu0 0.0
    %1180 = vmatpush.msra.mxu0 0.0
    %1181 = vmatpush.msra.mxu0 0.0
    %1182 = vmatpush.msra.mxu0 0.0
    %1183 = vmatpush.msra.mxu0 %v1108
    %1184 = vmatmul.f32.gmra.mxu0 %v1166
    %v1185 = vpop.f32.mrf.mxu0
    %v1186 = vadd.f32 0.0, %v1185
    %1187 = vdwg.mxu0
    %v1189 = vsel %vm260, %v1186, 0
    %1191 = vmatpush.msra.mxu0 0.0
    %1192 = vmatpush.msra.mxu0 0.0
    %1193 = vmatpush.msra.mxu0 0.0
    %1194 = vmatpush.msra.mxu0 0.0
    %1195 = vmatpush.msra.mxu0 0.0
    %1196 = vmatpush.msra.mxu0 0.0
    %1197 = vmatpush.msra.mxu0 0.0
    %1198 = vmatpush.msra.mxu0 0.0
    %1199 = vmatpush.msra.mxu0 0.0
    %1200 = vmatpush.msra.mxu0 0.0
    %1201 = vmatpush.msra.mxu0 0.0
    %1202 = vmatpush.msra.mxu0 0.0
    %1203 = vmatpush.msra.mxu0 0.0
    %1204 = vmatpush.msra.mxu0 0.0
    %1205 = vmatpush.msra.mxu0 0.0
    %1206 = vmatpush.msra.mxu0 %v1114
    %1207 = vmatmul.f32.gmra.mxu0 %v1189
    %v1208 = vpop.f32.mrf.mxu0
    %v1209 = vadd.f32 0.0, %v1208
    %1210 = vdwg.mxu0
    %v1211 = vadd.f32 %v925, %v1209
    %v1213 = vsel %vm260, %v1051, 0
    %v1216 = vsel %vm260, %v1081, 0
    %1218 = vmatpush.xpose.msra.mxu0 0.0
    %1219 = vmatpush.xpose.msra.mxu0 0.0
    %1220 = vmatpush.xpose.msra.mxu0 0.0
    %1221 = vmatpush.xpose.msra.mxu0 0.0
    %1222 = vmatpush.xpose.msra.mxu0 0.0
    %1223 = vmatpush.xpose.msra.mxu0 0.0
    %1224 = vmatpush.xpose.msra.mxu0 0.0
    %1225 = vmatpush.xpose.msra.mxu0 0.0
    %1226 = vmatpush.xpose.msra.mxu0 0.0
    %1227 = vmatpush.xpose.msra.mxu0 0.0
    %1228 = vmatpush.xpose.msra.mxu0 0.0
    %1229 = vmatpush.xpose.msra.mxu0 0.0
    %1230 = vmatpush.xpose.msra.mxu0 0.0
    %1231 = vmatpush.xpose.msra.mxu0 0.0
    %1232 = vmatpush.xpose.msra.mxu0 0.0
    %1233 = vmatpush.xpose.msra.mxu0 %v1216
    %1234 = vmatmul.f32.gmra.mxu0 %v1213
    %v1235 = vpop.f32.mrf.mxu0
    %v1236 = vadd.f32 %v163, %v1235
    %1237 = vdwg.mxu0
    %v1238 = vsel %vm260, %v1236, -inf
    %1239 = vmax.xlane.f32.xlu0 %v1238
    %v1240 = vpop.xlane.xlu0 %1239
    %v1241 = vsub.f32 %v1236, %v1240
    %v1242 = vmul.f32 %v1241, 1.442695
    %v1243 = vpow.pop %v1242
    %v1244 = vsel %vm260, %v1243, 0.0
    %1245 = vadd.xlane.f32.xlu0 %v1244
    %v1246 = vpop.xlane.xlu0 %1245
    %v1247 = vrcp.pop %v1246
    %v1248 = vmul.f32 %v1246, %v1247
    %v1249 = vsub.f32 1.0, %v1248
    %v1250 = vmul.f32 %v1247, %v1249
    %v1251 = vadd.f32 %v1247, %v1250
    %vm1252 = vweird.f32 %v1246
    %vm1253 = vweird.f32 %v1247
    %vm1254 = vmor %vm1252, %vm1253
    %v1255 = vsel %vm1254, %v1247, %v1251
    %v1256 = vand.u32 2147483647, %v1246
    %vm1257 = vcmp.eq.f32.partialorder %v1256, 8.507059e+37
    %v1258 = vand.u32 %v1246, 2147483648
    %v1259 = vor.u32 1.1754944e-38, %v1258
    %v1260 = vsel %vm1257, %v1259, %v1255
    %v1261 = vmul.f32 %v1243, %v1260
    %v1263 = vsel %vm260, %v1261, 0
    %1265 = vmatpush.msra.mxu0 0.0
    %1266 = vmatpush.msra.mxu0 0.0
    %1267 = vmatpush.msra.mxu0 0.0
    %1268 = vmatpush.msra.mxu0 0.0
    %1269 = vmatpush.msra.mxu0 0.0
    %1270 = vmatpush.msra.mxu0 0.0
    %1271 = vmatpush.msra.mxu0 0.0
    %1272 = vmatpush.msra.mxu0 0.0
    %1273 = vmatpush.msra.mxu0 0.0
    %1274 = vmatpush.msra.mxu0 0.0
    %1275 = vmatpush.msra.mxu0 0.0
    %1276 = vmatpush.msra.mxu0 0.0
    %1277 = vmatpush.msra.mxu0 0.0
    %1278 = vmatpush.msra.mxu0 0.0
    %1279 = vmatpush.msra.mxu0 0.0
    %1280 = vmatpush.msra.mxu0 %v1111
    %1281 = vmatmul.f32.gmra.mxu0 %v1263
    %v1282 = vpop.f32.mrf.mxu0
    %v1283 = vadd.f32 0.0, %v1282
    %1284 = vdwg.mxu0
    %v1286 = vsel %vm260, %v1283, 0
    %1288 = vmatpush.msra.mxu0 0.0
    %1289 = vmatpush.msra.mxu0 0.0
    %1290 = vmatpush.msra.mxu0 0.0
    %1291 = vmatpush.msra.mxu0 0.0
    %1292 = vmatpush.msra.mxu0 0.0
    %1293 = vmatpush.msra.mxu0 0.0
    %1294 = vmatpush.msra.mxu0 0.0
    %1295 = vmatpush.msra.mxu0 0.0
    %1296 = vmatpush.msra.mxu0 0.0
    %1297 = vmatpush.msra.mxu0 0.0
    %1298 = vmatpush.msra.mxu0 0.0
    %1299 = vmatpush.msra.mxu0 0.0
    %1300 = vmatpush.msra.mxu0 0.0
    %1301 = vmatpush.msra.mxu0 0.0
    %1302 = vmatpush.msra.mxu0 0.0
    %1303 = vmatpush.msra.mxu0 %v1114
    %1304 = vmatmul.f32.gmra.mxu0 %v1286
    %v1305 = vpop.f32.mrf.mxu0
    %v1306 = vadd.f32 0.0, %v1305
    %1307 = vdwg.mxu0
    %v1308 = vadd.f32 %v1022, %v1306
    %v1309 = vld [vmem:[%s7] sm:$0x1]
    %v1310 = vperm.slane %v1309, 0
    %v1311 = vadd.f32 %v1211, %v1310
    %v1312 = vadd.f32 %v1308, %v1310
    %v1313 = vadd.f32 %v1311, %v156
    %v1314 = vadd.f32 %v1312, %v157
    %v1315 = vld [vmem:[%s7 + $0x1] sm:$0x1]
    %v1316 = vld [vmem:[%s7 + $0x2] sm:$0x1]
    %v1317 = vsel %vm100, %v1313, 0.0
    %1318 = vadd.xlane.f32.xlu0 %v1317
    %v1319 = vpop.xlane.xlu0 %1318
    %v1320 = vsel %vm100, %v1314, 0.0
    %1321 = vadd.xlane.f32.xlu0 %v1320
    %v1322 = vpop.xlane.xlu0 %1321
    %v1323 = vmul.f32 %v1319, %v113
    %v1324 = vmul.f32 %v1322, %v113
    %v1325 = vsub.f32 %v1313, %v1323
    %v1326 = vsub.f32 %v1314, %v1324
    %v1327 = vmul.f32 %v1325, %v1325
    %v1328 = vmul.f32 %v1326, %v1326
    %v1329 = vsel %vm100, %v1327, 0.0
    %1330 = vadd.xlane.f32.xlu0 %v1329
    %v1331 = vpop.xlane.xlu0 %1330
    %v1332 = vsel %vm100, %v1328, 0.0
    %1333 = vadd.xlane.f32.xlu0 %v1332
    %v1334 = vpop.xlane.xlu0 %1333
    %v1335 = vmul.f32 %v1331, %v113
    %v1336 = vmul.f32 %v1334, %v113
    %v1337 = vadd.f32 %v1335, 1e-12
    %v1338 = vadd.f32 %v1336, 1e-12
    %v1339 = vrsqrt.pop %v1337
    %v1340 = vmul.f32 %v1339, %v1337
    %v1341 = vmul.f32 %v1340, %v1339
    %v1342 = vmul.f32 0.5, %v1341
    %v1343 = vsub.f32 1.5, %v1342
    %v1344 = vmul.f32 %v1339, %v1343
    %vm1345 = vweird.f32 %v1337
    %vm1346 = vweird.f32 %v1339
    %vm1347 = vmor %vm1345, %vm1346
    %v1348 = vsel %vm1347, %v1339, %v1344
    %v1349 = vrsqrt.pop %v1338
    %v1350 = vmul.f32 %v1349, %v1338
    %v1351 = vmul.f32 %v1350, %v1349
    %v1352 = vmul.f32 0.5, %v1351
    %v1353 = vsub.f32 1.5, %v1352
    %v1354 = vmul.f32 %v1349, %v1353
    %vm1355 = vweird.f32 %v1338
    %vm1356 = vweird.f32 %v1349
    %vm1357 = vmor %vm1355, %vm1356
    %v1358 = vsel %vm1357, %v1349, %v1354
    %v1359 = vmul.f32 %v1325, %v1348
    %v1360 = vmul.f32 %v1326, %v1358
    %v1361 = vperm.slane %v1315, 0
    %v1362 = vmul.f32 %v1359, %v1361
    %v1363 = vmul.f32 %v1360, %v1361
    %v1364 = vperm.slane %v1316, 0
    %v1365 = vadd.f32 %v1362, %v1364
    %v1366 = vadd.f32 %v1363, %v1364
    %v1367 = vld [vmem:[%s8] sm:$0xff]
    %v1368 = vld [vmem:[%s8 + $0x8] sm:$0xff]
    %v1369 = vld [vmem:[%s8 + $0x10] sm:$0xff]
    %v1370 = vld [vmem:[%s8 + $0x18] sm:$0xff]
    %v1371 = vld [vmem:[%s8 + $0x20] sm:$0x1]
    %v1372 = vperm.slane %v1371, 0
    %v1374 = vsel %vm100, %v1365, 0
    %v1377 = vsel %vm100, %v1366, 0
    %1379 = vmatpush.msra.mxu0 0.0
    %1380 = vmatpush.msra.mxu0 0.0
    %1381 = vmatpush.msra.mxu0 0.0
    %1382 = vmatpush.msra.mxu0 0.0
    %1383 = vmatpush.msra.mxu0 0.0
    %1384 = vmatpush.msra.mxu0 0.0
    %1385 = vmatpush.msra.mxu0 0.0
    %1386 = vmatpush.msra.mxu0 0.0
    %1387 = vmatpush.msra.mxu0 0.0
    %1388 = vmatpush.msra.mxu0 0.0
    %1389 = vmatpush.msra.mxu0 0.0
    %1390 = vmatpush.msra.mxu0 0.0
    %1391 = vmatpush.msra.mxu0 %v1370
    %1392 = vmatpush.msra.mxu0 %v1369
    %1393 = vmatpush.msra.mxu0 %v1368
    %1394 = vmatpush.msra.mxu0 %v1367
    %1395 = vmatmul.f32.gmra.mxu0 %v1374
    %v1396 = vpop.f32.mrf.mxu0
    %v1397 = vadd.f32 %v1372, %v1396
    %1398 = vmatmul.f32.gmra.mxu0 %v1377
    %v1399 = vpop.f32.mrf.mxu0
    %v1400 = vadd.f32 %v1372, %v1399
    %1401 = vdwg.mxu0
    %v1402 = vmul.f32 %v1397, 0.5
    %v1403 = vmul.f32 %v1400, 0.5
    %v1404 = vmul.f32 %v1397, 0.044715
    %v1405 = vmul.f32 %v1400, 0.044715
    %v1406 = vmul.f32 %v1404, %v1397
    %v1407 = vmul.f32 %v1405, %v1400
    %v1408 = vmul.f32 %v1406, %v1397
    %v1409 = vmul.f32 %v1407, %v1400
    %v1410 = vadd.f32 %v1397, %v1408
    %v1411 = vadd.f32 %v1400, %v1409
    %v1412 = vmul.f32 %v1410, 0.7978846
    %v1413 = vmul.f32 %v1411, 0.7978846
    %v1414 = vtanh.pop %v1412
    %v1415 = vtanh.pop %v1413
    %v1416 = vadd.f32 %v1414, 1.0
    %v1417 = vadd.f32 %v1415, 1.0
    %v1418 = vmul.f32 %v1402, %v1416
    %v1419 = vmul.f32 %v1403, %v1417
    %v1420 = vld [vmem:[%s9] sm:$0xff]
    %v1421 = vld [vmem:[%s9 + $0x8] sm:$0xff]
    %v1422 = vld [vmem:[%s9 + $0x10] sm:$0xff]
    %v1423 = vld [vmem:[%s9 + $0x18] sm:$0xff]
    %v1424 = vld [vmem:[%s9 + $0x20] sm:$0xff]
    %v1425 = vld [vmem:[%s9 + $0x28] sm:$0xff]
    %v1426 = vld [vmem:[%s9 + $0x30] sm:$0xff]
    %v1427 = vld [vmem:[%s9 + $0x38] sm:$0xff]
    %v1428 = vld [vmem:[%s9 + $0x40] sm:$0x1]
    %v1429 = vperm.slane %v1428, 0
    %vm1430 = vcmask 523264
    %v1432 = vsel %vm1430, %v1418, 0
    %v1435 = vsel %vm1430, %v1419, 0
    %1437 = vmatpush.msra.mxu0 0.0
    %1438 = vmatpush.msra.mxu0 0.0
    %1439 = vmatpush.msra.mxu0 0.0
    %1440 = vmatpush.msra.mxu0 0.0
    %1441 = vmatpush.msra.mxu0 0.0
    %1442 = vmatpush.msra.mxu0 0.0
    %1443 = vmatpush.msra.mxu0 0.0
    %1444 = vmatpush.msra.mxu0 0.0
    %1445 = vmatpush.msra.mxu0 %v1427
    %1446 = vmatpush.msra.mxu0 %v1426
    %1447 = vmatpush.msra.mxu0 %v1425
    %1448 = vmatpush.msra.mxu0 %v1424
    %1449 = vmatpush.msra.mxu0 %v1423
    %1450 = vmatpush.msra.mxu0 %v1422
    %1451 = vmatpush.msra.mxu0 %v1421
    %1452 = vmatpush.msra.mxu0 %v1420
    %1453 = vmatmul.f32.gmra.mxu0 %v1432
    %v1454 = vpop.f32.mrf.mxu0
    %v1455 = vadd.f32 %v1429, %v1454
    %1456 = vmatmul.f32.gmra.mxu0 %v1435
    %v1457 = vpop.f32.mrf.mxu0
    %v1458 = vadd.f32 %v1429, %v1457
    %1459 = vdwg.mxu0
    %v1460 = vadd.f32 %v1455, %v1365
    %v1461 = vadd.f32 %v1458, %v1366
    %v1462 = vld [vmem:[%s7 + $0x3] sm:$0x1]
    %v1463 = vld [vmem:[%s7 + $0x4] sm:$0x1]
    %v1464 = vsel %vm100, %v1460, 0.0
    %1465 = vadd.xlane.f32.xlu0 %v1464
    %v1466 = vpop.xlane.xlu0 %1465
    %v1467 = vsel %vm100, %v1461, 0.0
    %1468 = vadd.xlane.f32.xlu0 %v1467
    %v1469 = vpop.xlane.xlu0 %1468
    %v1470 = vmul.f32 %v1466, %v113
    %v1471 = vmul.f32 %v1469, %v113
    %v1472 = vsub.f32 %v1460, %v1470
    %v1473 = vsub.f32 %v1461, %v1471
    %v1474 = vmul.f32 %v1472, %v1472
    %v1475 = vmul.f32 %v1473, %v1473
    %v1476 = vsel %vm100, %v1474, 0.0
    %1477 = vadd.xlane.f32.xlu0 %v1476
    %v1478 = vpop.xlane.xlu0 %1477
    %v1479 = vsel %vm100, %v1475, 0.0
    %1480 = vadd.xlane.f32.xlu0 %v1479
    %v1481 = vpop.xlane.xlu0 %1480
    %v1482 = vmul.f32 %v1478, %v113
    %v1483 = vmul.f32 %v1481, %v113
    %v1484 = vadd.f32 %v1482, 1e-12
    %v1485 = vadd.f32 %v1483, 1e-12
    %v1486 = vrsqrt.pop %v1484
    %v1487 = vmul.f32 %v1486, %v1484
    %v1488 = vmul.f32 %v1487, %v1486
    %v1489 = vmul.f32 0.5, %v1488
    %v1490 = vsub.f32 1.5, %v1489
    %v1491 = vmul.f32 %v1486, %v1490
    %vm1492 = vweird.f32 %v1484
    %vm1493 = vweird.f32 %v1486
    %vm1494 = vmor %vm1492, %vm1493
    %v1495 = vsel %vm1494, %v1486, %v1491
    %v1496 = vrsqrt.pop %v1485
    %v1497 = vmul.f32 %v1496, %v1485
    %v1498 = vmul.f32 %v1497, %v1496
    %v1499 = vmul.f32 0.5, %v1498
    %v1500 = vsub.f32 1.5, %v1499
    %v1501 = vmul.f32 %v1496, %v1500
    %vm1502 = vweird.f32 %v1485
    %vm1503 = vweird.f32 %v1496
    %vm1504 = vmor %vm1502, %vm1503
    %v1505 = vsel %vm1504, %v1496, %v1501
    %v1506 = vmul.f32 %v1472, %v1495
    %v1507 = vmul.f32 %v1473, %v1505
    %v1508 = vperm.slane %v1462, 0
    %v1509 = vmul.f32 %v1506, %v1508
    %v1510 = vmul.f32 %v1507, %v1508
    %v1511 = vperm.slane %v1463, 0
    %v1512 = vadd.f32 %v1509, %v1511
    %v1513 = vadd.f32 %v1510, %v1511
    %s1514 = scalar_lea.vmem %s5, 480
    %v1515 = vld [vmem:[%s1514] sm:$0xff]
    %v1516 = vld [vmem:[%s1514 + $0x8] sm:$0xff]
    %v1517 = vld [vmem:[%s1514 + $0x10] sm:$0xff]
    %v1518 = vld [vmem:[%s1514 + $0x18] sm:$0xff]
    %v1519 = vld [vmem:[%s1514 + $0x20] sm:$0x1]
    %v1520 = vperm.slane %v1519, 0
    %v1522 = vsel %vm100, %v1512, 0
    %v1525 = vsel %vm100, %v1513, 0
    %1527 = vmatpush.msra.mxu0 0.0
    %1528 = vmatpush.msra.mxu0 0.0
    %1529 = vmatpush.msra.mxu0 0.0
    %1530 = vmatpush.msra.mxu0 0.0
    %1531 = vmatpush.msra.mxu0 0.0
    %1532 = vmatpush.msra.mxu0 0.0
    %1533 = vmatpush.msra.mxu0 0.0
    %1534 = vmatpush.msra.mxu0 0.0
    %1535 = vmatpush.msra.mxu0 0.0
    %1536 = vmatpush.msra.mxu0 0.0
    %1537 = vmatpush.msra.mxu0 0.0
    %1538 = vmatpush.msra.mxu0 0.0
    %1539 = vmatpush.msra.mxu0 %v1518
    %1540 = vmatpush.msra.mxu0 %v1517
    %1541 = vmatpush.msra.mxu0 %v1516
    %1542 = vmatpush.msra.mxu0 %v1515
    %1543 = vmatmul.f32.gmra.mxu0 %v1522
    %v1544 = vpop.f32.mrf.mxu0
    %v1545 = vadd.f32 %v1520, %v1544
    %1546 = vmatmul.f32.gmra.mxu0 %v1525
    %v1547 = vpop.f32.mrf.mxu0
    %v1548 = vadd.f32 %v1520, %v1547
    %1549 = vdwg.mxu0
    %s1550 = scalar_lea.vmem %s5, 640
    %v1551 = vld [vmem:[%s1550] sm:$0xff]
    %v1552 = vld [vmem:[%s1550 + $0x8] sm:$0xff]
    %v1553 = vld [vmem:[%s1550 + $0x10] sm:$0xff]
    %v1554 = vld [vmem:[%s1550 + $0x18] sm:$0xff]
    %v1555 = vld [vmem:[%s1550 + $0x20] sm:$0x1]
    %v1556 = vperm.slane %v1555, 0
    %1557 = vmatpush.msra.mxu0 0.0
    %1558 = vmatpush.msra.mxu0 0.0
    %1559 = vmatpush.msra.mxu0 0.0
    %1560 = vmatpush.msra.mxu0 0.0
    %1561 = vmatpush.msra.mxu0 0.0
    %1562 = vmatpush.msra.mxu0 0.0
    %1563 = vmatpush.msra.mxu0 0.0
    %1564 = vmatpush.msra.mxu0 0.0
    %1565 = vmatpush.msra.mxu0 0.0
    %1566 = vmatpush.msra.mxu0 0.0
    %1567 = vmatpush.msra.mxu0 0.0
    %1568 = vmatpush.msra.mxu0 0.0
    %1569 = vmatpush.msra.mxu0 %v1554
    %1570 = vmatpush.msra.mxu0 %v1553
    %1571 = vmatpush.msra.mxu0 %v1552
    %1572 = vmatpush.msra.mxu0 %v1551
    %1573 = vmatmul.f32.gmra.mxu0 %v1522
    %v1574 = vpop.f32.mrf.mxu0
    %v1575 = vadd.f32 %v1556, %v1574
    %1576 = vmatmul.f32.gmra.mxu0 %v1525
    %v1577 = vpop.f32.mrf.mxu0
    %v1578 = vadd.f32 %v1556, %v1577
    %1579 = vdwg.mxu0
    %s1580 = scalar_lea.vmem %s5, 800
    %v1581 = vld [vmem:[%s1580] sm:$0xff]
    %v1582 = vld [vmem:[%s1580 + $0x8] sm:$0xff]
    %v1583 = vld [vmem:[%s1580 + $0x10] sm:$0xff]
    %v1584 = vld [vmem:[%s1580 + $0x18] sm:$0xff]
    %v1585 = vld [vmem:[%s1580 + $0x20] sm:$0x1]
    %v1586 = vperm.slane %v1585, 0
    %1587 = vmatpush.msra.mxu0 0.0
    %1588 = vmatpush.msra.mxu0 0.0
    %1589 = vmatpush.msra.mxu0 0.0
    %1590 = vmatpush.msra.mxu0 0.0
    %1591 = vmatpush.msra.mxu0 0.0
    %1592 = vmatpush.msra.mxu0 0.0
    %1593 = vmatpush.msra.mxu0 0.0
    %1594 = vmatpush.msra.mxu0 0.0
    %1595 = vmatpush.msra.mxu0 0.0
    %1596 = vmatpush.msra.mxu0 0.0
    %1597 = vmatpush.msra.mxu0 0.0
    %1598 = vmatpush.msra.mxu0 0.0
    %1599 = vmatpush.msra.mxu0 %v1584
    %1600 = vmatpush.msra.mxu0 %v1583
    %1601 = vmatpush.msra.mxu0 %v1582
    %1602 = vmatpush.msra.mxu0 %v1581
    %1603 = vmatmul.f32.gmra.mxu0 %v1522
    %v1604 = vpop.f32.mrf.mxu0
    %v1605 = vadd.f32 %v1586, %v1604
    %1606 = vmatmul.f32.gmra.mxu0 %v1525
    %v1607 = vpop.f32.mrf.mxu0
    %v1608 = vadd.f32 %v1586, %v1607
    %1609 = vdwg.mxu0
    %s1610 = scalar_lea.vmem %s6, 32
    %v1611 = vld [vmem:[%s1610] sm:$0xff]
    %v1613 = vsel %vm260, %v1545, 0
    %v1616 = vsel %vm260, %v1575, 0
    %1618 = vmatpush.xpose.msra.mxu0 0.0
    %1619 = vmatpush.xpose.msra.mxu0 0.0
    %1620 = vmatpush.xpose.msra.mxu0 0.0
    %1621 = vmatpush.xpose.msra.mxu0 0.0
    %1622 = vmatpush.xpose.msra.mxu0 0.0
    %1623 = vmatpush.xpose.msra.mxu0 0.0
    %1624 = vmatpush.xpose.msra.mxu0 0.0
    %1625 = vmatpush.xpose.msra.mxu0 0.0
    %1626 = vmatpush.xpose.msra.mxu0 0.0
    %1627 = vmatpush.xpose.msra.mxu0 0.0
    %1628 = vmatpush.xpose.msra.mxu0 0.0
    %1629 = vmatpush.xpose.msra.mxu0 0.0
    %1630 = vmatpush.xpose.msra.mxu0 0.0
    %1631 = vmatpush.xpose.msra.mxu0 0.0
    %1632 = vmatpush.xpose.msra.mxu0 0.0
    %1633 = vmatpush.xpose.msra.mxu0 %v1616
    %1634 = vmatmul.f32.gmra.mxu0 %v1613
    %v1635 = vpop.f32.mrf.mxu0
    %v1636 = vadd.f32 %v162, %v1635
    %1637 = vdwg.mxu0
    %v1638 = vsel %vm260, %v1636, -inf
    %1639 = vmax.xlane.f32.xlu0 %v1638
    %v1640 = vpop.xlane.xlu0 %1639
    %v1641 = vsub.f32 %v1636, %v1640
    %v1642 = vmul.f32 %v1641, 1.442695
    %v1643 = vpow.pop %v1642
    %v1644 = vsel %vm260, %v1643, 0.0
    %1645 = vadd.xlane.f32.xlu0 %v1644
    %v1646 = vpop.xlane.xlu0 %1645
    %v1647 = vrcp.pop %v1646
    %v1648 = vmul.f32 %v1646, %v1647
    %v1649 = vsub.f32 1.0, %v1648
    %v1650 = vmul.f32 %v1647, %v1649
    %v1651 = vadd.f32 %v1647, %v1650
    %vm1652 = vweird.f32 %v1646
    %vm1653 = vweird.f32 %v1647
    %vm1654 = vmor %vm1652, %vm1653
    %v1655 = vsel %vm1654, %v1647, %v1651
    %v1656 = vand.u32 2147483647, %v1646
    %vm1657 = vcmp.eq.f32.partialorder %v1656, 8.507059e+37
    %v1658 = vand.u32 %v1646, 2147483648
    %v1659 = vor.u32 1.1754944e-38, %v1658
    %v1660 = vsel %vm1657, %v1659, %v1655
    %v1661 = vmul.f32 %v1643, %v1660
    %v1663 = vsel %vm260, %v1661, 0
    %1665 = vmatpush.msra.mxu0 0.0
    %1666 = vmatpush.msra.mxu0 0.0
    %1667 = vmatpush.msra.mxu0 0.0
    %1668 = vmatpush.msra.mxu0 0.0
    %1669 = vmatpush.msra.mxu0 0.0
    %1670 = vmatpush.msra.mxu0 0.0
    %1671 = vmatpush.msra.mxu0 0.0
    %1672 = vmatpush.msra.mxu0 0.0
    %1673 = vmatpush.msra.mxu0 0.0
    %1674 = vmatpush.msra.mxu0 0.0
    %1675 = vmatpush.msra.mxu0 0.0
    %1676 = vmatpush.msra.mxu0 0.0
    %1677 = vmatpush.msra.mxu0 0.0
    %1678 = vmatpush.msra.mxu0 0.0
    %1679 = vmatpush.msra.mxu0 0.0
    %1680 = vmatpush.msra.mxu0 %v1605
    %1681 = vmatmul.f32.gmra.mxu0 %v1663
    %v1682 = vpop.f32.mrf.mxu0
    %v1683 = vadd.f32 0.0, %v1682
    %1684 = vdwg.mxu0
    %v1686 = vsel %vm260, %v1548, 0
    %v1689 = vsel %vm260, %v1578, 0
    %1691 = vmatpush.xpose.msra.mxu0 0.0
    %1692 = vmatpush.xpose.msra.mxu0 0.0
    %1693 = vmatpush.xpose.msra.mxu0 0.0
    %1694 = vmatpush.xpose.msra.mxu0 0.0
    %1695 = vmatpush.xpose.msra.mxu0 0.0
    %1696 = vmatpush.xpose.msra.mxu0 0.0
    %1697 = vmatpush.xpose.msra.mxu0 0.0
    %1698 = vmatpush.xpose.msra.mxu0 0.0
    %1699 = vmatpush.xpose.msra.mxu0 0.0
    %1700 = vmatpush.xpose.msra.mxu0 0.0
    %1701 = vmatpush.xpose.msra.mxu0 0.0
    %1702 = vmatpush.xpose.msra.mxu0 0.0
    %1703 = vmatpush.xpose.msra.mxu0 0.0
    %1704 = vmatpush.xpose.msra.mxu0 0.0
    %1705 = vmatpush.xpose.msra.mxu0 0.0
    %1706 = vmatpush.xpose.msra.mxu0 %v1689
    %1707 = vmatmul.f32.gmra.mxu0 %v1686
    %v1708 = vpop.f32.mrf.mxu0
    %v1709 = vadd.f32 %v163, %v1708
    %1710 = vdwg.mxu0
    %v1711 = vsel %vm260, %v1709, -inf
    %1712 = vmax.xlane.f32.xlu0 %v1711
    %v1713 = vpop.xlane.xlu0 %1712
    %v1714 = vsub.f32 %v1709, %v1713
    %v1715 = vmul.f32 %v1714, 1.442695
    %v1716 = vpow.pop %v1715
    %v1717 = vsel %vm260, %v1716, 0.0
    %1718 = vadd.xlane.f32.xlu0 %v1717
    %v1719 = vpop.xlane.xlu0 %1718
    %v1720 = vrcp.pop %v1719
    %v1721 = vmul.f32 %v1719, %v1720
    %v1722 = vsub.f32 1.0, %v1721
    %v1723 = vmul.f32 %v1720, %v1722
    %v1724 = vadd.f32 %v1720, %v1723
    %vm1725 = vweird.f32 %v1719
    %vm1726 = vweird.f32 %v1720
    %vm1727 = vmor %vm1725, %vm1726
    %v1728 = vsel %vm1727, %v1720, %v1724
    %v1729 = vand.u32 2147483647, %v1719
    %vm1730 = vcmp.eq.f32.partialorder %v1729, 8.507059e+37
    %v1731 = vand.u32 %v1719, 2147483648
    %v1732 = vor.u32 1.1754944e-38, %v1731
    %v1733 = vsel %vm1730, %v1732, %v1728
    %v1734 = vmul.f32 %v1716, %v1733
    %v1736 = vsel %vm260, %v1734, 0
    %1738 = vmatpush.msra.mxu0 0.0
    %1739 = vmatpush.msra.mxu0 0.0
    %1740 = vmatpush.msra.mxu0 0.0
    %1741 = vmatpush.msra.mxu0 0.0
    %1742 = vmatpush.msra.mxu0 0.0
    %1743 = vmatpush.msra.mxu0 0.0
    %1744 = vmatpush.msra.mxu0 0.0
    %1745 = vmatpush.msra.mxu0 0.0
    %1746 = vmatpush.msra.mxu0 0.0
    %1747 = vmatpush.msra.mxu0 0.0
    %1748 = vmatpush.msra.mxu0 0.0
    %1749 = vmatpush.msra.mxu0 0.0
    %1750 = vmatpush.msra.mxu0 0.0
    %1751 = vmatpush.msra.mxu0 0.0
    %1752 = vmatpush.msra.mxu0 0.0
    %1753 = vmatpush.msra.mxu0 %v1608
    %1754 = vmatmul.f32.gmra.mxu0 %v1736
    %v1755 = vpop.f32.mrf.mxu0
    %v1756 = vadd.f32 0.0, %v1755
    %1757 = vdwg.mxu0
    %s1758 = scalar_lea.vmem %s5, 520
    %v1759 = vld [vmem:[%s1758] sm:$0xff]
    %v1760 = vld [vmem:[%s1758 + $0x8] sm:$0xff]
    %v1761 = vld [vmem:[%s1758 + $0x10] sm:$0xff]
    %v1762 = vld [vmem:[%s1758 + $0x18] sm:$0xff]
    %v1763 = vld [vmem:[%s1758 + $0x20] sm:$0x1]
    %v1764 = vperm.slane %v1763, 0
    %1765 = vmatpush.msra.mxu0 0.0
    %1766 = vmatpush.msra.mxu0 0.0
    %1767 = vmatpush.msra.mxu0 0.0
    %1768 = vmatpush.msra.mxu0 0.0
    %1769 = vmatpush.msra.mxu0 0.0
    %1770 = vmatpush.msra.mxu0 0.0
    %1771 = vmatpush.msra.mxu0 0.0
    %1772 = vmatpush.msra.mxu0 0.0
    %1773 = vmatpush.msra.mxu0 0.0
    %1774 = vmatpush.msra.mxu0 0.0
    %1775 = vmatpush.msra.mxu0 0.0
    %1776 = vmatpush.msra.mxu0 0.0
    %1777 = vmatpush.msra.mxu0 %v1762
    %1778 = vmatpush.msra.mxu0 %v1761
    %1779 = vmatpush.msra.mxu0 %v1760
    %1780 = vmatpush.msra.mxu0 %v1759
    %1781 = vmatmul.f32.gmra.mxu0 %v1522
    %v1782 = vpop.f32.mrf.mxu0
    %v1783 = vadd.f32 %v1764, %v1782
    %1784 = vmatmul.f32.gmra.mxu0 %v1525
    %v1785 = vpop.f32.mrf.mxu0
    %v1786 = vadd.f32 %v1764, %v1785
    %1787 = vdwg.mxu0
    %s1788 = scalar_lea.vmem %s5, 680
    %v1789 = vld [vmem:[%s1788] sm:$0xff]
    %v1790 = vld [vmem:[%s1788 + $0x8] sm:$0xff]
    %v1791 = vld [vmem:[%s1788 + $0x10] sm:$0xff]
    %v1792 = vld [vmem:[%s1788 + $0x18] sm:$0xff]
    %v1793 = vld [vmem:[%s1788 + $0x20] sm:$0x1]
    %v1794 = vperm.slane %v1793, 0
    %1795 = vmatpush.msra.mxu0 0.0
    %1796 = vmatpush.msra.mxu0 0.0
    %1797 = vmatpush.msra.mxu0 0.0
    %1798 = vmatpush.msra.mxu0 0.0
    %1799 = vmatpush.msra.mxu0 0.0
    %1800 = vmatpush.msra.mxu0 0.0
    %1801 = vmatpush.msra.mxu0 0.0
    %1802 = vmatpush.msra.mxu0 0.0
    %1803 = vmatpush.msra.mxu0 0.0
    %1804 = vmatpush.msra.mxu0 0.0
    %1805 = vmatpush.msra.mxu0 0.0
    %1806 = vmatpush.msra.mxu0 0.0
    %1807 = vmatpush.msra.mxu0 %v1792
    %1808 = vmatpush.msra.mxu0 %v1791
    %1809 = vmatpush.msra.mxu0 %v1790
    %1810 = vmatpush.msra.mxu0 %v1789
    %1811 = vmatmul.f32.gmra.mxu0 %v1522
    %v1812 = vpop.f32.mrf.mxu0
    %v1813 = vadd.f32 %v1794, %v1812
    %1814 = vmatmul.f32.gmra.mxu0 %v1525
    %v1815 = vpop.f32.mrf.mxu0
    %v1816 = vadd.f32 %v1794, %v1815
    %1817 = vdwg.mxu0
    %s1818 = scalar_lea.vmem %s5, 840
    %v1819 = vld [vmem:[%s1818] sm:$0xff]
    %v1820 = vld [vmem:[%s1818 + $0x8] sm:$0xff]
    %v1821 = vld [vmem:[%s1818 + $0x10] sm:$0xff]
    %v1822 = vld [vmem:[%s1818 + $0x18] sm:$0xff]
    %v1823 = vld [vmem:[%s1818 + $0x20] sm:$0x1]
    %v1824 = vperm.slane %v1823, 0
    %1825 = vmatpush.msra.mxu0 0.0
    %1826 = vmatpush.msra.mxu0 0.0
    %1827 = vmatpush.msra.mxu0 0.0
    %1828 = vmatpush.msra.mxu0 0.0
    %1829 = vmatpush.msra.mxu0 0.0
    %1830 = vmatpush.msra.mxu0 0.0
    %1831 = vmatpush.msra.mxu0 0.0
    %1832 = vmatpush.msra.mxu0 0.0
    %1833 = vmatpush.msra.mxu0 0.0
    %1834 = vmatpush.msra.mxu0 0.0
    %1835 = vmatpush.msra.mxu0 0.0
    %1836 = vmatpush.msra.mxu0 0.0
    %1837 = vmatpush.msra.mxu0 %v1822
    %1838 = vmatpush.msra.mxu0 %v1821
    %1839 = vmatpush.msra.mxu0 %v1820
    %1840 = vmatpush.msra.mxu0 %v1819
    %1841 = vmatmul.f32.gmra.mxu0 %v1522
    %v1842 = vpop.f32.mrf.mxu0
    %v1843 = vadd.f32 %v1824, %v1842
    %1844 = vmatmul.f32.gmra.mxu0 %v1525
    %v1845 = vpop.f32.mrf.mxu0
    %v1846 = vadd.f32 %v1824, %v1845
    %1847 = vdwg.mxu0
    %s1848 = scalar_lea.vmem %s6, 40
    %v1849 = vld [vmem:[%s1848] sm:$0xff]
    %v1851 = vsel %vm260, %v1783, 0
    %v1854 = vsel %vm260, %v1813, 0
    %1856 = vmatpush.xpose.msra.mxu0 0.0
    %1857 = vmatpush.xpose.msra.mxu0 0.0
    %1858 = vmatpush.xpose.msra.mxu0 0.0
    %1859 = vmatpush.xpose.msra.mxu0 0.0
    %1860 = vmatpush.xpose.msra.mxu0 0.0
    %1861 = vmatpush.xpose.msra.mxu0 0.0
    %1862 = vmatpush.xpose.msra.mxu0 0.0
    %1863 = vmatpush.xpose.msra.mxu0 0.0
    %1864 = vmatpush.xpose.msra.mxu0 0.0
    %1865 = vmatpush.xpose.msra.mxu0 0.0
    %1866 = vmatpush.xpose.msra.mxu0 0.0
    %1867 = vmatpush.xpose.msra.mxu0 0.0
    %1868 = vmatpush.xpose.msra.mxu0 0.0
    %1869 = vmatpush.xpose.msra.mxu0 0.0
    %1870 = vmatpush.xpose.msra.mxu0 0.0
    %1871 = vmatpush.xpose.msra.mxu0 %v1854
    %1872 = vmatmul.f32.gmra.mxu0 %v1851
    %v1873 = vpop.f32.mrf.mxu0
    %v1874 = vadd.f32 %v162, %v1873
    %1875 = vdwg.mxu0
    %v1876 = vsel %vm260, %v1874, -inf
    %1877 = vmax.xlane.f32.xlu0 %v1876
    %v1878 = vpop.xlane.xlu0 %1877
    %v1879 = vsub.f32 %v1874, %v1878
    %v1880 = vmul.f32 %v1879, 1.442695
    %v1881 = vpow.pop %v1880
    %v1882 = vsel %vm260, %v1881, 0.0
    %1883 = vadd.xlane.f32.xlu0 %v1882
    %v1884 = vpop.xlane.xlu0 %1883
    %v1885 = vrcp.pop %v1884
    %v1886 = vmul.f32 %v1884, %v1885
    %v1887 = vsub.f32 1.0, %v1886
    %v1888 = vmul.f32 %v1885, %v1887
    %v1889 = vadd.f32 %v1885, %v1888
    %vm1890 = vweird.f32 %v1884
    %vm1891 = vweird.f32 %v1885
    %vm1892 = vmor %vm1890, %vm1891
    %v1893 = vsel %vm1892, %v1885, %v1889
    %v1894 = vand.u32 2147483647, %v1884
    %vm1895 = vcmp.eq.f32.partialorder %v1894, 8.507059e+37
    %v1896 = vand.u32 %v1884, 2147483648
    %v1897 = vor.u32 1.1754944e-38, %v1896
    %v1898 = vsel %vm1895, %v1897, %v1893
    %v1899 = vmul.f32 %v1881, %v1898
    %v1901 = vsel %vm260, %v1899, 0
    %1903 = vmatpush.msra.mxu0 0.0
    %1904 = vmatpush.msra.mxu0 0.0
    %1905 = vmatpush.msra.mxu0 0.0
    %1906 = vmatpush.msra.mxu0 0.0
    %1907 = vmatpush.msra.mxu0 0.0
    %1908 = vmatpush.msra.mxu0 0.0
    %1909 = vmatpush.msra.mxu0 0.0
    %1910 = vmatpush.msra.mxu0 0.0
    %1911 = vmatpush.msra.mxu0 0.0
    %1912 = vmatpush.msra.mxu0 0.0
    %1913 = vmatpush.msra.mxu0 0.0
    %1914 = vmatpush.msra.mxu0 0.0
    %1915 = vmatpush.msra.mxu0 0.0
    %1916 = vmatpush.msra.mxu0 0.0
    %1917 = vmatpush.msra.mxu0 0.0
    %1918 = vmatpush.msra.mxu0 %v1843
    %1919 = vmatmul.f32.gmra.mxu0 %v1901
    %v1920 = vpop.f32.mrf.mxu0
    %v1921 = vadd.f32 0.0, %v1920
    %1922 = vdwg.mxu0
    %v1924 = vsel %vm260, %v1921, 0
    %1926 = vmatpush.msra.mxu0 0.0
    %1927 = vmatpush.msra.mxu0 0.0
    %1928 = vmatpush.msra.mxu0 0.0
    %1929 = vmatpush.msra.mxu0 0.0
    %1930 = vmatpush.msra.mxu0 0.0
    %1931 = vmatpush.msra.mxu0 0.0
    %1932 = vmatpush.msra.mxu0 0.0
    %1933 = vmatpush.msra.mxu0 0.0
    %1934 = vmatpush.msra.mxu0 0.0
    %1935 = vmatpush.msra.mxu0 0.0
    %1936 = vmatpush.msra.mxu0 0.0
    %1937 = vmatpush.msra.mxu0 0.0
    %1938 = vmatpush.msra.mxu0 0.0
    %1939 = vmatpush.msra.mxu0 0.0
    %1940 = vmatpush.msra.mxu0 0.0
    %1941 = vmatpush.msra.mxu0 %v1849
    %1942 = vmatmul.f32.gmra.mxu0 %v1924
    %v1943 = vpop.f32.mrf.mxu0
    %v1944 = vadd.f32 0.0, %v1943
    %1945 = vdwg.mxu0
    %v1947 = vsel %vm260, %v1683, 0
    %1949 = vmatpush.msra.mxu0 0.0
    %1950 = vmatpush.msra.mxu0 0.0
    %1951 = vmatpush.msra.mxu0 0.0
    %1952 = vmatpush.msra.mxu0 0.0
    %1953 = vmatpush.msra.mxu0 0.0
    %1954 = vmatpush.msra.mxu0 0.0
    %1955 = vmatpush.msra.mxu0 0.0
    %1956 = vmatpush.msra.mxu0 0.0
    %1957 = vmatpush.msra.mxu0 0.0
    %1958 = vmatpush.msra.mxu0 0.0
    %1959 = vmatpush.msra.mxu0 0.0
    %1960 = vmatpush.msra.mxu0 0.0
    %1961 = vmatpush.msra.mxu0 0.0
    %1962 = vmatpush.msra.mxu0 0.0
    %1963 = vmatpush.msra.mxu0 0.0
    %1964 = vmatpush.msra.mxu0 %v1611
    %1965 = vmatmul.f32.gmra.mxu0 %v1947
    %v1966 = vpop.f32.mrf.mxu0
    %v1967 = vadd.f32 %v1944, %v1966
    %1968 = vdwg.mxu0
    %v1970 = vsel %vm260, %v1786, 0
    %v1973 = vsel %vm260, %v1816, 0
    %1975 = vmatpush.xpose.msra.mxu0 0.0
    %1976 = vmatpush.xpose.msra.mxu0 0.0
    %1977 = vmatpush.xpose.msra.mxu0 0.0
    %1978 = vmatpush.xpose.msra.mxu0 0.0
    %1979 = vmatpush.xpose.msra.mxu0 0.0
    %1980 = vmatpush.xpose.msra.mxu0 0.0
    %1981 = vmatpush.xpose.msra.mxu0 0.0
    %1982 = vmatpush.xpose.msra.mxu0 0.0
    %1983 = vmatpush.xpose.msra.mxu0 0.0
    %1984 = vmatpush.xpose.msra.mxu0 0.0
    %1985 = vmatpush.xpose.msra.mxu0 0.0
    %1986 = vmatpush.xpose.msra.mxu0 0.0
    %1987 = vmatpush.xpose.msra.mxu0 0.0
    %1988 = vmatpush.xpose.msra.mxu0 0.0
    %1989 = vmatpush.xpose.msra.mxu0 0.0
    %1990 = vmatpush.xpose.msra.mxu0 %v1973
    %1991 = vmatmul.f32.gmra.mxu0 %v1970
    %v1992 = vpop.f32.mrf.mxu0
    %v1993 = vadd.f32 %v163, %v1992
    %1994 = vdwg.mxu0
    %v1995 = vsel %vm260, %v1993, -inf
    %1996 = vmax.xlane.f32.xlu0 %v1995
    %v1997 = vpop.xlane.xlu0 %1996
    %v1998 = vsub.f32 %v1993, %v1997
    %v1999 = vmul.f32 %v1998, 1.442695
    %v2000 = vpow.pop %v1999
    %v2001 = vsel %vm260, %v2000, 0.0
    %2002 = vadd.xlane.f32.xlu0 %v2001
    %v2003 = vpop.xlane.xlu0 %2002
    %v2004 = vrcp.pop %v2003
    %v2005 = vmul.f32 %v2003, %v2004
    %v2006 = vsub.f32 1.0, %v2005
    %v2007 = vmul.f32 %v2004, %v2006
    %v2008 = vadd.f32 %v2004, %v2007
    %vm2009 = vweird.f32 %v2003
    %vm2010 = vweird.f32 %v2004
    %vm2011 = vmor %vm2009, %vm2010
    %v2012 = vsel %vm2011, %v2004, %v2008
    %v2013 = vand.u32 2147483647, %v2003
    %vm2014 = vcmp.eq.f32.partialorder %v2013, 8.507059e+37
    %v2015 = vand.u32 %v2003, 2147483648
    %v2016 = vor.u32 1.1754944e-38, %v2015
    %v2017 = vsel %vm2014, %v2016, %v2012
    %v2018 = vmul.f32 %v2000, %v2017
    %v2020 = vsel %vm260, %v2018, 0
    %2022 = vmatpush.msra.mxu0 0.0
    %2023 = vmatpush.msra.mxu0 0.0
    %2024 = vmatpush.msra.mxu0 0.0
    %2025 = vmatpush.msra.mxu0 0.0
    %2026 = vmatpush.msra.mxu0 0.0
    %2027 = vmatpush.msra.mxu0 0.0
    %2028 = vmatpush.msra.mxu0 0.0
    %2029 = vmatpush.msra.mxu0 0.0
    %2030 = vmatpush.msra.mxu0 0.0
    %2031 = vmatpush.msra.mxu0 0.0
    %2032 = vmatpush.msra.mxu0 0.0
    %2033 = vmatpush.msra.mxu0 0.0
    %2034 = vmatpush.msra.mxu0 0.0
    %2035 = vmatpush.msra.mxu0 0.0
    %2036 = vmatpush.msra.mxu0 0.0
    %2037 = vmatpush.msra.mxu0 %v1846
    %2038 = vmatmul.f32.gmra.mxu0 %v2020
    %v2039 = vpop.f32.mrf.mxu0
    %v2040 = vadd.f32 0.0, %v2039
    %2041 = vdwg.mxu0
    %v2043 = vsel %vm260, %v2040, 0
    %2045 = vmatpush.msra.mxu0 0.0
    %2046 = vmatpush.msra.mxu0 0.0
    %2047 = vmatpush.msra.mxu0 0.0
    %2048 = vmatpush.msra.mxu0 0.0
    %2049 = vmatpush.msra.mxu0 0.0
    %2050 = vmatpush.msra.mxu0 0.0
    %2051 = vmatpush.msra.mxu0 0.0
    %2052 = vmatpush.msra.mxu0 0.0
    %2053 = vmatpush.msra.mxu0 0.0
    %2054 = vmatpush.msra.mxu0 0.0
    %2055 = vmatpush.msra.mxu0 0.0
    %2056 = vmatpush.msra.mxu0 0.0
    %2057 = vmatpush.msra.mxu0 0.0
    %2058 = vmatpush.msra.mxu0 0.0
    %2059 = vmatpush.msra.mxu0 0.0
    %2060 = vmatpush.msra.mxu0 %v1849
    %2061 = vmatmul.f32.gmra.mxu0 %v2043
    %v2062 = vpop.f32.mrf.mxu0
    %v2063 = vadd.f32 0.0, %v2062
    %2064 = vdwg.mxu0
    %v2066 = vsel %vm260, %v1756, 0
    %2068 = vmatpush.msra.mxu0 0.0
    %2069 = vmatpush.msra.mxu0 0.0
    %2070 = vmatpush.msra.mxu0 0.0
    %2071 = vmatpush.msra.mxu0 0.0
    %2072 = vmatpush.msra.mxu0 0.0
    %2073 = vmatpush.msra.mxu0 0.0
    %2074 = vmatpush.msra.mxu0 0.0
    %2075 = vmatpush.msra.mxu0 0.0
    %2076 = vmatpush.msra.mxu0 0.0
    %2077 = vmatpush.msra.mxu0 0.0
    %2078 = vmatpush.msra.mxu0 0.0
    %2079 = vmatpush.msra.mxu0 0.0
    %2080 = vmatpush.msra.mxu0 0.0
    %2081 = vmatpush.msra.mxu0 0.0
    %2082 = vmatpush.msra.mxu0 0.0
    %2083 = vmatpush.msra.mxu0 %v1611
    %2084 = vmatmul.f32.gmra.mxu0 %v2066
    %v2085 = vpop.f32.mrf.mxu0
    %v2086 = vadd.f32 %v2063, %v2085
    %2087 = vdwg.mxu0
    %s2088 = scalar_lea.vmem %s5, 560
    %v2089 = vld [vmem:[%s2088] sm:$0xff]
    %v2090 = vld [vmem:[%s2088 + $0x8] sm:$0xff]
    %v2091 = vld [vmem:[%s2088 + $0x10] sm:$0xff]
    %v2092 = vld [vmem:[%s2088 + $0x18] sm:$0xff]
    %v2093 = vld [vmem:[%s2088 + $0x20] sm:$0x1]
    %v2094 = vperm.slane %v2093, 0
    %2095 = vmatpush.msra.mxu0 0.0
    %2096 = vmatpush.msra.mxu0 0.0
    %2097 = vmatpush.msra.mxu0 0.0
    %2098 = vmatpush.msra.mxu0 0.0
    %2099 = vmatpush.msra.mxu0 0.0
    %2100 = vmatpush.msra.mxu0 0.0
    %2101 = vmatpush.msra.mxu0 0.0
    %2102 = vmatpush.msra.mxu0 0.0
    %2103 = vmatpush.msra.mxu0 0.0
    %2104 = vmatpush.msra.mxu0 0.0
    %2105 = vmatpush.msra.mxu0 0.0
    %2106 = vmatpush.msra.mxu0 0.0
    %2107 = vmatpush.msra.mxu0 %v2092
    %2108 = vmatpush.msra.mxu0 %v2091
    %2109 = vmatpush.msra.mxu0 %v2090
    %2110 = vmatpush.msra.mxu0 %v2089
    %2111 = vmatmul.f32.gmra.mxu0 %v1522
    %v2112 = vpop.f32.mrf.mxu0
    %v2113 = vadd.f32 %v2094, %v2112
    %2114 = vmatmul.f32.gmra.mxu0 %v1525
    %v2115 = vpop.f32.mrf.mxu0
    %v2116 = vadd.f32 %v2094, %v2115
    %2117 = vdwg.mxu0
    %s2118 = scalar_lea.vmem %s5, 720
    %v2119 = vld [vmem:[%s2118] sm:$0xff]
    %v2120 = vld [vmem:[%s2118 + $0x8] sm:$0xff]
    %v2121 = vld [vmem:[%s2118 + $0x10] sm:$0xff]
    %v2122 = vld [vmem:[%s2118 + $0x18] sm:$0xff]
    %v2123 = vld [vmem:[%s2118 + $0x20] sm:$0x1]
    %v2124 = vperm.slane %v2123, 0
    %2125 = vmatpush.msra.mxu0 0.0
    %2126 = vmatpush.msra.mxu0 0.0
    %2127 = vmatpush.msra.mxu0 0.0
    %2128 = vmatpush.msra.mxu0 0.0
    %2129 = vmatpush.msra.mxu0 0.0
    %2130 = vmatpush.msra.mxu0 0.0
    %2131 = vmatpush.msra.mxu0 0.0
    %2132 = vmatpush.msra.mxu0 0.0
    %2133 = vmatpush.msra.mxu0 0.0
    %2134 = vmatpush.msra.mxu0 0.0
    %2135 = vmatpush.msra.mxu0 0.0
    %2136 = vmatpush.msra.mxu0 0.0
    %2137 = vmatpush.msra.mxu0 %v2122
    %2138 = vmatpush.msra.mxu0 %v2121
    %2139 = vmatpush.msra.mxu0 %v2120
    %2140 = vmatpush.msra.mxu0 %v2119
    %2141 = vmatmul.f32.gmra.mxu0 %v1522
    %v2142 = vpop.f32.mrf.mxu0
    %v2143 = vadd.f32 %v2124, %v2142
    %2144 = vmatmul.f32.gmra.mxu0 %v1525
    %v2145 = vpop.f32.mrf.mxu0
    %v2146 = vadd.f32 %v2124, %v2145
    %2147 = vdwg.mxu0
    %s2148 = scalar_lea.vmem %s5, 880
    %v2149 = vld [vmem:[%s2148] sm:$0xff]
    %v2150 = vld [vmem:[%s2148 + $0x8] sm:$0xff]
    %v2151 = vld [vmem:[%s2148 + $0x10] sm:$0xff]
    %v2152 = vld [vmem:[%s2148 + $0x18] sm:$0xff]
    %v2153 = vld [vmem:[%s2148 + $0x20] sm:$0x1]
    %v2154 = vperm.slane %v2153, 0
    %2155 = vmatpush.msra.mxu0 0.0
    %2156 = vmatpush.msra.mxu0 0.0
    %2157 = vmatpush.msra.mxu0 0.0
    %2158 = vmatpush.msra.mxu0 0.0
    %2159 = vmatpush.msra.mxu0 0.0
    %2160 = vmatpush.msra.mxu0 0.0
    %2161 = vmatpush.msra.mxu0 0.0
    %2162 = vmatpush.msra.mxu0 0.0
    %2163 = vmatpush.msra.mxu0 0.0
    %2164 = vmatpush.msra.mxu0 0.0
    %2165 = vmatpush.msra.mxu0 0.0
    %2166 = vmatpush.msra.mxu0 0.0
    %2167 = vmatpush.msra.mxu0 %v2152
    %2168 = vmatpush.msra.mxu0 %v2151
    %2169 = vmatpush.msra.mxu0 %v2150
    %2170 = vmatpush.msra.mxu0 %v2149
    %2171 = vmatmul.f32.gmra.mxu0 %v1522
    %v2172 = vpop.f32.mrf.mxu0
    %v2173 = vadd.f32 %v2154, %v2172
    %2174 = vmatmul.f32.gmra.mxu0 %v1525
    %v2175 = vpop.f32.mrf.mxu0
    %v2176 = vadd.f32 %v2154, %v2175
    %2177 = vdwg.mxu0
    %s2178 = scalar_lea.vmem %s6, 48
    %v2179 = vld [vmem:[%s2178] sm:$0xff]
    %v2181 = vsel %vm260, %v2113, 0
    %v2184 = vsel %vm260, %v2143, 0
    %2186 = vmatpush.xpose.msra.mxu0 0.0
    %2187 = vmatpush.xpose.msra.mxu0 0.0
    %2188 = vmatpush.xpose.msra.mxu0 0.0
    %2189 = vmatpush.xpose.msra.mxu0 0.0
    %2190 = vmatpush.xpose.msra.mxu0 0.0
    %2191 = vmatpush.xpose.msra.mxu0 0.0
    %2192 = vmatpush.xpose.msra.mxu0 0.0
    %2193 = vmatpush.xpose.msra.mxu0 0.0
    %2194 = vmatpush.xpose.msra.mxu0 0.0
    %2195 = vmatpush.xpose.msra.mxu0 0.0
    %2196 = vmatpush.xpose.msra.mxu0 0.0
    %2197 = vmatpush.xpose.msra.mxu0 0.0
    %2198 = vmatpush.xpose.msra.mxu0 0.0
    %2199 = vmatpush.xpose.msra.mxu0 0.0
    %2200 = vmatpush.xpose.msra.mxu0 0.0
    %2201 = vmatpush.xpose.msra.mxu0 %v2184
    %2202 = vmatmul.f32.gmra.mxu0 %v2181
    %v2203 = vpop.f32.mrf.mxu0
    %v2204 = vadd.f32 %v162, %v2203
    %2205 = vdwg.mxu0
    %v2206 = vsel %vm260, %v2204, -inf
    %2207 = vmax.xlane.f32.xlu0 %v2206
    %v2208 = vpop.xlane.xlu0 %2207
    %v2209 = vsub.f32 %v2204, %v2208
    %v2210 = vmul.f32 %v2209, 1.442695
    %v2211 = vpow.pop %v2210
    %v2212 = vsel %vm260, %v2211, 0.0
    %2213 = vadd.xlane.f32.xlu0 %v2212
    %v2214 = vpop.xlane.xlu0 %2213
    %v2215 = vrcp.pop %v2214
    %v2216 = vmul.f32 %v2214, %v2215
    %v2217 = vsub.f32 1.0, %v2216
    %v2218 = vmul.f32 %v2215, %v2217
    %v2219 = vadd.f32 %v2215, %v2218
    %vm2220 = vweird.f32 %v2214
    %vm2221 = vweird.f32 %v2215
    %vm2222 = vmor %vm2220, %vm2221
    %v2223 = vsel %vm2222, %v2215, %v2219
    %v2224 = vand.u32 2147483647, %v2214
    %vm2225 = vcmp.eq.f32.partialorder %v2224, 8.507059e+37
    %v2226 = vand.u32 %v2214, 2147483648
    %v2227 = vor.u32 1.1754944e-38, %v2226
    %v2228 = vsel %vm2225, %v2227, %v2223
    %v2229 = vmul.f32 %v2211, %v2228
    %v2231 = vsel %vm260, %v2229, 0
    %2233 = vmatpush.msra.mxu0 0.0
    %2234 = vmatpush.msra.mxu0 0.0
    %2235 = vmatpush.msra.mxu0 0.0
    %2236 = vmatpush.msra.mxu0 0.0
    %2237 = vmatpush.msra.mxu0 0.0
    %2238 = vmatpush.msra.mxu0 0.0
    %2239 = vmatpush.msra.mxu0 0.0
    %2240 = vmatpush.msra.mxu0 0.0
    %2241 = vmatpush.msra.mxu0 0.0
    %2242 = vmatpush.msra.mxu0 0.0
    %2243 = vmatpush.msra.mxu0 0.0
    %2244 = vmatpush.msra.mxu0 0.0
    %2245 = vmatpush.msra.mxu0 0.0
    %2246 = vmatpush.msra.mxu0 0.0
    %2247 = vmatpush.msra.mxu0 0.0
    %2248 = vmatpush.msra.mxu0 %v2173
    %2249 = vmatmul.f32.gmra.mxu0 %v2231
    %v2250 = vpop.f32.mrf.mxu0
    %v2251 = vadd.f32 0.0, %v2250
    %2252 = vdwg.mxu0
    %v2254 = vsel %vm260, %v2251, 0
    %2256 = vmatpush.msra.mxu0 0.0
    %2257 = vmatpush.msra.mxu0 0.0
    %2258 = vmatpush.msra.mxu0 0.0
    %2259 = vmatpush.msra.mxu0 0.0
    %2260 = vmatpush.msra.mxu0 0.0
    %2261 = vmatpush.msra.mxu0 0.0
    %2262 = vmatpush.msra.mxu0 0.0
    %2263 = vmatpush.msra.mxu0 0.0
    %2264 = vmatpush.msra.mxu0 0.0
    %2265 = vmatpush.msra.mxu0 0.0
    %2266 = vmatpush.msra.mxu0 0.0
    %2267 = vmatpush.msra.mxu0 0.0
    %2268 = vmatpush.msra.mxu0 0.0
    %2269 = vmatpush.msra.mxu0 0.0
    %2270 = vmatpush.msra.mxu0 0.0
    %2271 = vmatpush.msra.mxu0 %v2179
    %2272 = vmatmul.f32.gmra.mxu0 %v2254
    %v2273 = vpop.f32.mrf.mxu0
    %v2274 = vadd.f32 0.0, %v2273
    %2275 = vdwg.mxu0
    %v2276 = vadd.f32 %v1967, %v2274
    %v2278 = vsel %vm260, %v2116, 0
    %v2281 = vsel %vm260, %v2146, 0
    %2283 = vmatpush.xpose.msra.mxu0 0.0
    %2284 = vmatpush.xpose.msra.mxu0 0.0
    %2285 = vmatpush.xpose.msra.mxu0 0.0
    %2286 = vmatpush.xpose.msra.mxu0 0.0
    %2287 = vmatpush.xpose.msra.mxu0 0.0
    %2288 = vmatpush.xpose.msra.mxu0 0.0
    %2289 = vmatpush.xpose.msra.mxu0 0.0
    %2290 = vmatpush.xpose.msra.mxu0 0.0
    %2291 = vmatpush.xpose.msra.mxu0 0.0
    %2292 = vmatpush.xpose.msra.mxu0 0.0
    %2293 = vmatpush.xpose.msra.mxu0 0.0
    %2294 = vmatpush.xpose.msra.mxu0 0.0
    %2295 = vmatpush.xpose.msra.mxu0 0.0
    %2296 = vmatpush.xpose.msra.mxu0 0.0
    %2297 = vmatpush.xpose.msra.mxu0 0.0
    %2298 = vmatpush.xpose.msra.mxu0 %v2281
    %2299 = vmatmul.f32.gmra.mxu0 %v2278
    %v2300 = vpop.f32.mrf.mxu0
    %v2301 = vadd.f32 %v163, %v2300
    %2302 = vdwg.mxu0
    %v2303 = vsel %vm260, %v2301, -inf
    %2304 = vmax.xlane.f32.xlu0 %v2303
    %v2305 = vpop.xlane.xlu0 %2304
    %v2306 = vsub.f32 %v2301, %v2305
    %v2307 = vmul.f32 %v2306, 1.442695
    %v2308 = vpow.pop %v2307
    %v2309 = vsel %vm260, %v2308, 0.0
    %2310 = vadd.xlane.f32.xlu0 %v2309
    %v2311 = vpop.xlane.xlu0 %2310
    %v2312 = vrcp.pop %v2311
    %v2313 = vmul.f32 %v2311, %v2312
    %v2314 = vsub.f32 1.0, %v2313
    %v2315 = vmul.f32 %v2312, %v2314
    %v2316 = vadd.f32 %v2312, %v2315
    %vm2317 = vweird.f32 %v2311
    %vm2318 = vweird.f32 %v2312
    %vm2319 = vmor %vm2317, %vm2318
    %v2320 = vsel %vm2319, %v2312, %v2316
    %v2321 = vand.u32 2147483647, %v2311
    %vm2322 = vcmp.eq.f32.partialorder %v2321, 8.507059e+37
    %v2323 = vand.u32 %v2311, 2147483648
    %v2324 = vor.u32 1.1754944e-38, %v2323
    %v2325 = vsel %vm2322, %v2324, %v2320
    %v2326 = vmul.f32 %v2308, %v2325
    %v2328 = vsel %vm260, %v2326, 0
    %2330 = vmatpush.msra.mxu0 0.0
    %2331 = vmatpush.msra.mxu0 0.0
    %2332 = vmatpush.msra.mxu0 0.0
    %2333 = vmatpush.msra.mxu0 0.0
    %2334 = vmatpush.msra.mxu0 0.0
    %2335 = vmatpush.msra.mxu0 0.0
    %2336 = vmatpush.msra.mxu0 0.0
    %2337 = vmatpush.msra.mxu0 0.0
    %2338 = vmatpush.msra.mxu0 0.0
    %2339 = vmatpush.msra.mxu0 0.0
    %2340 = vmatpush.msra.mxu0 0.0
    %2341 = vmatpush.msra.mxu0 0.0
    %2342 = vmatpush.msra.mxu0 0.0
    %2343 = vmatpush.msra.mxu0 0.0
    %2344 = vmatpush.msra.mxu0 0.0
    %2345 = vmatpush.msra.mxu0 %v2176
    %2346 = vmatmul.f32.gmra.mxu0 %v2328
    %v2347 = vpop.f32.mrf.mxu0
    %v2348 = vadd.f32 0.0, %v2347
    %2349 = vdwg.mxu0
    %v2351 = vsel %vm260, %v2348, 0
    %2353 = vmatpush.msra.mxu0 0.0
    %2354 = vmatpush.msra.mxu0 0.0
    %2355 = vmatpush.msra.mxu0 0.0
    %2356 = vmatpush.msra.mxu0 0.0
    %2357 = vmatpush.msra.mxu0 0.0
    %2358 = vmatpush.msra.mxu0 0.0
    %2359 = vmatpush.msra.mxu0 0.0
    %2360 = vmatpush.msra.mxu0 0.0
    %2361 = vmatpush.msra.mxu0 0.0
    %2362 = vmatpush.msra.mxu0 0.0
    %2363 = vmatpush.msra.mxu0 0.0
    %2364 = vmatpush.msra.mxu0 0.0
    %2365 = vmatpush.msra.mxu0 0.0
    %2366 = vmatpush.msra.mxu0 0.0
    %2367 = vmatpush.msra.mxu0 0.0
    %2368 = vmatpush.msra.mxu0 %v2179
    %2369 = vmatmul.f32.gmra.mxu0 %v2351
    %v2370 = vpop.f32.mrf.mxu0
    %v2371 = vadd.f32 0.0, %v2370
    %2372 = vdwg.mxu0
    %v2373 = vadd.f32 %v2086, %v2371
    %s2374 = scalar_lea.vmem %s5, 600
    %v2375 = vld [vmem:[%s2374] sm:$0xff]
    %v2376 = vld [vmem:[%s2374 + $0x8] sm:$0xff]
    %v2377 = vld [vmem:[%s2374 + $0x10] sm:$0xff]
    %v2378 = vld [vmem:[%s2374 + $0x18] sm:$0xff]
    %v2379 = vld [vmem:[%s2374 + $0x20] sm:$0x1]
    %v2380 = vperm.slane %v2379, 0
    %2381 = vmatpush.msra.mxu0 0.0
    %2382 = vmatpush.msra.mxu0 0.0
    %2383 = vmatpush.msra.mxu0 0.0
    %2384 = vmatpush.msra.mxu0 0.0
    %2385 = vmatpush.msra.mxu0 0.0
    %2386 = vmatpush.msra.mxu0 0.0
    %2387 = vmatpush.msra.mxu0 0.0
    %2388 = vmatpush.msra.mxu0 0.0
    %2389 = vmatpush.msra.mxu0 0.0
    %2390 = vmatpush.msra.mxu0 0.0
    %2391 = vmatpush.msra.mxu0 0.0
    %2392 = vmatpush.msra.mxu0 0.0
    %2393 = vmatpush.msra.mxu0 %v2378
    %2394 = vmatpush.msra.mxu0 %v2377
    %2395 = vmatpush.msra.mxu0 %v2376
    %2396 = vmatpush.msra.mxu0 %v2375
    %2397 = vmatmul.f32.gmra.mxu0 %v1522
    %v2398 = vpop.f32.mrf.mxu0
    %v2399 = vadd.f32 %v2380, %v2398
    %2400 = vmatmul.f32.gmra.mxu0 %v1525
    %v2401 = vpop.f32.mrf.mxu0
    %v2402 = vadd.f32 %v2380, %v2401
    %2403 = vdwg.mxu0
    %s2404 = scalar_lea.vmem %s5, 760
    %v2405 = vld [vmem:[%s2404] sm:$0xff]
    %v2406 = vld [vmem:[%s2404 + $0x8] sm:$0xff]
    %v2407 = vld [vmem:[%s2404 + $0x10] sm:$0xff]
    %v2408 = vld [vmem:[%s2404 + $0x18] sm:$0xff]
    %v2409 = vld [vmem:[%s2404 + $0x20] sm:$0x1]
    %v2410 = vperm.slane %v2409, 0
    %2411 = vmatpush.msra.mxu0 0.0
    %2412 = vmatpush.msra.mxu0 0.0
    %2413 = vmatpush.msra.mxu0 0.0
    %2414 = vmatpush.msra.mxu0 0.0
    %2415 = vmatpush.msra.mxu0 0.0
    %2416 = vmatpush.msra.mxu0 0.0
    %2417 = vmatpush.msra.mxu0 0.0
    %2418 = vmatpush.msra.mxu0 0.0
    %2419 = vmatpush.msra.mxu0 0.0
    %2420 = vmatpush.msra.mxu0 0.0
    %2421 = vmatpush.msra.mxu0 0.0
    %2422 = vmatpush.msra.mxu0 0.0
    %2423 = vmatpush.msra.mxu0 %v2408
    %2424 = vmatpush.msra.mxu0 %v2407
    %2425 = vmatpush.msra.mxu0 %v2406
    %2426 = vmatpush.msra.mxu0 %v2405
    %2427 = vmatmul.f32.gmra.mxu0 %v1522
    %v2428 = vpop.f32.mrf.mxu0
    %v2429 = vadd.f32 %v2410, %v2428
    %2430 = vmatmul.f32.gmra.mxu0 %v1525
    %v2431 = vpop.f32.mrf.mxu0
    %v2432 = vadd.f32 %v2410, %v2431
    %2433 = vdwg.mxu0
    %s2434 = scalar_lea.vmem %s5, 920
    %v2435 = vld [vmem:[%s2434] sm:$0xff]
    %v2436 = vld [vmem:[%s2434 + $0x8] sm:$0xff]
    %v2437 = vld [vmem:[%s2434 + $0x10] sm:$0xff]
    %v2438 = vld [vmem:[%s2434 + $0x18] sm:$0xff]
    %v2439 = vld [vmem:[%s2434 + $0x20] sm:$0x1]
    %v2440 = vperm.slane %v2439, 0
    %2441 = vmatpush.msra.mxu0 0.0
    %2442 = vmatpush.msra.mxu0 0.0
    %2443 = vmatpush.msra.mxu0 0.0
    %2444 = vmatpush.msra.mxu0 0.0
    %2445 = vmatpush.msra.mxu0 0.0
    %2446 = vmatpush.msra.mxu0 0.0
    %2447 = vmatpush.msra.mxu0 0.0
    %2448 = vmatpush.msra.mxu0 0.0
    %2449 = vmatpush.msra.mxu0 0.0
    %2450 = vmatpush.msra.mxu0 0.0
    %2451 = vmatpush.msra.mxu0 0.0
    %2452 = vmatpush.msra.mxu0 0.0
    %2453 = vmatpush.msra.mxu0 %v2438
    %2454 = vmatpush.msra.mxu0 %v2437
    %2455 = vmatpush.msra.mxu0 %v2436
    %2456 = vmatpush.msra.mxu0 %v2435
    %2457 = vmatmul.f32.gmra.mxu0 %v1522
    %v2458 = vpop.f32.mrf.mxu0
    %v2459 = vadd.f32 %v2440, %v2458
    %2460 = vmatmul.f32.gmra.mxu0 %v1525
    %v2461 = vpop.f32.mrf.mxu0
    %v2462 = vadd.f32 %v2440, %v2461
    %2463 = vdwg.mxu0
    %s2464 = scalar_lea.vmem %s6, 56
    %v2465 = vld [vmem:[%s2464] sm:$0xff]
    %v2467 = vsel %vm260, %v2399, 0
    %v2470 = vsel %vm260, %v2429, 0
    %2472 = vmatpush.xpose.msra.mxu0 0.0
    %2473 = vmatpush.xpose.msra.mxu0 0.0
    %2474 = vmatpush.xpose.msra.mxu0 0.0
    %2475 = vmatpush.xpose.msra.mxu0 0.0
    %2476 = vmatpush.xpose.msra.mxu0 0.0
    %2477 = vmatpush.xpose.msra.mxu0 0.0
    %2478 = vmatpush.xpose.msra.mxu0 0.0
    %2479 = vmatpush.xpose.msra.mxu0 0.0
    %2480 = vmatpush.xpose.msra.mxu0 0.0
    %2481 = vmatpush.xpose.msra.mxu0 0.0
    %2482 = vmatpush.xpose.msra.mxu0 0.0
    %2483 = vmatpush.xpose.msra.mxu0 0.0
    %2484 = vmatpush.xpose.msra.mxu0 0.0
    %2485 = vmatpush.xpose.msra.mxu0 0.0
    %2486 = vmatpush.xpose.msra.mxu0 0.0
    %2487 = vmatpush.xpose.msra.mxu0 %v2470
    %2488 = vmatmul.f32.gmra.mxu0 %v2467
    %v2489 = vpop.f32.mrf.mxu0
    %v2490 = vadd.f32 %v162, %v2489
    %2491 = vdwg.mxu0
    %v2492 = vsel %vm260, %v2490, -inf
    %2493 = vmax.xlane.f32.xlu0 %v2492
    %v2494 = vpop.xlane.xlu0 %2493
    %v2495 = vsub.f32 %v2490, %v2494
    %v2496 = vmul.f32 %v2495, 1.442695
    %v2497 = vpow.pop %v2496
    %v2498 = vsel %vm260, %v2497, 0.0
    %2499 = vadd.xlane.f32.xlu0 %v2498
    %v2500 = vpop.xlane.xlu0 %2499
    %v2501 = vrcp.pop %v2500
    %v2502 = vmul.f32 %v2500, %v2501
    %v2503 = vsub.f32 1.0, %v2502
    %v2504 = vmul.f32 %v2501, %v2503
    %v2505 = vadd.f32 %v2501, %v2504
    %vm2506 = vweird.f32 %v2500
    %vm2507 = vweird.f32 %v2501
    %vm2508 = vmor %vm2506, %vm2507
    %v2509 = vsel %vm2508, %v2501, %v2505
    %v2510 = vand.u32 2147483647, %v2500
    %vm2511 = vcmp.eq.f32.partialorder %v2510, 8.507059e+37
    %v2512 = vand.u32 %v2500, 2147483648
    %v2513 = vor.u32 1.1754944e-38, %v2512
    %v2514 = vsel %vm2511, %v2513, %v2509
    %v2515 = vmul.f32 %v2497, %v2514
    %v2517 = vsel %vm260, %v2515, 0
    %2519 = vmatpush.msra.mxu0 0.0
    %2520 = vmatpush.msra.mxu0 0.0
    %2521 = vmatpush.msra.mxu0 0.0
    %2522 = vmatpush.msra.mxu0 0.0
    %2523 = vmatpush.msra.mxu0 0.0
    %2524 = vmatpush.msra.mxu0 0.0
    %2525 = vmatpush.msra.mxu0 0.0
    %2526 = vmatpush.msra.mxu0 0.0
    %2527 = vmatpush.msra.mxu0 0.0
    %2528 = vmatpush.msra.mxu0 0.0
    %2529 = vmatpush.msra.mxu0 0.0
    %2530 = vmatpush.msra.mxu0 0.0
    %2531 = vmatpush.msra.mxu0 0.0
    %2532 = vmatpush.msra.mxu0 0.0
    %2533 = vmatpush.msra.mxu0 0.0
    %2534 = vmatpush.msra.mxu0 %v2459
    %2535 = vmatmul.f32.gmra.mxu0 %v2517
    %v2536 = vpop.f32.mrf.mxu0
    %v2537 = vadd.f32 0.0, %v2536
    %2538 = vdwg.mxu0
    %v2540 = vsel %vm260, %v2537, 0
    %2542 = vmatpush.msra.mxu0 0.0
    %2543 = vmatpush.msra.mxu0 0.0
    %2544 = vmatpush.msra.mxu0 0.0
    %2545 = vmatpush.msra.mxu0 0.0
    %2546 = vmatpush.msra.mxu0 0.0
    %2547 = vmatpush.msra.mxu0 0.0
    %2548 = vmatpush.msra.mxu0 0.0
    %2549 = vmatpush.msra.mxu0 0.0
    %2550 = vmatpush.msra.mxu0 0.0
    %2551 = vmatpush.msra.mxu0 0.0
    %2552 = vmatpush.msra.mxu0 0.0
    %2553 = vmatpush.msra.mxu0 0.0
    %2554 = vmatpush.msra.mxu0 0.0
    %2555 = vmatpush.msra.mxu0 0.0
    %2556 = vmatpush.msra.mxu0 0.0
    %2557 = vmatpush.msra.mxu0 %v2465
    %2558 = vmatmul.f32.gmra.mxu0 %v2540
    %v2559 = vpop.f32.mrf.mxu0
    %v2560 = vadd.f32 0.0, %v2559
    %2561 = vdwg.mxu0
    %v2562 = vadd.f32 %v2276, %v2560
    %v2564 = vsel %vm260, %v2402, 0
    %v2567 = vsel %vm260, %v2432, 0
    %2569 = vmatpush.xpose.msra.mxu0 0.0
    %2570 = vmatpush.xpose.msra.mxu0 0.0
    %2571 = vmatpush.xpose.msra.mxu0 0.0
    %2572 = vmatpush.xpose.msra.mxu0 0.0
    %2573 = vmatpush.xpose.msra.mxu0 0.0
    %2574 = vmatpush.xpose.msra.mxu0 0.0
    %2575 = vmatpush.xpose.msra.mxu0 0.0
    %2576 = vmatpush.xpose.msra.mxu0 0.0
    %2577 = vmatpush.xpose.msra.mxu0 0.0
    %2578 = vmatpush.xpose.msra.mxu0 0.0
    %2579 = vmatpush.xpose.msra.mxu0 0.0
    %2580 = vmatpush.xpose.msra.mxu0 0.0
    %2581 = vmatpush.xpose.msra.mxu0 0.0
    %2582 = vmatpush.xpose.msra.mxu0 0.0
    %2583 = vmatpush.xpose.msra.mxu0 0.0
    %2584 = vmatpush.xpose.msra.mxu0 %v2567
    %2585 = vmatmul.f32.gmra.mxu0 %v2564
    %v2586 = vpop.f32.mrf.mxu0
    %v2587 = vadd.f32 %v163, %v2586
    %2588 = vdwg.mxu0
    %v2589 = vsel %vm260, %v2587, -inf
    %2590 = vmax.xlane.f32.xlu0 %v2589
    %v2591 = vpop.xlane.xlu0 %2590
    %v2592 = vsub.f32 %v2587, %v2591
    %v2593 = vmul.f32 %v2592, 1.442695
    %v2594 = vpow.pop %v2593
    %v2595 = vsel %vm260, %v2594, 0.0
    %2596 = vadd.xlane.f32.xlu0 %v2595
    %v2597 = vpop.xlane.xlu0 %2596
    %v2598 = vrcp.pop %v2597
    %v2599 = vmul.f32 %v2597, %v2598
    %v2600 = vsub.f32 1.0, %v2599
    %v2601 = vmul.f32 %v2598, %v2600
    %v2602 = vadd.f32 %v2598, %v2601
    %vm2603 = vweird.f32 %v2597
    %vm2604 = vweird.f32 %v2598
    %vm2605 = vmor %vm2603, %vm2604
    %v2606 = vsel %vm2605, %v2598, %v2602
    %v2607 = vand.u32 2147483647, %v2597
    %vm2608 = vcmp.eq.f32.partialorder %v2607, 8.507059e+37
    %v2609 = vand.u32 %v2597, 2147483648
    %v2610 = vor.u32 1.1754944e-38, %v2609
    %v2611 = vsel %vm2608, %v2610, %v2606
    %v2612 = vmul.f32 %v2594, %v2611
    %v2614 = vsel %vm260, %v2612, 0
    %2616 = vmatpush.msra.mxu0 0.0
    %2617 = vmatpush.msra.mxu0 0.0
    %2618 = vmatpush.msra.mxu0 0.0
    %2619 = vmatpush.msra.mxu0 0.0
    %2620 = vmatpush.msra.mxu0 0.0
    %2621 = vmatpush.msra.mxu0 0.0
    %2622 = vmatpush.msra.mxu0 0.0
    %2623 = vmatpush.msra.mxu0 0.0
    %2624 = vmatpush.msra.mxu0 0.0
    %2625 = vmatpush.msra.mxu0 0.0
    %2626 = vmatpush.msra.mxu0 0.0
    %2627 = vmatpush.msra.mxu0 0.0
    %2628 = vmatpush.msra.mxu0 0.0
    %2629 = vmatpush.msra.mxu0 0.0
    %2630 = vmatpush.msra.mxu0 0.0
    %2631 = vmatpush.msra.mxu0 %v2462
    %2632 = vmatmul.f32.gmra.mxu0 %v2614
    %v2633 = vpop.f32.mrf.mxu0
    %v2634 = vadd.f32 0.0, %v2633
    %2635 = vdwg.mxu0
    %v2637 = vsel %vm260, %v2634, 0
    %2639 = vmatpush.msra.mxu0 0.0
    %2640 = vmatpush.msra.mxu0 0.0
    %2641 = vmatpush.msra.mxu0 0.0
    %2642 = vmatpush.msra.mxu0 0.0
    %2643 = vmatpush.msra.mxu0 0.0
    %2644 = vmatpush.msra.mxu0 0.0
    %2645 = vmatpush.msra.mxu0 0.0
    %2646 = vmatpush.msra.mxu0 0.0
    %2647 = vmatpush.msra.mxu0 0.0
    %2648 = vmatpush.msra.mxu0 0.0
    %2649 = vmatpush.msra.mxu0 0.0
    %2650 = vmatpush.msra.mxu0 0.0
    %2651 = vmatpush.msra.mxu0 0.0
    %2652 = vmatpush.msra.mxu0 0.0
    %2653 = vmatpush.msra.mxu0 0.0
    %2654 = vmatpush.msra.mxu0 %v2465
    %2655 = vmatmul.f32.gmra.mxu0 %v2637
    %v2656 = vpop.f32.mrf.mxu0
    %v2657 = vadd.f32 0.0, %v2656
    %2658 = vdwg.mxu0
    %v2659 = vadd.f32 %v2373, %v2657
    %v2660 = vld [vmem:[%s7 + $0x5] sm:$0x1]
    %v2661 = vperm.slane %v2660, 0
    %v2662 = vadd.f32 %v2562, %v2661
    %v2663 = vadd.f32 %v2659, %v2661
    %v2664 = vadd.f32 %v2662, %v1512
    %v2665 = vadd.f32 %v2663, %v1513
    %v2666 = vld [vmem:[%s7 + $0x6] sm:$0x1]
    %v2667 = vld [vmem:[%s7 + $0x7] sm:$0x1]
    %v2668 = vsel %vm100, %v2664, 0.0
    %2669 = vadd.xlane.f32.xlu0 %v2668
    %v2670 = vpop.xlane.xlu0 %2669
    %v2671 = vsel %vm100, %v2665, 0.0
    %2672 = vadd.xlane.f32.xlu0 %v2671
    %v2673 = vpop.xlane.xlu0 %2672
    %v2674 = vmul.f32 %v2670, %v113
    %v2675 = vmul.f32 %v2673, %v113
    %v2676 = vsub.f32 %v2664, %v2674
    %v2677 = vsub.f32 %v2665, %v2675
    %v2678 = vmul.f32 %v2676, %v2676
    %v2679 = vmul.f32 %v2677, %v2677
    %v2680 = vsel %vm100, %v2678, 0.0
    %2681 = vadd.xlane.f32.xlu0 %v2680
    %v2682 = vpop.xlane.xlu0 %2681
    %v2683 = vsel %vm100, %v2679, 0.0
    %2684 = vadd.xlane.f32.xlu0 %v2683
    %v2685 = vpop.xlane.xlu0 %2684
    %v2686 = vmul.f32 %v2682, %v113
    %v2687 = vmul.f32 %v2685, %v113
    %v2688 = vadd.f32 %v2686, 1e-12
    %v2689 = vadd.f32 %v2687, 1e-12
    %v2690 = vrsqrt.pop %v2688
    %v2691 = vmul.f32 %v2690, %v2688
    %v2692 = vmul.f32 %v2691, %v2690
    %v2693 = vmul.f32 0.5, %v2692
    %v2694 = vsub.f32 1.5, %v2693
    %v2695 = vmul.f32 %v2690, %v2694
    %vm2696 = vweird.f32 %v2688
    %vm2697 = vweird.f32 %v2690
    %vm2698 = vmor %vm2696, %vm2697
    %v2699 = vsel %vm2698, %v2690, %v2695
    %v2700 = vrsqrt.pop %v2689
    %v2701 = vmul.f32 %v2700, %v2689
    %v2702 = vmul.f32 %v2701, %v2700
    %v2703 = vmul.f32 0.5, %v2702
    %v2704 = vsub.f32 1.5, %v2703
    %v2705 = vmul.f32 %v2700, %v2704
    %vm2706 = vweird.f32 %v2689
    %vm2707 = vweird.f32 %v2700
    %vm2708 = vmor %vm2706, %vm2707
    %v2709 = vsel %vm2708, %v2700, %v2705
    %v2710 = vmul.f32 %v2676, %v2699
    %v2711 = vmul.f32 %v2677, %v2709
    %v2712 = vperm.slane %v2666, 0
    %v2713 = vmul.f32 %v2710, %v2712
    %v2714 = vmul.f32 %v2711, %v2712
    %v2715 = vperm.slane %v2667, 0
    %v2716 = vadd.f32 %v2713, %v2715
    %v2717 = vadd.f32 %v2714, %v2715
    %s2718 = scalar_lea.vmem %s8, 40
    %v2719 = vld [vmem:[%s2718] sm:$0xff]
    %v2720 = vld [vmem:[%s2718 + $0x8] sm:$0xff]
    %v2721 = vld [vmem:[%s2718 + $0x10] sm:$0xff]
    %v2722 = vld [vmem:[%s2718 + $0x18] sm:$0xff]
    %v2723 = vld [vmem:[%s2718 + $0x20] sm:$0x1]
    %v2724 = vperm.slane %v2723, 0
    %v2726 = vsel %vm100, %v2716, 0
    %v2729 = vsel %vm100, %v2717, 0
    %2731 = vmatpush.msra.mxu0 0.0
    %2732 = vmatpush.msra.mxu0 0.0
    %2733 = vmatpush.msra.mxu0 0.0
    %2734 = vmatpush.msra.mxu0 0.0
    %2735 = vmatpush.msra.mxu0 0.0
    %2736 = vmatpush.msra.mxu0 0.0
    %2737 = vmatpush.msra.mxu0 0.0
    %2738 = vmatpush.msra.mxu0 0.0
    %2739 = vmatpush.msra.mxu0 0.0
    %2740 = vmatpush.msra.mxu0 0.0
    %2741 = vmatpush.msra.mxu0 0.0
    %2742 = vmatpush.msra.mxu0 0.0
    %2743 = vmatpush.msra.mxu0 %v2722
    %2744 = vmatpush.msra.mxu0 %v2721
    %2745 = vmatpush.msra.mxu0 %v2720
    %2746 = vmatpush.msra.mxu0 %v2719
    %2747 = vmatmul.f32.gmra.mxu0 %v2726
    %v2748 = vpop.f32.mrf.mxu0
    %v2749 = vadd.f32 %v2724, %v2748
    %2750 = vmatmul.f32.gmra.mxu0 %v2729
    %v2751 = vpop.f32.mrf.mxu0
    %v2752 = vadd.f32 %v2724, %v2751
    %2753 = vdwg.mxu0
    %v2754 = vmul.f32 %v2749, 0.5
    %v2755 = vmul.f32 %v2752, 0.5
    %v2756 = vmul.f32 %v2749, 0.044715
    %v2757 = vmul.f32 %v2752, 0.044715
    %v2758 = vmul.f32 %v2756, %v2749
    %v2759 = vmul.f32 %v2757, %v2752
    %v2760 = vmul.f32 %v2758, %v2749
    %v2761 = vmul.f32 %v2759, %v2752
    %v2762 = vadd.f32 %v2749, %v2760
    %v2763 = vadd.f32 %v2752, %v2761
    %v2764 = vmul.f32 %v2762, 0.7978846
    %v2765 = vmul.f32 %v2763, 0.7978846
    %v2766 = vtanh.pop %v2764
    %v2767 = vtanh.pop %v2765
    %v2768 = vadd.f32 %v2766, 1.0
    %v2769 = vadd.f32 %v2767, 1.0
    %v2770 = vmul.f32 %v2754, %v2768
    %v2771 = vmul.f32 %v2755, %v2769
    %s2772 = scalar_lea.vmem %s9, 72
    %v2773 = vld [vmem:[%s2772] sm:$0xff]
    %v2774 = vld [vmem:[%s2772 + $0x8] sm:$0xff]
    %v2775 = vld [vmem:[%s2772 + $0x10] sm:$0xff]
    %v2776 = vld [vmem:[%s2772 + $0x18] sm:$0xff]
    %v2777 = vld [vmem:[%s2772 + $0x20] sm:$0xff]
    %v2778 = vld [vmem:[%s2772 + $0x28] sm:$0xff]
    %v2779 = vld [vmem:[%s2772 + $0x30] sm:$0xff]
    %v2780 = vld [vmem:[%s2772 + $0x38] sm:$0xff]
    %v2781 = vld [vmem:[%s2772 + $0x40] sm:$0x1]
    %v2782 = vperm.slane %v2781, 0
    %v2784 = vsel %vm1430, %v2770, 0
    %v2787 = vsel %vm1430, %v2771, 0
    %2789 = vmatpush.msra.mxu0 0.0
    %2790 = vmatpush.msra.mxu0 0.0
    %2791 = vmatpush.msra.mxu0 0.0
    %2792 = vmatpush.msra.mxu0 0.0
    %2793 = vmatpush.msra.mxu0 0.0
    %2794 = vmatpush.msra.mxu0 0.0
    %2795 = vmatpush.msra.mxu0 0.0
    %2796 = vmatpush.msra.mxu0 0.0
    %2797 = vmatpush.msra.mxu0 %v2780
    %2798 = vmatpush.msra.mxu0 %v2779
    %2799 = vmatpush.msra.mxu0 %v2778
    %2800 = vmatpush.msra.mxu0 %v2777
    %2801 = vmatpush.msra.mxu0 %v2776
    %2802 = vmatpush.msra.mxu0 %v2775
    %2803 = vmatpush.msra.mxu0 %v2774
    %2804 = vmatpush.msra.mxu0 %v2773
    %2805 = vmatmul.f32.gmra.mxu0 %v2784
    %v2806 = vpop.f32.mrf.mxu0
    %v2807 = vadd.f32 %v2782, %v2806
    %2808 = vmatmul.f32.gmra.mxu0 %v2787
    %v2809 = vpop.f32.mrf.mxu0
    %v2810 = vadd.f32 %v2782, %v2809
    %2811 = vdwg.mxu0
    %v2812 = vadd.f32 %v2807, %v2716
    %v2813 = vadd.f32 %v2810, %v2717
    %v2814 = vld [vmem:[%s7 + $0x8] sm:$0x1]
    %v2815 = vld [vmem:[%s7 + $0x9] sm:$0x1]
    %v2816 = vsel %vm100, %v2812, 0.0
    %2817 = vadd.xlane.f32.xlu0 %v2816
    %v2818 = vpop.xlane.xlu0 %2817
    %v2819 = vsel %vm100, %v2813, 0.0
    %2820 = vadd.xlane.f32.xlu0 %v2819
    %v2821 = vpop.xlane.xlu0 %2820
    %v2822 = vmul.f32 %v2818, %v113
    %v2823 = vmul.f32 %v2821, %v113
    %v2824 = vsub.f32 %v2812, %v2822
    %v2825 = vsub.f32 %v2813, %v2823
    %v2826 = vmul.f32 %v2824, %v2824
    %v2827 = vmul.f32 %v2825, %v2825
    %v2828 = vsel %vm100, %v2826, 0.0
    %2829 = vadd.xlane.f32.xlu0 %v2828
    %v2830 = vpop.xlane.xlu0 %2829
    %v2831 = vsel %vm100, %v2827, 0.0
    %2832 = vadd.xlane.f32.xlu0 %v2831
    %v2833 = vpop.xlane.xlu0 %2832
    %v2834 = vmul.f32 %v2830, %v113
    %v2835 = vmul.f32 %v2833, %v113
    %v2836 = vadd.f32 %v2834, 1e-12
    %v2837 = vadd.f32 %v2835, 1e-12
    %v2838 = vrsqrt.pop %v2836
    %v2839 = vmul.f32 %v2838, %v2836
    %v2840 = vmul.f32 %v2839, %v2838
    %v2841 = vmul.f32 0.5, %v2840
    %v2842 = vsub.f32 1.5, %v2841
    %v2843 = vmul.f32 %v2838, %v2842
    %vm2844 = vweird.f32 %v2836
    %vm2845 = vweird.f32 %v2838
    %vm2846 = vmor %vm2844, %vm2845
    %v2847 = vsel %vm2846, %v2838, %v2843
    %v2848 = vrsqrt.pop %v2837
    %v2849 = vmul.f32 %v2848, %v2837
    %v2850 = vmul.f32 %v2849, %v2848
    %v2851 = vmul.f32 0.5, %v2850
    %v2852 = vsub.f32 1.5, %v2851
    %v2853 = vmul.f32 %v2848, %v2852
    %vm2854 = vweird.f32 %v2837
    %vm2855 = vweird.f32 %v2848
    %vm2856 = vmor %vm2854, %vm2855
    %v2857 = vsel %vm2856, %v2848, %v2853
    %v2858 = vmul.f32 %v2824, %v2847
    %v2859 = vmul.f32 %v2825, %v2857
    %v2860 = vperm.slane %v2814, 0
    %v2861 = vmul.f32 %v2858, %v2860
    %v2862 = vmul.f32 %v2859, %v2860
    %v2863 = vperm.slane %v2815, 0
    %v2864 = vadd.f32 %v2861, %v2863
    %v2865 = vadd.f32 %v2862, %v2863
    %v2867 = vrot.slane %v2865, 7
    %vm2869 = vcmask 1040384
    %v2870 = vsel %vm2869, %v2864, %v2867
    %v2871 = vld [vmem:[%s10] sm:$0xff]
    %v2872 = vld [vmem:[%s10 + $0x8] sm:$0xff]
    %v2873 = vld [vmem:[%s10 + $0x10] sm:$0xff]
    %v2874 = vld [vmem:[%s10 + $0x18] sm:$0xff]
    %v2875 = vld [vmem:[%s10 + $0x20] sm:$0x1]
    %v2876 = vperm.slane %v2875, 0
    %v2878 = vsel %vm100, %v2870, 0
    %2880 = vmatpush.msra.mxu0 0.0
    %2881 = vmatpush.msra.mxu0 0.0
    %2882 = vmatpush.msra.mxu0 0.0
    %2883 = vmatpush.msra.mxu0 0.0
    %2884 = vmatpush.msra.mxu0 0.0
    %2885 = vmatpush.msra.mxu0 0.0
    %2886 = vmatpush.msra.mxu0 0.0
    %2887 = vmatpush.msra.mxu0 0.0
    %2888 = vmatpush.msra.mxu0 0.0
    %2889 = vmatpush.msra.mxu0 0.0
    %2890 = vmatpush.msra.mxu0 0.0
    %2891 = vmatpush.msra.mxu0 0.0
    %2892 = vmatpush.msra.mxu0 %v2874
    %2893 = vmatpush.msra.mxu0 %v2873
    %2894 = vmatpush.msra.mxu0 %v2872
    %2895 = vmatpush.msra.mxu0 %v2871
    %2896 = vmatmul.f32.gmra.mxu0 %v2878
    %v2897 = vpop.f32.mrf.mxu0
    %v2898 = vadd.f32 %v2876, %v2897
    %2899 = vdwg.mxu0
    %v2900 = vtanh.pop %v2898
    %v2901 = vld [vmem:[%s11] sm:$0xff]
    %v2902 = vld [vmem:[%s11 + $0x8] sm:$0xff]
    %v2903 = vld [vmem:[%s11 + $0x10] sm:$0xff]
    %v2904 = vld [vmem:[%s11 + $0x18] sm:$0xff]
    %v2905 = vld [vmem:[%s11 + $0x20] sm:$0x1]
    %v2906 = vperm.slane %v2905, 0
    %v2908 = vsel %vm100, %v2900, 0
    %2910 = vmatpush.msra.mxu0 0.0
    %2911 = vmatpush.msra.mxu0 0.0
    %2912 = vmatpush.msra.mxu0 0.0
    %2913 = vmatpush.msra.mxu0 0.0
    %2914 = vmatpush.msra.mxu0 0.0
    %2915 = vmatpush.msra.mxu0 0.0
    %2916 = vmatpush.msra.mxu0 0.0
    %2917 = vmatpush.msra.mxu0 0.0
    %2918 = vmatpush.msra.mxu0 0.0
    %2919 = vmatpush.msra.mxu0 0.0
    %2920 = vmatpush.msra.mxu0 0.0
    %2921 = vmatpush.msra.mxu0 0.0
    %2922 = vmatpush.msra.mxu0 %v2904
    %2923 = vmatpush.msra.mxu0 %v2903
    %2924 = vmatpush.msra.mxu0 %v2902
    %2925 = vmatpush.msra.mxu0 %v2901
    %2926 = vmatmul.f32.gmra.mxu0 %v2908
    %v2927 = vpop.f32.mrf.mxu0
    %v2928 = vadd.f32 %v2906, %v2927
    %2929 = vdwg.mxu0
    %2930 = vst [vmem:[#allocation2] sm:$0x3] %v2928
    // Predicated region
    $region50: #{bert_multilabel_forward.1} parent=1 // pred_check
      _
    $region51: #{bert_multilabel_forward.1} parent=1 // pred_check_branch
      %2932 = sbr.rel (0) target = $region53
    $region52: #{bert_multilabel_forward.1} parent=1 // pred_region
      %2934 = vsyncadd [#allocation3], 0
      %s2936 = sshll.u32 [#allocation2], 4
      %s2937 = int_to_ptr.vmem [resolvable:$true] %s2936
      %s2938 = sshll.u32 %s12, 4
      %s2939 = int_to_ptr.hbm [resolvable:$true] %s2938
      %2941 = dma.vmem_to_hbm [thread:$0]  %s2937, 32, %s2939, [#allocation3]
    $region53: #{bert_multilabel_forward.1} parent=1 // pred_fallthru
      _
    // Predicated region
    $region54: #{bert_multilabel_forward.1} parent=1 // pred_check
      _
    $region55: #{bert_multilabel_forward.1} parent=1 // pred_check_branch
      %2943 = sbr.rel (0) target = $region57
    $region56: #{bert_multilabel_forward.1} parent=1 // pred_region
      %2945 = dma.done [#allocation3], 32
    $region57: #{bert_multilabel_forward.1} parent=1 // pred_fallthru
      _
    %2946 = vsyncpa [#allocation3], 1

</llo_original>
